<compile_context>
chip_gen: v7x
topology: tpu7x:2x2x1
jax: 0.10.0
libtpu: 0.0.40
codegen_flags: <defaults>
</compile_context>

<pallas_src>
import functools

import jax
import jax.numpy as jnp
from jax.experimental import pallas as pl
from jax.experimental.pallas import tpu as pltpu

CHAR_EMBED = 50
KERNEL_SIZE = 5          # standard CS224N CNN kernel size
PAD_IDX = 0


def _round_up(x, m):
    return ((x + m - 1) // m) * m


# ------------------------- Pallas kernel -------------------------
def _char_cnn_highway_kernel(x_ref, wc_ref, bc_ref, wpg_ref, bpg_ref, o_ref,
                             *, k, c_in, l_out, use_im2col):
    """x_ref:   (TN, L, c_in)  bf16   channels-last char embeddings
       wc_ref:  (kc_pad, E)    bf16   im2col-folded conv weight (zero-padded rows)
       bc_ref:  (1, E)         f32    conv bias
       wpg_ref: (E, 2E)        bf16   fused [W_proj | W_gate]
       bpg_ref: (1, 2E)        f32    fused [b_proj | b_gate]
       o_ref:   (TN, E)        f32    word embeddings."""
    tn, l, _ = x_ref.shape
    kc_pad = wc_ref.shape[0]
    e = o_ref.shape[-1]

    x = x_ref[...]                                           # (TN, L, C) bf16

    if use_im2col:
        # im2col row (n, t) = [x[n,t,:], x[n,t+1,:], ..., x[n,t+k-1,:], 0-pad]
        # -> a single MXU matmul with contraction depth kc_pad (256 for k=5,c=50).
        pieces = [x[:, j:j + l_out, :] for j in range(k)]
        pad = kc_pad - k * c_in
        if pad > 0:
            pieces.append(jnp.zeros((tn, l_out, pad), x.dtype))
        col = jnp.concatenate(pieces, axis=-1)               # (TN, l_out, kc_pad)
        col = col.reshape(tn * l_out, kc_pad)
        conv = jnp.dot(col, wc_ref[...],
                       preferred_element_type=jnp.float32)   # f32 accumulation
        conv = conv.reshape(tn, l_out, e)
    else:
        # Lane-dense fallback: one full-length matmul per tap, combined with
        # shifted adds on the E-major output (no narrow-lane input slicing).
        x2d = x.reshape(tn * l, c_in)
        conv = jnp.zeros((tn, l_out, e), jnp.float32)
        for j in range(k):                                   # static, K=5
            y = jnp.dot(x2d, wc_ref[j * c_in:(j + 1) * c_in, :],
                        preferred_element_type=jnp.float32).reshape(tn, l, e)
            conv = conv + y[:, j:j + l_out, :]

    conv = conv + bc_ref[...]                                # (1, E) broadcast

    # ReLU + max-pool over the word-length (time) axis.
    h = jnp.max(jnp.maximum(conv, 0.0), axis=1)              # (TN, E) f32

    # Highway network: one fused matmul producing [proj | gate].
    pg = jnp.dot(h.astype(jnp.bfloat16), wpg_ref[...],
                 preferred_element_type=jnp.float32) + bpg_ref[...]
    proj = jnp.maximum(pg[:, :e], 0.0)
    gate = jax.nn.sigmoid(pg[:, e:])
    o_ref[...] = gate * proj + (1.0 - gate) * h


def char_cnn_highway(x, wc_col, b_conv, w_pg, b_pg, *, k, c_in, tile_n):
    """x: (N, L, c_in) bf16 with N % tile_n == 0  ->  (N, E) f32."""
    n, l, _ = x.shape
    kc_pad, e = wc_col.shape
    l_out = l - k + 1
    assert n % tile_n == 0

    def build(use_im2col):
        kernel = functools.partial(_char_cnn_highway_kernel, k=k, c_in=c_in,
                                   l_out=l_out, use_im2col=use_im2col)
        return pl.pallas_call(
            kernel,
            out_shape=jax.ShapeDtypeStruct((n, e), jnp.float32),
            grid_spec=pltpu.PrefetchScalarGridSpec(
                num_scalar_prefetch=0,
                grid=(n // tile_n,),
                in_specs=[
                    pl.BlockSpec((tile_n, l, c_in), lambda i: (i, 0, 0)),
                    pl.BlockSpec((kc_pad, e), lambda i: (0, 0)),
                    pl.BlockSpec((1, e), lambda i: (0, 0)),
                    pl.BlockSpec((e, 2 * e), lambda i: (0, 0)),
                    pl.BlockSpec((1, 2 * e), lambda i: (0, 0)),
                ],
                out_specs=pl.BlockSpec((tile_n, e), lambda i: (i, 0)),
            ),
            compiler_params=pltpu.CompilerParams(
                dimension_semantics=("parallel",),
                vmem_limit_bytes=48 * 1024 * 1024),
        )

    # Note: this feature-detection works in eager mode (the Mosaic lowering of
    # the pallas_call happens synchronously at the call site).
    try:
        return build(use_im2col=True)(x, wc_col, b_conv, w_pg, b_pg)
    except Exception:
        # This Mosaic build rejected the unaligned lane-dim concatenate of the
        # im2col path; use the lane-dense per-tap formulation instead.
        return build(use_im2col=False)(x, wc_col, b_conv, w_pg, b_pg)


# ------------------------- Module wrapper -------------------------
def init_params(key, vocab_size, embed_size):
    ks = jax.random.split(key, 7)
    emb = 0.1 * jax.random.normal(ks[0], (vocab_size, CHAR_EMBED), jnp.float32)
    emb = emb.at[PAD_IDX].set(0.0)                    # padding_idx row is zero
    # conv weight stored (K, C_in, C_out); dense weights stored (in, out).
    w_conv = 0.1 * jax.random.normal(ks[1], (KERNEL_SIZE, CHAR_EMBED, embed_size),
                                     jnp.float32)
    b_conv = 0.1 * jax.random.normal(ks[2], (1, embed_size), jnp.float32)
    w_proj = 0.1 * jax.random.normal(ks[3], (embed_size, embed_size), jnp.float32)
    b_proj = 0.1 * jax.random.normal(ks[4], (1, embed_size), jnp.float32)
    w_gate = 0.1 * jax.random.normal(ks[5], (embed_size, embed_size), jnp.float32)
    b_gate = 0.1 * jax.random.normal(ks[6], (1, embed_size), jnp.float32)
    return dict(emb=emb, w_conv=w_conv, b_conv=b_conv, w_proj=w_proj,
                b_proj=b_proj, w_gate=w_gate, b_gate=b_gate)


def prepare_params(params):
    """One-time folding of module weights into the kernel layout:
       - conv (K, C_in, E) -> im2col weight (K*C_in padded to 256, E) in bf16
       - highway proj/gate weights fused into (E, 2E) / (1, 2E)
       - embedding table cast to bf16 (halves the gathered activation's HBM bytes)."""
    k, c_in, e = params["w_conv"].shape
    kc = k * c_in
    kc_pad = _round_up(kc, 128)                       # 250 -> 256: full MXU depth
    wc_col = params["w_conv"].reshape(kc, e)
    wc_col = jnp.pad(wc_col, ((0, kc_pad - kc), (0, 0))).astype(jnp.bfloat16)
    w_pg = jnp.concatenate([params["w_proj"], params["w_gate"]],
                           axis=1).astype(jnp.bfloat16)
    b_pg = jnp.concatenate([params["b_proj"], params["b_gate"]],
                           axis=1).astype(jnp.float32)
    return dict(emb=params["emb"].astype(jnp.bfloat16),
                wc_col=wc_col,
                b_conv=params["b_conv"].astype(jnp.float32),
                w_pg=w_pg, b_pg=b_pg,
                k=k, c_in=c_in, embed_size=e)


def model_embeddings_forward(char_ids, prep, *, tile_n=256):
    """char_ids: (sent_len, batch, max_word_len) int32
       returns : (sent_len, batch, embed_size) float32."""
    s, b, l = char_ids.shape
    e = prep["embed_size"]

    # Char-embedding lookup stays in XLA (bf16 table -> half the HBM round trip
    # for the (S*B, L, 50) activation).  Torch permutes to NCL; the kernel is
    # channels-last, so no permute is materialized here.
    x = jnp.take(prep["emb"], char_ids, axis=0).reshape(s * b, l, CHAR_EMBED)

    n = s * b
    tn = min(tile_n, _round_up(n, 8))                 # sublane-aligned tile
    n_pad = _round_up(n, tn)
    if n_pad != n:                                    # pad with all-<pad> words
        x = jnp.pad(x, ((0, n_pad - n), (0, 0), (0, 0)))

    out = char_cnn_highway(x, prep["wc_col"], prep["b_conv"],
                           prep["w_pg"], prep["b_pg"],
                           k=prep["k"], c_in=prep["c_in"], tile_n=tn)
    out = out[:n]
    # TODO(synk): Dropout(0.3) is identity here (eval mode); training-mode
    # dropout would need an RNG that cannot match torch's sampler bit-for-bit.
    return out.reshape(s, b, e)


# ------------------------- reference (pure JAX, f32) -------------------------
def _reference(char_ids, params):
    s, b, l = char_ids.shape
    k, c_in, e = params["w_conv"].shape
    x = jnp.take(params["emb"], char_ids, axis=0).reshape(s * b, l, c_in)
    l_out = l - k + 1
    conv = jnp.zeros((s * b, l_out, e), jnp.float32)
    for j in range(k):
        conv = conv + jnp.einsum("nlc,ce->nle", x[:, j:j + l_out, :],
                                 params["w_conv"][j])
    conv = conv + params["b_conv"]
    h = jnp.max(jax.nn.relu(conv), axis=1)
    proj = jax.nn.relu(h @ params["w_proj"] + params["b_proj"])
    gate = jax.nn.sigmoid(h @ params["w_gate"] + params["b_gate"])
    out = gate * proj + (1.0 - gate) * h
    return out.reshape(s, b, e)


if __name__ == "__main__":
    SENT_LEN, BATCH, MAX_WORD_LEN = 8, 4, 12
    VOCAB_SIZE, EMBED_SIZE = 30, 128        # lane-dense output (multiple of 128)

    key = jax.random.PRNGKey(0)
    k_ids, k_params = jax.random.split(key)

    params = init_params(k_params, VOCAB_SIZE, EMBED_SIZE)
    prep = prepare_params(params)
    char_ids = jax.random.randint(k_ids, (SENT_LEN, BATCH, MAX_WORD_LEN),
                                  minval=0, maxval=VOCAB_SIZE, dtype=jnp.int32)

    out = model_embeddings_forward(char_ids, prep)
    out = jax.block_until_ready(out)
    assert out.shape == (SENT_LEN, BATCH, EMBED_SIZE)
    assert out.dtype == jnp.float32

    ref = _reference(char_ids, params)
    err = float(jnp.max(jnp.abs(out - ref)))
    assert err < 5e-2, f"max abs err {err}"
    print("KERNEL_OK")
</pallas_src>

<mosaic_0001>
module attributes {stable_mosaic.version = 11 : i64} {
  func.func @_char_cnn_highway_kernel(%arg0: i32, %arg1: memref<32x12x50xbf16, #tpu.memory_space<vmem>>, %arg2: memref<256x128xbf16, #tpu.memory_space<vmem>>, %arg3: memref<1x128xf32, #tpu.memory_space<vmem>>, %arg4: memref<128x256xbf16, #tpu.memory_space<vmem>>, %arg5: memref<1x256xf32, #tpu.memory_space<vmem>>, %arg6: memref<32x128xf32, #tpu.memory_space<vmem>>) attributes {dimension_semantics = [#tpu.dimension_semantics<parallel>], iteration_bounds = array<i64: 1>, scalar_prefetch = 0 : i64, scratch_operands = 0 : i64, tpu.core_type = #tpu.core_type<tc>, window_params = [{transform_indices = @transform_0, window_bounds = array<i64: 32, 12, 50>}, {pipeline_mode = #tpu.pipeline_mode<synchronous>, transform_indices = @transform_1, window_bounds = array<i64: 256, 128>}, {pipeline_mode = #tpu.pipeline_mode<synchronous>, transform_indices = @transform_2, window_bounds = array<i64: 1, 128>}, {pipeline_mode = #tpu.pipeline_mode<synchronous>, transform_indices = @transform_3, window_bounds = array<i64: 128, 256>}, {pipeline_mode = #tpu.pipeline_mode<synchronous>, transform_indices = @transform_4, window_bounds = array<i64: 1, 256>}, {transform_indices = @transform_5, window_bounds = array<i64: 32, 128>}]} {
    %c0 = arith.constant 0 : index
    %c0_0 = arith.constant 0 : index
    %c0_1 = arith.constant 0 : index
    %0 = vector.load %arg1[%c0, %c0_0, %c0_1] : memref<32x12x50xbf16, #tpu.memory_space<vmem>>, vector<32x12x50xbf16>
    %1 = vector.extract_strided_slice %0 {offsets = [0, 0, 0], sizes = [32, 8, 50], strides = [1, 1, 1]} : vector<32x12x50xbf16> to vector<32x8x50xbf16>
    %2 = vector.extract_strided_slice %0 {offsets = [0, 1, 0], sizes = [32, 8, 50], strides = [1, 1, 1]} : vector<32x12x50xbf16> to vector<32x8x50xbf16>
    %3 = vector.extract_strided_slice %0 {offsets = [0, 2, 0], sizes = [32, 8, 50], strides = [1, 1, 1]} : vector<32x12x50xbf16> to vector<32x8x50xbf16>
    %4 = vector.extract_strided_slice %0 {offsets = [0, 3, 0], sizes = [32, 8, 50], strides = [1, 1, 1]} : vector<32x12x50xbf16> to vector<32x8x50xbf16>
    %5 = vector.extract_strided_slice %0 {offsets = [0, 4, 0], sizes = [32, 8, 50], strides = [1, 1, 1]} : vector<32x12x50xbf16> to vector<32x8x50xbf16>
    %cst = arith.constant 0.000000e+00 : bf16
    %6 = vector.broadcast %cst : bf16 to vector<32x8x6xbf16>
    %7 = tpu.concatenate %1, %2, %3, %4, %5, %6 in 2 : vector<32x8x50xbf16>, vector<32x8x50xbf16>, vector<32x8x50xbf16>, vector<32x8x50xbf16>, vector<32x8x50xbf16>, vector<32x8x6xbf16> -> vector<32x8x256xbf16>
    %8 = vector.shape_cast %7 : vector<32x8x256xbf16> to vector<256x256xbf16>
    %c0_2 = arith.constant 0 : index
    %c0_3 = arith.constant 0 : index
    %9 = vector.load %arg2[%c0_2, %c0_3] : memref<256x128xbf16, #tpu.memory_space<vmem>>, vector<256x128xbf16>
    %cst_4 = arith.constant dense<0.000000e+00> : vector<256x128xf32>
    %10 = tpu.matmul %8, %9, %cst_4 {dimension_numbers = #tpu.dot_dimension_numbers<[1], [0], [0], [1], [0, 0, 1, 1], [], []>} : vector<256x256xbf16>, vector<256x128xbf16>, vector<256x128xf32> -> vector<256x128xf32>
    %11 = vector.shape_cast %10 : vector<256x128xf32> to vector<32x8x128xf32>
    %c0_5 = arith.constant 0 : index
    %c0_6 = arith.constant 0 : index
    %12 = vector.load %arg3[%c0_5, %c0_6] : memref<1x128xf32, #tpu.memory_space<vmem>>, vector<1x128xf32>
    %13 = vector.shape_cast %12 : vector<1x128xf32> to vector<1x1x128xf32>
    %14 = vector.broadcast %13 : vector<1x1x128xf32> to vector<32x8x128xf32>
    %15 = arith.addf %11, %14 : vector<32x8x128xf32>
    %cst_7 = arith.constant 0.000000e+00 : f32
    %16 = vector.broadcast %cst_7 : f32 to vector<32x8x128xf32>
    %17 = arith.maximumf %15, %16 : vector<32x8x128xf32>
    %cst_8 = arith.constant dense<0xFF800000> : vector<32x128xf32>
    %18 = vector.multi_reduction <maximumf>, %17, %cst_8 [1] : vector<32x8x128xf32> to vector<32x128xf32>
    %19 = arith.truncf %18 : vector<32x128xf32> to vector<32x128xbf16>
    %c0_9 = arith.constant 0 : index
    %c0_10 = arith.constant 0 : index
    %20 = vector.load %arg4[%c0_9, %c0_10] : memref<128x256xbf16, #tpu.memory_space<vmem>>, vector<128x256xbf16>
    %cst_11 = arith.constant dense<0.000000e+00> : vector<32x256xf32>
    %21 = tpu.matmul %19, %20, %cst_11 {dimension_numbers = #tpu.dot_dimension_numbers<[1], [0], [0], [1], [0, 0, 1, 1], [], []>} : vector<32x128xbf16>, vector<128x256xbf16>, vector<32x256xf32> -> vector<32x256xf32>
    %c0_12 = arith.constant 0 : index
    %c0_13 = arith.constant 0 : index
    %22 = vector.load %arg5[%c0_12, %c0_13] : memref<1x256xf32, #tpu.memory_space<vmem>>, vector<1x256xf32>
    %23 = vector.broadcast %22 : vector<1x256xf32> to vector<32x256xf32>
    %24 = arith.addf %21, %23 : vector<32x256xf32>
    %25 = vector.extract_strided_slice %24 {offsets = [0, 0], sizes = [32, 128], strides = [1, 1]} : vector<32x256xf32> to vector<32x128xf32>
    %cst_14 = arith.constant 0.000000e+00 : f32
    %26 = vector.broadcast %cst_14 : f32 to vector<32x128xf32>
    %27 = arith.maximumf %25, %26 : vector<32x128xf32>
    %28 = vector.extract_strided_slice %24 {offsets = [0, 128], sizes = [32, 128], strides = [1, 1]} : vector<32x256xf32> to vector<32x128xf32>
    %29 = arith.negf %28 : vector<32x128xf32>
    %30 = math.exp %29 : vector<32x128xf32>
    %cst_15 = arith.constant 1.000000e+00 : f32
    %31 = vector.broadcast %cst_15 : f32 to vector<32x128xf32>
    %32 = arith.addf %31, %30 : vector<32x128xf32>
    %33 = arith.divf %31, %32 : vector<32x128xf32>
    %34 = arith.mulf %33, %27 : vector<32x128xf32>
    %cst_16 = arith.constant 1.000000e+00 : f32
    %35 = vector.broadcast %cst_16 : f32 to vector<32x128xf32>
    %36 = arith.subf %35, %33 : vector<32x128xf32>
    %37 = arith.mulf %36, %18 : vector<32x128xf32>
    %38 = arith.addf %34, %37 : vector<32x128xf32>
    %c0_17 = arith.constant 0 : index
    %c0_18 = arith.constant 0 : index
    %39 = vector.load %arg6[%c0_17, %c0_18] : memref<32x128xf32, #tpu.memory_space<vmem>>, vector<32x128xf32>
    tpu.vector_store %arg6[%c0_17, %c0_18], %38 {strides = array<i32>} : memref<32x128xf32, #tpu.memory_space<vmem>>, vector<32x128xf32>,
    return
  }
  func.func @transform_0(%arg0: i32) -> (i32, i32, i32) {
    %c0_i32 = arith.constant 0 : i32
    %c0_i32_0 = arith.constant 0 : i32
    %c0_i32_1 = arith.constant 0 : i32
    return %arg0, %c0_i32, %c0_i32_0 : i32, i32, i32
  }
  func.func @transform_1(%arg0: i32) -> (i32, i32) {
    %c0_i32 = arith.constant 0 : i32
    %c0_i32_0 = arith.constant 0 : i32
    %c0_i32_1 = arith.constant 0 : i32
    return %c0_i32, %c0_i32_0 : i32, i32
  }
  func.func @transform_2(%arg0: i32) -> (i32, i32) {
    %c0_i32 = arith.constant 0 : i32
    %c0_i32_0 = arith.constant 0 : i32
    %c0_i32_1 = arith.constant 0 : i32
    return %c0_i32, %c0_i32_0 : i32, i32
  }
  func.func @transform_3(%arg0: i32) -> (i32, i32) {
    %c0_i32 = arith.constant 0 : i32
    %c0_i32_0 = arith.constant 0 : i32
    %c0_i32_1 = arith.constant 0 : i32
    return %c0_i32, %c0_i32_0 : i32, i32
  }
  func.func @transform_4(%arg0: i32) -> (i32, i32) {
    %c0_i32 = arith.constant 0 : i32
    %c0_i32_0 = arith.constant 0 : i32
    %c0_i32_1 = arith.constant 0 : i32
    return %c0_i32, %c0_i32_0 : i32, i32
  }
  func.func @transform_5(%arg0: i32) -> (i32, i32) {
    %c0_i32 = arith.constant 0 : i32
    %c0_i32_0 = arith.constant 0 : i32
    return %arg0, %c0_i32 : i32, i32
  }
}

module attributes {stable_mosaic.version = 11 : i64} {
  func.func @_char_cnn_highway_kernel(%arg0: i32, %arg1: memref<32x12x50xbf16, #tpu.memory_space<vmem>>, %arg2: memref<256x128xbf16, #tpu.memory_space<vmem>>, %arg3: memref<1x128xf32, #tpu.memory_space<vmem>>, %arg4: memref<128x256xbf16, #tpu.memory_space<vmem>>, %arg5: memref<1x256xf32, #tpu.memory_space<vmem>>, %arg6: memref<32x128xf32, #tpu.memory_space<vmem>>) attributes {dimension_semantics = [#tpu.dimension_semantics<parallel>], iteration_bounds = array<i64: 1>, scalar_prefetch = 0 : i64, scratch_operands = 0 : i64, tpu.core_type = #tpu.core_type<tc>, window_params = [{transform_indices = @transform_0, window_bounds = array<i64: 32, 12, 50>}, {pipeline_mode = #tpu.pipeline_mode<synchronous>, transform_indices = @transform_1, window_bounds = array<i64: 256, 128>}, {pipeline_mode = #tpu.pipeline_mode<synchronous>, transform_indices = @transform_2, window_bounds = array<i64: 1, 128>}, {pipeline_mode = #tpu.pipeline_mode<synchronous>, transform_indices = @transform_3, window_bounds = array<i64: 128, 256>}, {pipeline_mode = #tpu.pipeline_mode<synchronous>, transform_indices = @transform_4, window_bounds = array<i64: 1, 256>}, {transform_indices = @transform_5, window_bounds = array<i64: 32, 128>}]} {
    %c0 = arith.constant 0 : index
    %c0_0 = arith.constant 0 : index
    %c0_1 = arith.constant 0 : index
    %0 = vector.load %arg1[%c0, %c0_0, %c0_1] : memref<32x12x50xbf16, #tpu.memory_space<vmem>>, vector<32x12x50xbf16>
    %1 = vector.shape_cast %0 : vector<32x12x50xbf16> to vector<384x50xbf16>
    %cst = arith.constant 0.000000e+00 : f32
    %2 = vector.broadcast %cst : f32 to vector<32x8x128xf32>
    %c0_2 = arith.constant 0 : index
    %c0_3 = arith.constant 0 : index
    %3 = vector.load %arg2[%c0_2, %c0_3] : memref<256x128xbf16, #tpu.memory_space<vmem>>, vector<50x128xbf16>
    %cst_4 = arith.constant dense<0.000000e+00> : vector<384x128xf32>
    %4 = tpu.matmul %1, %3, %cst_4 {dimension_numbers = #tpu.dot_dimension_numbers<[1], [0], [0], [1], [0, 0, 1, 1], [], []>} : vector<384x50xbf16>, vector<50x128xbf16>, vector<384x128xf32> -> vector<384x128xf32>
    %5 = vector.shape_cast %4 : vector<384x128xf32> to vector<32x12x128xf32>
    %6 = vector.extract_strided_slice %5 {offsets = [0, 0, 0], sizes = [32, 8, 128], strides = [1, 1, 1]} : vector<32x12x128xf32> to vector<32x8x128xf32>
    %7 = arith.addf %2, %6 : vector<32x8x128xf32>
    %c50 = arith.constant 50 : index
    %c0_5 = arith.constant 0 : index
    %8 = vector.load %arg2[%c50, %c0_5] : memref<256x128xbf16, #tpu.memory_space<vmem>>, vector<50x128xbf16>
    %cst_6 = arith.constant dense<0.000000e+00> : vector<384x128xf32>
    %9 = tpu.matmul %1, %8, %cst_6 {dimension_numbers = #tpu.dot_dimension_numbers<[1], [0], [0], [1], [0, 0, 1, 1], [], []>} : vector<384x50xbf16>, vector<50x128xbf16>, vector<384x128xf32> -> vector<384x128xf32>
    %10 = vector.shape_cast %9 : vector<384x128xf32> to vector<32x12x128xf32>
    %11 = vector.extract_strided_slice %10 {offsets = [0, 1, 0], sizes = [32, 8, 128], strides = [1, 1, 1]} : vector<32x12x128xf32> to vector<32x8x128xf32>
    %12 = arith.addf %7, %11 : vector<32x8x128xf32>
    %c100 = arith.constant 100 : index
    %c0_7 = arith.constant 0 : index
    %13 = vector.load %arg2[%c100, %c0_7] : memref<256x128xbf16, #tpu.memory_space<vmem>>, vector<50x128xbf16>
    %cst_8 = arith.constant dense<0.000000e+00> : vector<384x128xf32>
    %14 = tpu.matmul %1, %13, %cst_8 {dimension_numbers = #tpu.dot_dimension_numbers<[1], [0], [0], [1], [0, 0, 1, 1], [], []>} : vector<384x50xbf16>, vector<50x128xbf16>, vector<384x128xf32> -> vector<384x128xf32>
    %15 = vector.shape_cast %14 : vector<384x128xf32> to vector<32x12x128xf32>
    %16 = vector.extract_strided_slice %15 {offsets = [0, 2, 0], sizes = [32, 8, 128], strides = [1, 1, 1]} : vector<32x12x128xf32> to vector<32x8x128xf32>
    %17 = arith.addf %12, %16 : vector<32x8x128xf32>
    %c150 = arith.constant 150 : index
    %c0_9 = arith.constant 0 : index
    %18 = vector.load %arg2[%c150, %c0_9] : memref<256x128xbf16, #tpu.memory_space<vmem>>, vector<50x128xbf16>
    %cst_10 = arith.constant dense<0.000000e+00> : vector<384x128xf32>
    %19 = tpu.matmul %1, %18, %cst_10 {dimension_numbers = #tpu.dot_dimension_numbers<[1], [0], [0], [1], [0, 0, 1, 1], [], []>} : vector<384x50xbf16>, vector<50x128xbf16>, vector<384x128xf32> -> vector<384x128xf32>
    %20 = vector.shape_cast %19 : vector<384x128xf32> to vector<32x12x128xf32>
    %21 = vector.extract_strided_slice %20 {offsets = [0, 3, 0], sizes = [32, 8, 128], strides = [1, 1, 1]} : vector<32x12x128xf32> to vector<32x8x128xf32>
    %22 = arith.addf %17, %21 : vector<32x8x128xf32>
    %c200 = arith.constant 200 : index
    %c0_11 = arith.constant 0 : index
    %23 = vector.load %arg2[%c200, %c0_11] : memref<256x128xbf16, #tpu.memory_space<vmem>>, vector<50x128xbf16>
    %cst_12 = arith.constant dense<0.000000e+00> : vector<384x128xf32>
    %24 = tpu.matmul %1, %23, %cst_12 {dimension_numbers = #tpu.dot_dimension_numbers<[1], [0], [0], [1], [0, 0, 1, 1], [], []>} : vector<384x50xbf16>, vector<50x128xbf16>, vector<384x128xf32> -> vector<384x128xf32>
    %25 = vector.shape_cast %24 : vector<384x128xf32> to vector<32x12x128xf32>
    %26 = vector.extract_strided_slice %25 {offsets = [0, 4, 0], sizes = [32, 8, 128], strides = [1, 1, 1]} : vector<32x12x128xf32> to vector<32x8x128xf32>
    %27 = arith.addf %22, %26 : vector<32x8x128xf32>
    %c0_13 = arith.constant 0 : index
    %c0_14 = arith.constant 0 : index
    %28 = vector.load %arg3[%c0_13, %c0_14] : memref<1x128xf32, #tpu.memory_space<vmem>>, vector<1x128xf32>
    %29 = vector.shape_cast %28 : vector<1x128xf32> to vector<1x1x128xf32>
    %30 = vector.broadcast %29 : vector<1x1x128xf32> to vector<32x8x128xf32>
    %31 = arith.addf %27, %30 : vector<32x8x128xf32>
    %cst_15 = arith.constant 0.000000e+00 : f32
    %32 = vector.broadcast %cst_15 : f32 to vector<32x8x128xf32>
    %33 = arith.maximumf %31, %32 : vector<32x8x128xf32>
    %cst_16 = arith.constant dense<0xFF800000> : vector<32x128xf32>
    %34 = vector.multi_reduction <maximumf>, %33, %cst_16 [1] : vector<32x8x128xf32> to vector<32x128xf32>
    %35 = arith.truncf %34 : vector<32x128xf32> to vector<32x128xbf16>
    %c0_17 = arith.constant 0 : index
    %c0_18 = arith.constant 0 : index
    %36 = vector.load %arg4[%c0_17, %c0_18] : memref<128x256xbf16, #tpu.memory_space<vmem>>, vector<128x256xbf16>
    %cst_19 = arith.constant dense<0.000000e+00> : vector<32x256xf32>
    %37 = tpu.matmul %35, %36, %cst_19 {dimension_numbers = #tpu.dot_dimension_numbers<[1], [0], [0], [1], [0, 0, 1, 1], [], []>} : vector<32x128xbf16>, vector<128x256xbf16>, vector<32x256xf32> -> vector<32x256xf32>
    %c0_20 = arith.constant 0 : index
    %c0_21 = arith.constant 0 : index
    %38 = vector.load %arg5[%c0_20, %c0_21] : memref<1x256xf32, #tpu.memory_space<vmem>>, vector<1x256xf32>
    %39 = vector.broadcast %38 : vector<1x256xf32> to vector<32x256xf32>
    %40 = arith.addf %37, %39 : vector<32x256xf32>
    %41 = vector.extract_strided_slice %40 {offsets = [0, 0], sizes = [32, 128], strides = [1, 1]} : vector<32x256xf32> to vector<32x128xf32>
    %cst_22 = arith.constant 0.000000e+00 : f32
    %42 = vector.broadcast %cst_22 : f32 to vector<32x128xf32>
    %43 = arith.maximumf %41, %42 : vector<32x128xf32>
    %44 = vector.extract_strided_slice %40 {offsets = [0, 128], sizes = [32, 128], strides = [1, 1]} : vector<32x256xf32> to vector<32x128xf32>
    %45 = arith.negf %44 : vector<32x128xf32>
    %46 = math.exp %45 : vector<32x128xf32>
    %cst_23 = arith.constant 1.000000e+00 : f32
    %47 = vector.broadcast %cst_23 : f32 to vector<32x128xf32>
    %48 = arith.addf %47, %46 : vector<32x128xf32>
    %49 = arith.divf %47, %48 : vector<32x128xf32>
    %50 = arith.mulf %49, %43 : vector<32x128xf32>
    %cst_24 = arith.constant 1.000000e+00 : f32
    %51 = vector.broadcast %cst_24 : f32 to vector<32x128xf32>
    %52 = arith.subf %51, %49 : vector<32x128xf32>
    %53 = arith.mulf %52, %34 : vector<32x128xf32>
    %54 = arith.addf %50, %53 : vector<32x128xf32>
    %c0_25 = arith.constant 0 : index
    %c0_26 = arith.constant 0 : index
    %55 = vector.load %arg6[%c0_25, %c0_26] : memref<32x128xf32, #tpu.memory_space<vmem>>, vector<32x128xf32>
    tpu.vector_store %arg6[%c0_25, %c0_26], %54 {strides = array<i32>} : memref<32x128xf32, #tpu.memory_space<vmem>>, vector<32x128xf32>,
    return
  }
  func.func @transform_0(%arg0: i32) -> (i32, i32, i32) {
    %c0_i32 = arith.constant 0 : i32
    %c0_i32_0 = arith.constant 0 : i32
    %c0_i32_1 = arith.constant 0 : i32
    return %arg0, %c0_i32, %c0_i32_0 : i32, i32, i32
  }
  func.func @transform_1(%arg0: i32) -> (i32, i32) {
    %c0_i32 = arith.constant 0 : i32
    %c0_i32_0 = arith.constant 0 : i32
    %c0_i32_1 = arith.constant 0 : i32
    return %c0_i32, %c0_i32_0 : i32, i32
  }
  func.func @transform_2(%arg0: i32) -> (i32, i32) {
    %c0_i32 = arith.constant 0 : i32
    %c0_i32_0 = arith.constant 0 : i32
    %c0_i32_1 = arith.constant 0 : i32
    return %c0_i32, %c0_i32_0 : i32, i32
  }
  func.func @transform_3(%arg0: i32) -> (i32, i32) {
    %c0_i32 = arith.constant 0 : i32
    %c0_i32_0 = arith.constant 0 : i32
    %c0_i32_1 = arith.constant 0 : i32
    return %c0_i32, %c0_i32_0 : i32, i32
  }
  func.func @transform_4(%arg0: i32) -> (i32, i32) {
    %c0_i32 = arith.constant 0 : i32
    %c0_i32_0 = arith.constant 0 : i32
    %c0_i32_1 = arith.constant 0 : i32
    return %c0_i32, %c0_i32_0 : i32, i32
  }
  func.func @transform_5(%arg0: i32) -> (i32, i32) {
    %c0_i32 = arith.constant 0 : i32
    %c0_i32_0 = arith.constant 0 : i32
    return %arg0, %c0_i32 : i32, i32
  }
}

</mosaic_0001>

<llo_original>
// kernel: tpu_custom_call.1
$region0: #{tpu_custom_call.1}
  #allocation0 [shape = 'u32[]', space=smem, size = 0x4, offset = 0x4, fixed_abs, tag = 'smem constant byte address 0x4 - core index']
  #allocation1 [shape = 'u32[144,128]{1,0:T(1,128)}', space=vmem, size = 0x12000, scoped, tag = 'internal scratch']
  %s0 = inlined_call_operand.vmem [shape: bf16[32,12,50], index: 0, kind: input, shape index: {}]
  %s1 = inlined_call_operand.vmem [shape: bf16[256,128], index: 1, kind: input, shape index: {}]
  %s2 = inlined_call_operand.vmem [shape: f32[1,128], index: 2, kind: input, shape index: {}]
  %s3 = inlined_call_operand.vmem [shape: bf16[128,256], index: 3, kind: input, shape index: {}]
  %s4 = inlined_call_operand.vmem [shape: f32[1,256], index: 4, kind: input, shape index: {}]
  %s5 = inlined_call_operand.hbm [shape: f32[32,128], index: 5, kind: output, shape index: {}]
  %s6 = sld [smem:[#allocation0]]
  $region30: #{tpu_custom_call.1} parent=0
    _
  %s8 = ssub.s32 1, %s6
  %s9 = scalar_select 0, %s8, %s6
  $region1: #{tpu_custom_call.1} parent=0
    #allocation2 [shape = 'u8[16384]{0}', space=vmem, size = 0x4000, scoped, tag = 'output window, operand 0, single buffered']
    #allocation3 [shape = 's32[1]{0}', space=sflag, size = 0x4, scoped, tag = 'scoped memory for tpu_custom_call.1']
    %10 = vsyncpa [#allocation3], 0
    // Predicated region
    $region2: #{tpu_custom_call.1} parent=1 // pred_check
      _
    $region3: #{tpu_custom_call.1} parent=1 // pred_check_branch
      %12 = sbr.rel (0) target = $region5
    $region4: #{tpu_custom_call.1} parent=1 // pred_region
      _
    $region5: #{tpu_custom_call.1} parent=1 // pred_fallthru
      _
    // Predicated region
    $region6: #{tpu_custom_call.1} parent=1 // pred_check
      _
    $region7: #{tpu_custom_call.1} parent=1 // pred_check_branch
      %14 = sbr.rel (0) target = $region9
    $region8: #{tpu_custom_call.1} parent=1 // pred_region
      _
    $region9: #{tpu_custom_call.1} parent=1 // pred_fallthru
      _
    // Predicated region
    $region10: #{tpu_custom_call.1} parent=1 // pred_check
      _
    $region11: #{tpu_custom_call.1} parent=1 // pred_check_branch
      %16 = sbr.rel (0) target = $region13
    $region12: #{tpu_custom_call.1} parent=1 // pred_region
      _
    $region13: #{tpu_custom_call.1} parent=1 // pred_fallthru
      _
    // Predicated region
    $region14: #{tpu_custom_call.1} parent=1 // pred_check
      _
    $region15: #{tpu_custom_call.1} parent=1 // pred_check_branch
      %18 = sbr.rel (0) target = $region17
    $region16: #{tpu_custom_call.1} parent=1 // pred_region
      _
    $region17: #{tpu_custom_call.1} parent=1 // pred_fallthru
      _
    // Predicated region
    $region18: #{tpu_custom_call.1} parent=1 // pred_check
      _
    $region19: #{tpu_custom_call.1} parent=1 // pred_check_branch
      %20 = sbr.rel (0) target = $region21
    $region20: #{tpu_custom_call.1} parent=1 // pred_region
      _
    $region21: #{tpu_custom_call.1} parent=1 // pred_fallthru
      _
    %v22 = vld [vmem:[%s0] sm:$0xf]
    %v23 = vld [vmem:[%s0 + $0x4] sm:$0x3]
    %v24 = vld [vmem:[%s0 + $0x8] sm:$0xf]
    %v25 = vld [vmem:[%s0 + $0xc] sm:$0x3]
    %v26 = vld [vmem:[%s0 + $0x10] sm:$0xf]
    %v27 = vld [vmem:[%s0 + $0x14] sm:$0x3]
    %v28 = vld [vmem:[%s0 + $0x18] sm:$0xf]
    %v29 = vld [vmem:[%s0 + $0x1c] sm:$0x3]
    %v30 = vld [vmem:[%s0 + $0x20] sm:$0xf]
    %v31 = vld [vmem:[%s0 + $0x24] sm:$0x3]
    %v32 = vld [vmem:[%s0 + $0x28] sm:$0xf]
    %v33 = vld [vmem:[%s0 + $0x2c] sm:$0x3]
    %v34 = vld [vmem:[%s0 + $0x30] sm:$0xf]
    %v35 = vld [vmem:[%s0 + $0x34] sm:$0x3]
    %v36 = vld [vmem:[%s0 + $0x38] sm:$0xf]
    %v37 = vld [vmem:[%s0 + $0x3c] sm:$0x3]
    %v38 = vld [vmem:[%s0 + $0x40] sm:$0xf]
    %v39 = vld [vmem:[%s0 + $0x44] sm:$0x3]
    %v40 = vld [vmem:[%s0 + $0x48] sm:$0xf]
    %v41 = vld [vmem:[%s0 + $0x4c] sm:$0x3]
    %v42 = vld [vmem:[%s0 + $0x50] sm:$0xf]
    %v43 = vld [vmem:[%s0 + $0x54] sm:$0x3]
    %v44 = vld [vmem:[%s0 + $0x58] sm:$0xf]
    %v45 = vld [vmem:[%s0 + $0x5c] sm:$0x3]
    %v46 = vld [vmem:[%s0 + $0x60] sm:$0xf]
    %v47 = vld [vmem:[%s0 + $0x64] sm:$0x3]
    %v48 = vld [vmem:[%s0 + $0x68] sm:$0xf]
    %v49 = vld [vmem:[%s0 + $0x6c] sm:$0x3]
    %v50 = vld [vmem:[%s0 + $0x70] sm:$0xf]
    %v51 = vld [vmem:[%s0 + $0x74] sm:$0x3]
    %v52 = vld [vmem:[%s0 + $0x78] sm:$0xf]
    %v53 = vld [vmem:[%s0 + $0x7c] sm:$0x3]
    %v54 = vld [vmem:[%s0 + $0x80] sm:$0xf]
    %v55 = vld [vmem:[%s0 + $0x84] sm:$0x3]
    %v56 = vld [vmem:[%s0 + $0x88] sm:$0xf]
    %v57 = vld [vmem:[%s0 + $0x8c] sm:$0x3]
    %v58 = vld [vmem:[%s0 + $0x90] sm:$0xf]
    %v59 = vld [vmem:[%s0 + $0x94] sm:$0x3]
    %v60 = vld [vmem:[%s0 + $0x98] sm:$0xf]
    %v61 = vld [vmem:[%s0 + $0x9c] sm:$0x3]
    %v62 = vld [vmem:[%s0 + $0xa0] sm:$0xf]
    %v63 = vld [vmem:[%s0 + $0xa4] sm:$0x3]
    %v64 = vld [vmem:[%s0 + $0xa8] sm:$0xf]
    %v65 = vld [vmem:[%s0 + $0xac] sm:$0x3]
    %v66 = vld [vmem:[%s0 + $0xb0] sm:$0xf]
    %v67 = vld [vmem:[%s0 + $0xb4] sm:$0x3]
    %v68 = vld [vmem:[%s0 + $0xb8] sm:$0xf]
    %v69 = vld [vmem:[%s0 + $0xbc] sm:$0x3]
    %v70 = vld [vmem:[%s0 + $0xc0] sm:$0xf]
    %v71 = vld [vmem:[%s0 + $0xc4] sm:$0x3]
    %v72 = vld [vmem:[%s0 + $0xc8] sm:$0xf]
    %v73 = vld [vmem:[%s0 + $0xcc] sm:$0x3]
    %v74 = vld [vmem:[%s0 + $0xd0] sm:$0xf]
    %v75 = vld [vmem:[%s0 + $0xd4] sm:$0x3]
    %v76 = vld [vmem:[%s0 + $0xd8] sm:$0xf]
    %v77 = vld [vmem:[%s0 + $0xdc] sm:$0x3]
    %v78 = vld [vmem:[%s0 + $0xe0] sm:$0xf]
    %v79 = vld [vmem:[%s0 + $0xe4] sm:$0x3]
    %v80 = vld [vmem:[%s0 + $0xe8] sm:$0xf]
    %v81 = vld [vmem:[%s0 + $0xec] sm:$0x3]
    %v82 = vld [vmem:[%s0 + $0xf0] sm:$0xf]
    %v83 = vld [vmem:[%s0 + $0xf4] sm:$0x3]
    %v84 = vld [vmem:[%s0 + $0xf8] sm:$0xf]
    %v85 = vld [vmem:[%s0 + $0xfc] sm:$0x3]
    %v150 = vunpack.c.l.b16 %v22
    %v151 = vunpack.c.l.b16 %v23
    %v152 = vunpack.c.l.b16 %v24
    %v153 = vunpack.c.l.b16 %v25
    %v154 = vunpack.c.l.b16 %v26
    %v155 = vunpack.c.l.b16 %v27
    %v156 = vunpack.c.l.b16 %v28
    %v157 = vunpack.c.l.b16 %v29
    %v158 = vunpack.c.l.b16 %v30
    %v159 = vunpack.c.l.b16 %v31
    %v160 = vunpack.c.l.b16 %v32
    %v161 = vunpack.c.l.b16 %v33
    %v162 = vunpack.c.l.b16 %v34
    %v163 = vunpack.c.l.b16 %v35
    %v164 = vunpack.c.l.b16 %v36
    %v165 = vunpack.c.l.b16 %v37
    %v166 = vunpack.c.l.b16 %v38
    %v167 = vunpack.c.l.b16 %v39
    %v168 = vunpack.c.l.b16 %v40
    %v169 = vunpack.c.l.b16 %v41
    %v170 = vunpack.c.l.b16 %v42
    %v171 = vunpack.c.l.b16 %v43
    %v172 = vunpack.c.l.b16 %v44
    %v173 = vunpack.c.l.b16 %v45
    %v174 = vunpack.c.l.b16 %v46
    %v175 = vunpack.c.l.b16 %v47
    %v176 = vunpack.c.l.b16 %v48
    %v177 = vunpack.c.l.b16 %v49
    %v178 = vunpack.c.l.b16 %v50
    %v179 = vunpack.c.l.b16 %v51
    %v180 = vunpack.c.l.b16 %v52
    %v181 = vunpack.c.l.b16 %v53
    %v182 = vunpack.c.l.b16 %v54
    %v183 = vunpack.c.l.b16 %v55
    %v184 = vunpack.c.l.b16 %v56
    %v185 = vunpack.c.l.b16 %v57
    %v186 = vunpack.c.l.b16 %v58
    %v187 = vunpack.c.l.b16 %v59
    %v188 = vunpack.c.l.b16 %v60
    %v189 = vunpack.c.l.b16 %v61
    %v190 = vunpack.c.l.b16 %v62
    %v191 = vunpack.c.l.b16 %v63
    %v192 = vunpack.c.l.b16 %v64
    %v193 = vunpack.c.l.b16 %v65
    %v194 = vunpack.c.l.b16 %v66
    %v195 = vunpack.c.l.b16 %v67
    %v196 = vunpack.c.l.b16 %v68
    %v197 = vunpack.c.l.b16 %v69
    %v198 = vunpack.c.l.b16 %v70
    %v199 = vunpack.c.l.b16 %v71
    %v200 = vunpack.c.l.b16 %v72
    %v201 = vunpack.c.l.b16 %v73
    %v202 = vunpack.c.l.b16 %v74
    %v203 = vunpack.c.l.b16 %v75
    %v204 = vunpack.c.l.b16 %v76
    %v205 = vunpack.c.l.b16 %v77
    %v206 = vunpack.c.l.b16 %v78
    %v207 = vunpack.c.l.b16 %v79
    %v208 = vunpack.c.l.b16 %v80
    %v209 = vunpack.c.l.b16 %v81
    %v210 = vunpack.c.l.b16 %v82
    %v211 = vunpack.c.l.b16 %v83
    %v212 = vunpack.c.l.b16 %v84
    %v213 = vunpack.c.l.b16 %v85
    %v214 = vpack.c.b16 %v151, %v150
    %v215 = vpack.c.b16 %v153, %v152
    %v216 = vpack.c.b16 %v155, %v154
    %v217 = vpack.c.b16 %v157, %v156
    %v218 = vpack.c.b16 %v159, %v158
    %v219 = vpack.c.b16 %v161, %v160
    %v220 = vpack.c.b16 %v163, %v162
    %v221 = vpack.c.b16 %v165, %v164
    %v222 = vpack.c.b16 %v167, %v166
    %v223 = vpack.c.b16 %v169, %v168
    %v224 = vpack.c.b16 %v171, %v170
    %v225 = vpack.c.b16 %v173, %v172
    %v226 = vpack.c.b16 %v175, %v174
    %v227 = vpack.c.b16 %v177, %v176
    %v228 = vpack.c.b16 %v179, %v178
    %v229 = vpack.c.b16 %v181, %v180
    %v230 = vpack.c.b16 %v183, %v182
    %v231 = vpack.c.b16 %v185, %v184
    %v232 = vpack.c.b16 %v187, %v186
    %v233 = vpack.c.b16 %v189, %v188
    %v234 = vpack.c.b16 %v191, %v190
    %v235 = vpack.c.b16 %v193, %v192
    %v236 = vpack.c.b16 %v195, %v194
    %v237 = vpack.c.b16 %v197, %v196
    %v238 = vpack.c.b16 %v199, %v198
    %v239 = vpack.c.b16 %v201, %v200
    %v240 = vpack.c.b16 %v203, %v202
    %v241 = vpack.c.b16 %v205, %v204
    %v242 = vpack.c.b16 %v207, %v206
    %v243 = vpack.c.b16 %v209, %v208
    %v244 = vpack.c.b16 %v211, %v210
    %v245 = vpack.c.b16 %v213, %v212
    %v247 = vshrl.u32 %v214, 16
    %v249 = vshll.u32 %v214, 16
    %v251 = vrot.slane %v249, 1
    %v252 = vor.u32 %v247, %v251
    %v254 = vshrl.u32 %v215, 16
    %v256 = vshll.u32 %v215, 16
    %v258 = vrot.slane %v256, 1
    %v259 = vor.u32 %v254, %v258
    %v261 = vshrl.u32 %v216, 16
    %v263 = vshll.u32 %v216, 16
    %v265 = vrot.slane %v263, 1
    %v266 = vor.u32 %v261, %v265
    %v268 = vshrl.u32 %v217, 16
    %v270 = vshll.u32 %v217, 16
    %v272 = vrot.slane %v270, 1
    %v273 = vor.u32 %v268, %v272
    %v275 = vshrl.u32 %v218, 16
    %v277 = vshll.u32 %v218, 16
    %v279 = vrot.slane %v277, 1
    %v280 = vor.u32 %v275, %v279
    %v282 = vshrl.u32 %v219, 16
    %v284 = vshll.u32 %v219, 16
    %v286 = vrot.slane %v284, 1
    %v287 = vor.u32 %v282, %v286
    %v289 = vshrl.u32 %v220, 16
    %v291 = vshll.u32 %v220, 16
    %v293 = vrot.slane %v291, 1
    %v294 = vor.u32 %v289, %v293
    %v296 = vshrl.u32 %v221, 16
    %v298 = vshll.u32 %v221, 16
    %v300 = vrot.slane %v298, 1
    %v301 = vor.u32 %v296, %v300
    %v303 = vshrl.u32 %v222, 16
    %v305 = vshll.u32 %v222, 16
    %v307 = vrot.slane %v305, 1
    %v308 = vor.u32 %v303, %v307
    %v310 = vshrl.u32 %v223, 16
    %v312 = vshll.u32 %v223, 16
    %v314 = vrot.slane %v312, 1
    %v315 = vor.u32 %v310, %v314
    %v317 = vshrl.u32 %v224, 16
    %v319 = vshll.u32 %v224, 16
    %v321 = vrot.slane %v319, 1
    %v322 = vor.u32 %v317, %v321
    %v324 = vshrl.u32 %v225, 16
    %v326 = vshll.u32 %v225, 16
    %v328 = vrot.slane %v326, 1
    %v329 = vor.u32 %v324, %v328
    %v331 = vshrl.u32 %v226, 16
    %v333 = vshll.u32 %v226, 16
    %v335 = vrot.slane %v333, 1
    %v336 = vor.u32 %v331, %v335
    %v338 = vshrl.u32 %v227, 16
    %v340 = vshll.u32 %v227, 16
    %v342 = vrot.slane %v340, 1
    %v343 = vor.u32 %v338, %v342
    %v345 = vshrl.u32 %v228, 16
    %v347 = vshll.u32 %v228, 16
    %v349 = vrot.slane %v347, 1
    %v350 = vor.u32 %v345, %v349
    %v352 = vshrl.u32 %v229, 16
    %v354 = vshll.u32 %v229, 16
    %v356 = vrot.slane %v354, 1
    %v357 = vor.u32 %v352, %v356
    %v359 = vshrl.u32 %v230, 16
    %v361 = vshll.u32 %v230, 16
    %v363 = vrot.slane %v361, 1
    %v364 = vor.u32 %v359, %v363
    %v366 = vshrl.u32 %v231, 16
    %v368 = vshll.u32 %v231, 16
    %v370 = vrot.slane %v368, 1
    %v371 = vor.u32 %v366, %v370
    %v373 = vshrl.u32 %v232, 16
    %v375 = vshll.u32 %v232, 16
    %v377 = vrot.slane %v375, 1
    %v378 = vor.u32 %v373, %v377
    %v380 = vshrl.u32 %v233, 16
    %v382 = vshll.u32 %v233, 16
    %v384 = vrot.slane %v382, 1
    %v385 = vor.u32 %v380, %v384
    %v387 = vshrl.u32 %v234, 16
    %v389 = vshll.u32 %v234, 16
    %v391 = vrot.slane %v389, 1
    %v392 = vor.u32 %v387, %v391
    %v394 = vshrl.u32 %v235, 16
    %v396 = vshll.u32 %v235, 16
    %v398 = vrot.slane %v396, 1
    %v399 = vor.u32 %v394, %v398
    %v401 = vshrl.u32 %v236, 16
    %v403 = vshll.u32 %v236, 16
    %v405 = vrot.slane %v403, 1
    %v406 = vor.u32 %v401, %v405
    %v408 = vshrl.u32 %v237, 16
    %v410 = vshll.u32 %v237, 16
    %v412 = vrot.slane %v410, 1
    %v413 = vor.u32 %v408, %v412
    %v415 = vshrl.u32 %v238, 16
    %v417 = vshll.u32 %v238, 16
    %v419 = vrot.slane %v417, 1
    %v420 = vor.u32 %v415, %v419
    %v422 = vshrl.u32 %v239, 16
    %v424 = vshll.u32 %v239, 16
    %v426 = vrot.slane %v424, 1
    %v427 = vor.u32 %v422, %v426
    %v429 = vshrl.u32 %v240, 16
    %v431 = vshll.u32 %v240, 16
    %v433 = vrot.slane %v431, 1
    %v434 = vor.u32 %v429, %v433
    %v436 = vshrl.u32 %v241, 16
    %v438 = vshll.u32 %v241, 16
    %v440 = vrot.slane %v438, 1
    %v441 = vor.u32 %v436, %v440
    %v443 = vshrl.u32 %v242, 16
    %v445 = vshll.u32 %v242, 16
    %v447 = vrot.slane %v445, 1
    %v448 = vor.u32 %v443, %v447
    %v450 = vshrl.u32 %v243, 16
    %v452 = vshll.u32 %v243, 16
    %v454 = vrot.slane %v452, 1
    %v455 = vor.u32 %v450, %v454
    %v457 = vshrl.u32 %v244, 16
    %v459 = vshll.u32 %v244, 16
    %v461 = vrot.slane %v459, 1
    %v462 = vor.u32 %v457, %v461
    %v464 = vshrl.u32 %v245, 16
    %v466 = vshll.u32 %v245, 16
    %v468 = vrot.slane %v466, 1
    %v469 = vor.u32 %v464, %v468
    %470 = vrot.lane.b32.xlu0 %v252, 50
    %v471 = vpop.permute.xlu0 %470
    %472 = vrot.lane.b32.xlu0 %v259, 50
    %v473 = vpop.permute.xlu0 %472
    %474 = vrot.lane.b32.xlu0 %v266, 50
    %v475 = vpop.permute.xlu0 %474
    %476 = vrot.lane.b32.xlu0 %v273, 50
    %v477 = vpop.permute.xlu0 %476
    %478 = vrot.lane.b32.xlu0 %v280, 50
    %v479 = vpop.permute.xlu0 %478
    %480 = vrot.lane.b32.xlu0 %v287, 50
    %v481 = vpop.permute.xlu0 %480
    %482 = vrot.lane.b32.xlu0 %v294, 50
    %v483 = vpop.permute.xlu0 %482
    %484 = vrot.lane.b32.xlu0 %v301, 50
    %v485 = vpop.permute.xlu0 %484
    %486 = vrot.lane.b32.xlu0 %v308, 50
    %v487 = vpop.permute.xlu0 %486
    %488 = vrot.lane.b32.xlu0 %v315, 50
    %v489 = vpop.permute.xlu0 %488
    %490 = vrot.lane.b32.xlu0 %v322, 50
    %v491 = vpop.permute.xlu0 %490
    %492 = vrot.lane.b32.xlu0 %v329, 50
    %v493 = vpop.permute.xlu0 %492
    %494 = vrot.lane.b32.xlu0 %v336, 50
    %v495 = vpop.permute.xlu0 %494
    %496 = vrot.lane.b32.xlu0 %v343, 50
    %v497 = vpop.permute.xlu0 %496
    %498 = vrot.lane.b32.xlu0 %v350, 50
    %v499 = vpop.permute.xlu0 %498
    %500 = vrot.lane.b32.xlu0 %v357, 50
    %v501 = vpop.permute.xlu0 %500
    %502 = vrot.lane.b32.xlu0 %v364, 50
    %v503 = vpop.permute.xlu0 %502
    %504 = vrot.lane.b32.xlu0 %v371, 50
    %v505 = vpop.permute.xlu0 %504
    %506 = vrot.lane.b32.xlu0 %v378, 50
    %v507 = vpop.permute.xlu0 %506
    %508 = vrot.lane.b32.xlu0 %v385, 50
    %v509 = vpop.permute.xlu0 %508
    %510 = vrot.lane.b32.xlu0 %v392, 50
    %v511 = vpop.permute.xlu0 %510
    %512 = vrot.lane.b32.xlu0 %v399, 50
    %v513 = vpop.permute.xlu0 %512
    %514 = vrot.lane.b32.xlu0 %v406, 50
    %v515 = vpop.permute.xlu0 %514
    %516 = vrot.lane.b32.xlu0 %v413, 50
    %v517 = vpop.permute.xlu0 %516
    %518 = vrot.lane.b32.xlu0 %v420, 50
    %v519 = vpop.permute.xlu0 %518
    %520 = vrot.lane.b32.xlu0 %v427, 50
    %v521 = vpop.permute.xlu0 %520
    %522 = vrot.lane.b32.xlu0 %v434, 50
    %v523 = vpop.permute.xlu0 %522
    %524 = vrot.lane.b32.xlu0 %v441, 50
    %v525 = vpop.permute.xlu0 %524
    %526 = vrot.lane.b32.xlu0 %v448, 50
    %v527 = vpop.permute.xlu0 %526
    %528 = vrot.lane.b32.xlu0 %v455, 50
    %v529 = vpop.permute.xlu0 %528
    %530 = vrot.lane.b32.xlu0 %v462, 50
    %v531 = vpop.permute.xlu0 %530
    %532 = vrot.lane.b32.xlu0 %v469, 50
    %v533 = vpop.permute.xlu0 %532
    %v534 = vrot.slane %v214, 1
    %v535 = vrot.slane %v215, 1
    %v536 = vrot.slane %v216, 1
    %v537 = vrot.slane %v217, 1
    %v538 = vrot.slane %v218, 1
    %v539 = vrot.slane %v219, 1
    %v540 = vrot.slane %v220, 1
    %v541 = vrot.slane %v221, 1
    %v542 = vrot.slane %v222, 1
    %v543 = vrot.slane %v223, 1
    %v544 = vrot.slane %v224, 1
    %v545 = vrot.slane %v225, 1
    %v546 = vrot.slane %v226, 1
    %v547 = vrot.slane %v227, 1
    %v548 = vrot.slane %v228, 1
    %v549 = vrot.slane %v229, 1
    %v550 = vrot.slane %v230, 1
    %v551 = vrot.slane %v231, 1
    %v552 = vrot.slane %v232, 1
    %v553 = vrot.slane %v233, 1
    %v554 = vrot.slane %v234, 1
    %v555 = vrot.slane %v235, 1
    %v556 = vrot.slane %v236, 1
    %v557 = vrot.slane %v237, 1
    %v558 = vrot.slane %v238, 1
    %v559 = vrot.slane %v239, 1
    %v560 = vrot.slane %v240, 1
    %v561 = vrot.slane %v241, 1
    %v562 = vrot.slane %v242, 1
    %v563 = vrot.slane %v243, 1
    %v564 = vrot.slane %v244, 1
    %v565 = vrot.slane %v245, 1
    %566 = vrot.lane.b32.xlu0 %v534, 100
    %v567 = vpop.permute.xlu0 %566
    %568 = vrot.lane.b32.xlu0 %v535, 100
    %v569 = vpop.permute.xlu0 %568
    %570 = vrot.lane.b32.xlu0 %v536, 100
    %v571 = vpop.permute.xlu0 %570
    %572 = vrot.lane.b32.xlu0 %v537, 100
    %v573 = vpop.permute.xlu0 %572
    %574 = vrot.lane.b32.xlu0 %v538, 100
    %v575 = vpop.permute.xlu0 %574
    %576 = vrot.lane.b32.xlu0 %v539, 100
    %v577 = vpop.permute.xlu0 %576
    %578 = vrot.lane.b32.xlu0 %v540, 100
    %v579 = vpop.permute.xlu0 %578
    %580 = vrot.lane.b32.xlu0 %v541, 100
    %v581 = vpop.permute.xlu0 %580
    %582 = vrot.lane.b32.xlu0 %v542, 100
    %v583 = vpop.permute.xlu0 %582
    %584 = vrot.lane.b32.xlu0 %v543, 100
    %v585 = vpop.permute.xlu0 %584
    %586 = vrot.lane.b32.xlu0 %v544, 100
    %v587 = vpop.permute.xlu0 %586
    %588 = vrot.lane.b32.xlu0 %v545, 100
    %v589 = vpop.permute.xlu0 %588
    %590 = vrot.lane.b32.xlu0 %v546, 100
    %v591 = vpop.permute.xlu0 %590
    %592 = vrot.lane.b32.xlu0 %v547, 100
    %v593 = vpop.permute.xlu0 %592
    %594 = vrot.lane.b32.xlu0 %v548, 100
    %v595 = vpop.permute.xlu0 %594
    %596 = vrot.lane.b32.xlu0 %v549, 100
    %v597 = vpop.permute.xlu0 %596
    %598 = vrot.lane.b32.xlu0 %v550, 100
    %v599 = vpop.permute.xlu0 %598
    %600 = vrot.lane.b32.xlu0 %v551, 100
    %v601 = vpop.permute.xlu0 %600
    %602 = vrot.lane.b32.xlu0 %v552, 100
    %v603 = vpop.permute.xlu0 %602
    %604 = vrot.lane.b32.xlu0 %v553, 100
    %v605 = vpop.permute.xlu0 %604
    %606 = vrot.lane.b32.xlu0 %v554, 100
    %v607 = vpop.permute.xlu0 %606
    %608 = vrot.lane.b32.xlu0 %v555, 100
    %v609 = vpop.permute.xlu0 %608
    %610 = vrot.lane.b32.xlu0 %v556, 100
    %v611 = vpop.permute.xlu0 %610
    %612 = vrot.lane.b32.xlu0 %v557, 100
    %v613 = vpop.permute.xlu0 %612
    %614 = vrot.lane.b32.xlu0 %v558, 100
    %v615 = vpop.permute.xlu0 %614
    %616 = vrot.lane.b32.xlu0 %v559, 100
    %v617 = vpop.permute.xlu0 %616
    %618 = vrot.lane.b32.xlu0 %v560, 100
    %v619 = vpop.permute.xlu0 %618
    %620 = vrot.lane.b32.xlu0 %v561, 100
    %v621 = vpop.permute.xlu0 %620
    %622 = vrot.lane.b32.xlu0 %v562, 100
    %v623 = vpop.permute.xlu0 %622
    %624 = vrot.lane.b32.xlu0 %v563, 100
    %v625 = vpop.permute.xlu0 %624
    %626 = vrot.lane.b32.xlu0 %v564, 100
    %v627 = vpop.permute.xlu0 %626
    %628 = vrot.lane.b32.xlu0 %v565, 100
    %v629 = vpop.permute.xlu0 %628
    %v630 = vrot.slane %v247, 1
    %v631 = vrot.slane %v249, 2
    %v632 = vor.u32 %v630, %v631
    %v633 = vrot.slane %v254, 1
    %v634 = vrot.slane %v256, 2
    %v635 = vor.u32 %v633, %v634
    %v636 = vrot.slane %v261, 1
    %v637 = vrot.slane %v263, 2
    %v638 = vor.u32 %v636, %v637
    %v639 = vrot.slane %v268, 1
    %v640 = vrot.slane %v270, 2
    %v641 = vor.u32 %v639, %v640
    %v642 = vrot.slane %v275, 1
    %v643 = vrot.slane %v277, 2
    %v644 = vor.u32 %v642, %v643
    %v645 = vrot.slane %v282, 1
    %v646 = vrot.slane %v284, 2
    %v647 = vor.u32 %v645, %v646
    %v648 = vrot.slane %v289, 1
    %v649 = vrot.slane %v291, 2
    %v650 = vor.u32 %v648, %v649
    %v651 = vrot.slane %v296, 1
    %v652 = vrot.slane %v298, 2
    %v653 = vor.u32 %v651, %v652
    %v654 = vrot.slane %v303, 1
    %v655 = vrot.slane %v305, 2
    %v656 = vor.u32 %v654, %v655
    %v657 = vrot.slane %v310, 1
    %v658 = vrot.slane %v312, 2
    %v659 = vor.u32 %v657, %v658
    %v660 = vrot.slane %v317, 1
    %v661 = vrot.slane %v319, 2
    %v662 = vor.u32 %v660, %v661
    %v663 = vrot.slane %v324, 1
    %v664 = vrot.slane %v326, 2
    %v665 = vor.u32 %v663, %v664
    %v666 = vrot.slane %v331, 1
    %v667 = vrot.slane %v333, 2
    %v668 = vor.u32 %v666, %v667
    %v669 = vrot.slane %v338, 1
    %v670 = vrot.slane %v340, 2
    %v671 = vor.u32 %v669, %v670
    %v672 = vrot.slane %v345, 1
    %v673 = vrot.slane %v347, 2
    %v674 = vor.u32 %v672, %v673
    %v675 = vrot.slane %v352, 1
    %v676 = vrot.slane %v354, 2
    %v677 = vor.u32 %v675, %v676
    %v678 = vrot.slane %v359, 1
    %v679 = vrot.slane %v361, 2
    %v680 = vor.u32 %v678, %v679
    %v681 = vrot.slane %v366, 1
    %v682 = vrot.slane %v368, 2
    %v683 = vor.u32 %v681, %v682
    %v684 = vrot.slane %v373, 1
    %v685 = vrot.slane %v375, 2
    %v686 = vor.u32 %v684, %v685
    %v687 = vrot.slane %v380, 1
    %v688 = vrot.slane %v382, 2
    %v689 = vor.u32 %v687, %v688
    %v690 = vrot.slane %v387, 1
    %v691 = vrot.slane %v389, 2
    %v692 = vor.u32 %v690, %v691
    %v693 = vrot.slane %v394, 1
    %v694 = vrot.slane %v396, 2
    %v695 = vor.u32 %v693, %v694
    %v696 = vrot.slane %v401, 1
    %v697 = vrot.slane %v403, 2
    %v698 = vor.u32 %v696, %v697
    %v699 = vrot.slane %v408, 1
    %v700 = vrot.slane %v410, 2
    %v701 = vor.u32 %v699, %v700
    %v702 = vrot.slane %v415, 1
    %v703 = vrot.slane %v417, 2
    %v704 = vor.u32 %v702, %v703
    %v705 = vrot.slane %v422, 1
    %v706 = vrot.slane %v424, 2
    %v707 = vor.u32 %v705, %v706
    %v708 = vrot.slane %v429, 1
    %v709 = vrot.slane %v431, 2
    %v710 = vor.u32 %v708, %v709
    %v711 = vrot.slane %v436, 1
    %v712 = vrot.slane %v438, 2
    %v713 = vor.u32 %v711, %v712
    %v714 = vrot.slane %v443, 1
    %v715 = vrot.slane %v445, 2
    %v716 = vor.u32 %v714, %v715
    %v717 = vrot.slane %v450, 1
    %v718 = vrot.slane %v452, 2
    %v719 = vor.u32 %v717, %v718
    %v720 = vrot.slane %v457, 1
    %v721 = vrot.slane %v459, 2
    %v722 = vor.u32 %v720, %v721
    %v723 = vrot.slane %v464, 1
    %v724 = vrot.slane %v466, 2
    %v725 = vor.u32 %v723, %v724
    %726 = vrot.lane.b32.xlu0 %v632, 22
    %v727 = vpop.permute.xlu0 %726
    %728 = vrot.lane.b32.xlu0 %v635, 22
    %v729 = vpop.permute.xlu0 %728
    %730 = vrot.lane.b32.xlu0 %v638, 22
    %v731 = vpop.permute.xlu0 %730
    %732 = vrot.lane.b32.xlu0 %v641, 22
    %v733 = vpop.permute.xlu0 %732
    %734 = vrot.lane.b32.xlu0 %v644, 22
    %v735 = vpop.permute.xlu0 %734
    %736 = vrot.lane.b32.xlu0 %v647, 22
    %v737 = vpop.permute.xlu0 %736
    %738 = vrot.lane.b32.xlu0 %v650, 22
    %v739 = vpop.permute.xlu0 %738
    %740 = vrot.lane.b32.xlu0 %v653, 22
    %v741 = vpop.permute.xlu0 %740
    %742 = vrot.lane.b32.xlu0 %v656, 22
    %v743 = vpop.permute.xlu0 %742
    %744 = vrot.lane.b32.xlu0 %v659, 22
    %v745 = vpop.permute.xlu0 %744
    %746 = vrot.lane.b32.xlu0 %v662, 22
    %v747 = vpop.permute.xlu0 %746
    %748 = vrot.lane.b32.xlu0 %v665, 22
    %v749 = vpop.permute.xlu0 %748
    %750 = vrot.lane.b32.xlu0 %v668, 22
    %v751 = vpop.permute.xlu0 %750
    %752 = vrot.lane.b32.xlu0 %v671, 22
    %v753 = vpop.permute.xlu0 %752
    %754 = vrot.lane.b32.xlu0 %v674, 22
    %v755 = vpop.permute.xlu0 %754
    %756 = vrot.lane.b32.xlu0 %v677, 22
    %v757 = vpop.permute.xlu0 %756
    %758 = vrot.lane.b32.xlu0 %v680, 22
    %v759 = vpop.permute.xlu0 %758
    %760 = vrot.lane.b32.xlu0 %v683, 22
    %v761 = vpop.permute.xlu0 %760
    %762 = vrot.lane.b32.xlu0 %v686, 22
    %v763 = vpop.permute.xlu0 %762
    %764 = vrot.lane.b32.xlu0 %v689, 22
    %v765 = vpop.permute.xlu0 %764
    %766 = vrot.lane.b32.xlu0 %v692, 22
    %v767 = vpop.permute.xlu0 %766
    %768 = vrot.lane.b32.xlu0 %v695, 22
    %v769 = vpop.permute.xlu0 %768
    %770 = vrot.lane.b32.xlu0 %v698, 22
    %v771 = vpop.permute.xlu0 %770
    %772 = vrot.lane.b32.xlu0 %v701, 22
    %v773 = vpop.permute.xlu0 %772
    %774 = vrot.lane.b32.xlu0 %v704, 22
    %v775 = vpop.permute.xlu0 %774
    %776 = vrot.lane.b32.xlu0 %v707, 22
    %v777 = vpop.permute.xlu0 %776
    %778 = vrot.lane.b32.xlu0 %v710, 22
    %v779 = vpop.permute.xlu0 %778
    %780 = vrot.lane.b32.xlu0 %v713, 22
    %v781 = vpop.permute.xlu0 %780
    %782 = vrot.lane.b32.xlu0 %v716, 22
    %v783 = vpop.permute.xlu0 %782
    %784 = vrot.lane.b32.xlu0 %v719, 22
    %v785 = vpop.permute.xlu0 %784
    %786 = vrot.lane.b32.xlu0 %v722, 22
    %v787 = vpop.permute.xlu0 %786
    %788 = vrot.lane.b32.xlu0 %v725, 22
    %v789 = vpop.permute.xlu0 %788
    %v790 = vrot.slane %v214, 2
    %v791 = vrot.slane %v215, 2
    %v792 = vrot.slane %v216, 2
    %v793 = vrot.slane %v217, 2
    %v794 = vrot.slane %v218, 2
    %v795 = vrot.slane %v219, 2
    %v796 = vrot.slane %v220, 2
    %v797 = vrot.slane %v221, 2
    %v798 = vrot.slane %v222, 2
    %v799 = vrot.slane %v223, 2
    %v800 = vrot.slane %v224, 2
    %v801 = vrot.slane %v225, 2
    %v802 = vrot.slane %v226, 2
    %v803 = vrot.slane %v227, 2
    %v804 = vrot.slane %v228, 2
    %v805 = vrot.slane %v229, 2
    %v806 = vrot.slane %v230, 2
    %v807 = vrot.slane %v231, 2
    %v808 = vrot.slane %v232, 2
    %v809 = vrot.slane %v233, 2
    %v810 = vrot.slane %v234, 2
    %v811 = vrot.slane %v235, 2
    %v812 = vrot.slane %v236, 2
    %v813 = vrot.slane %v237, 2
    %v814 = vrot.slane %v238, 2
    %v815 = vrot.slane %v239, 2
    %v816 = vrot.slane %v240, 2
    %v817 = vrot.slane %v241, 2
    %v818 = vrot.slane %v242, 2
    %v819 = vrot.slane %v243, 2
    %v820 = vrot.slane %v244, 2
    %v821 = vrot.slane %v245, 2
    %822 = vrot.lane.b32.xlu0 %v790, 72
    %v823 = vpop.permute.xlu0 %822
    %824 = vrot.lane.b32.xlu0 %v791, 72
    %v825 = vpop.permute.xlu0 %824
    %826 = vrot.lane.b32.xlu0 %v792, 72
    %v827 = vpop.permute.xlu0 %826
    %828 = vrot.lane.b32.xlu0 %v793, 72
    %v829 = vpop.permute.xlu0 %828
    %830 = vrot.lane.b32.xlu0 %v794, 72
    %v831 = vpop.permute.xlu0 %830
    %832 = vrot.lane.b32.xlu0 %v795, 72
    %v833 = vpop.permute.xlu0 %832
    %834 = vrot.lane.b32.xlu0 %v796, 72
    %v835 = vpop.permute.xlu0 %834
    %836 = vrot.lane.b32.xlu0 %v797, 72
    %v837 = vpop.permute.xlu0 %836
    %838 = vrot.lane.b32.xlu0 %v798, 72
    %v839 = vpop.permute.xlu0 %838
    %840 = vrot.lane.b32.xlu0 %v799, 72
    %v841 = vpop.permute.xlu0 %840
    %842 = vrot.lane.b32.xlu0 %v800, 72
    %v843 = vpop.permute.xlu0 %842
    %844 = vrot.lane.b32.xlu0 %v801, 72
    %v845 = vpop.permute.xlu0 %844
    %846 = vrot.lane.b32.xlu0 %v802, 72
    %v847 = vpop.permute.xlu0 %846
    %848 = vrot.lane.b32.xlu0 %v803, 72
    %v849 = vpop.permute.xlu0 %848
    %850 = vrot.lane.b32.xlu0 %v804, 72
    %v851 = vpop.permute.xlu0 %850
    %852 = vrot.lane.b32.xlu0 %v805, 72
    %v853 = vpop.permute.xlu0 %852
    %854 = vrot.lane.b32.xlu0 %v806, 72
    %v855 = vpop.permute.xlu0 %854
    %856 = vrot.lane.b32.xlu0 %v807, 72
    %v857 = vpop.permute.xlu0 %856
    %858 = vrot.lane.b32.xlu0 %v808, 72
    %v859 = vpop.permute.xlu0 %858
    %860 = vrot.lane.b32.xlu0 %v809, 72
    %v861 = vpop.permute.xlu0 %860
    %862 = vrot.lane.b32.xlu0 %v810, 72
    %v863 = vpop.permute.xlu0 %862
    %864 = vrot.lane.b32.xlu0 %v811, 72
    %v865 = vpop.permute.xlu0 %864
    %866 = vrot.lane.b32.xlu0 %v812, 72
    %v867 = vpop.permute.xlu0 %866
    %868 = vrot.lane.b32.xlu0 %v813, 72
    %v869 = vpop.permute.xlu0 %868
    %870 = vrot.lane.b32.xlu0 %v814, 72
    %v871 = vpop.permute.xlu0 %870
    %872 = vrot.lane.b32.xlu0 %v815, 72
    %v873 = vpop.permute.xlu0 %872
    %874 = vrot.lane.b32.xlu0 %v816, 72
    %v875 = vpop.permute.xlu0 %874
    %876 = vrot.lane.b32.xlu0 %v817, 72
    %v877 = vpop.permute.xlu0 %876
    %878 = vrot.lane.b32.xlu0 %v818, 72
    %v879 = vpop.permute.xlu0 %878
    %880 = vrot.lane.b32.xlu0 %v819, 72
    %v881 = vpop.permute.xlu0 %880
    %882 = vrot.lane.b32.xlu0 %v820, 72
    %v883 = vpop.permute.xlu0 %882
    %884 = vrot.lane.b32.xlu0 %v821, 72
    %v885 = vpop.permute.xlu0 %884
    %vm886 = vcmask 408576
    %v889 = vsel %vm886, %v22, %v471
    %v892 = vsel %vm886, %v24, %v473
    %v895 = vsel %vm886, %v26, %v475
    %v898 = vsel %vm886, %v28, %v477
    %v901 = vsel %vm886, %v30, %v479
    %v904 = vsel %vm886, %v32, %v481
    %v907 = vsel %vm886, %v34, %v483
    %v910 = vsel %vm886, %v36, %v485
    %v913 = vsel %vm886, %v38, %v487
    %v916 = vsel %vm886, %v40, %v489
    %v919 = vsel %vm886, %v42, %v491
    %v922 = vsel %vm886, %v44, %v493
    %v925 = vsel %vm886, %v46, %v495
    %v928 = vsel %vm886, %v48, %v497
    %v931 = vsel %vm886, %v50, %v499
    %v934 = vsel %vm886, %v52, %v501
    %v937 = vsel %vm886, %v54, %v503
    %v940 = vsel %vm886, %v56, %v505
    %v943 = vsel %vm886, %v58, %v507
    %v946 = vsel %vm886, %v60, %v509
    %v949 = vsel %vm886, %v62, %v511
    %v952 = vsel %vm886, %v64, %v513
    %v955 = vsel %vm886, %v66, %v515
    %v958 = vsel %vm886, %v68, %v517
    %v961 = vsel %vm886, %v70, %v519
    %v964 = vsel %vm886, %v72, %v521
    %v967 = vsel %vm886, %v74, %v523
    %v970 = vsel %vm886, %v76, %v525
    %v973 = vsel %vm886, %v78, %v527
    %v976 = vsel %vm886, %v80, %v529
    %v979 = vsel %vm886, %v82, %v531
    %v982 = vsel %vm886, %v84, %v533
    %vm983 = vcmask 818176
    %v985 = vsel %vm983, %v889, %v567
    %v987 = vsel %vm983, %v892, %v569
    %v989 = vsel %vm983, %v895, %v571
    %v991 = vsel %vm983, %v898, %v573
    %v993 = vsel %vm983, %v901, %v575
    %v995 = vsel %vm983, %v904, %v577
    %v997 = vsel %vm983, %v907, %v579
    %v999 = vsel %vm983, %v910, %v581
    %v1001 = vsel %vm983, %v913, %v583
    %v1003 = vsel %vm983, %v916, %v585
    %v1005 = vsel %vm983, %v919, %v587
    %v1007 = vsel %vm983, %v922, %v589
    %v1009 = vsel %vm983, %v925, %v591
    %v1011 = vsel %vm983, %v928, %v593
    %v1013 = vsel %vm983, %v931, %v595
    %v1015 = vsel %vm983, %v934, %v597
    %v1017 = vsel %vm983, %v937, %v599
    %v1019 = vsel %vm983, %v940, %v601
    %v1021 = vsel %vm983, %v943, %v603
    %v1023 = vsel %vm983, %v946, %v605
    %v1025 = vsel %vm983, %v949, %v607
    %v1027 = vsel %vm983, %v952, %v609
    %v1029 = vsel %vm983, %v955, %v611
    %v1031 = vsel %vm983, %v958, %v613
    %v1033 = vsel %vm983, %v961, %v615
    %v1035 = vsel %vm983, %v964, %v617
    %v1037 = vsel %vm983, %v967, %v619
    %v1039 = vsel %vm983, %v970, %v621
    %v1041 = vsel %vm983, %v973, %v623
    %v1043 = vsel %vm983, %v976, %v625
    %v1045 = vsel %vm983, %v979, %v627
    %v1047 = vsel %vm983, %v982, %v629
    %vm1048 = vcmask 179200
    %v1050 = vsel %vm1048, %v567, %v727
    %v1052 = vsel %vm1048, %v569, %v729
    %v1054 = vsel %vm1048, %v571, %v731
    %v1056 = vsel %vm1048, %v573, %v733
    %v1058 = vsel %vm1048, %v575, %v735
    %v1060 = vsel %vm1048, %v577, %v737
    %v1062 = vsel %vm1048, %v579, %v739
    %v1064 = vsel %vm1048, %v581, %v741
    %v1066 = vsel %vm1048, %v583, %v743
    %v1068 = vsel %vm1048, %v585, %v745
    %v1070 = vsel %vm1048, %v587, %v747
    %v1072 = vsel %vm1048, %v589, %v749
    %v1074 = vsel %vm1048, %v591, %v751
    %v1076 = vsel %vm1048, %v593, %v753
    %v1078 = vsel %vm1048, %v595, %v755
    %v1080 = vsel %vm1048, %v597, %v757
    %v1082 = vsel %vm1048, %v599, %v759
    %v1084 = vsel %vm1048, %v601, %v761
    %v1086 = vsel %vm1048, %v603, %v763
    %v1088 = vsel %vm1048, %v605, %v765
    %v1090 = vsel %vm1048, %v607, %v767
    %v1092 = vsel %vm1048, %v609, %v769
    %v1094 = vsel %vm1048, %v611, %v771
    %v1096 = vsel %vm1048, %v613, %v773
    %v1098 = vsel %vm1048, %v615, %v775
    %v1100 = vsel %vm1048, %v617, %v777
    %v1102 = vsel %vm1048, %v619, %v779
    %v1104 = vsel %vm1048, %v621, %v781
    %v1106 = vsel %vm1048, %v623, %v783
    %v1108 = vsel %vm1048, %v625, %v785
    %v1110 = vsel %vm1048, %v627, %v787
    %v1112 = vsel %vm1048, %v629, %v789
    %vm1113 = vcmask 588800
    %v1115 = vsel %vm1113, %v1050, %v823
    %v1117 = vsel %vm1113, %v1052, %v825
    %v1119 = vsel %vm1113, %v1054, %v827
    %v1121 = vsel %vm1113, %v1056, %v829
    %v1123 = vsel %vm1113, %v1058, %v831
    %v1125 = vsel %vm1113, %v1060, %v833
    %v1127 = vsel %vm1113, %v1062, %v835
    %v1129 = vsel %vm1113, %v1064, %v837
    %v1131 = vsel %vm1113, %v1066, %v839
    %v1133 = vsel %vm1113, %v1068, %v841
    %v1135 = vsel %vm1113, %v1070, %v843
    %v1137 = vsel %vm1113, %v1072, %v845
    %v1139 = vsel %vm1113, %v1074, %v847
    %v1141 = vsel %vm1113, %v1076, %v849
    %v1143 = vsel %vm1113, %v1078, %v851
    %v1145 = vsel %vm1113, %v1080, %v853
    %v1147 = vsel %vm1113, %v1082, %v855
    %v1149 = vsel %vm1113, %v1084, %v857
    %v1151 = vsel %vm1113, %v1086, %v859
    %v1153 = vsel %vm1113, %v1088, %v861
    %v1155 = vsel %vm1113, %v1090, %v863
    %v1157 = vsel %vm1113, %v1092, %v865
    %v1159 = vsel %vm1113, %v1094, %v867
    %v1161 = vsel %vm1113, %v1096, %v869
    %v1163 = vsel %vm1113, %v1098, %v871
    %v1165 = vsel %vm1113, %v1100, %v873
    %v1167 = vsel %vm1113, %v1102, %v875
    %v1169 = vsel %vm1113, %v1104, %v877
    %v1171 = vsel %vm1113, %v1106, %v879
    %v1173 = vsel %vm1113, %v1108, %v881
    %v1175 = vsel %vm1113, %v1110, %v883
    %v1177 = vsel %vm1113, %v1112, %v885
    %vm1178 = vcmask 998400
    %v1180 = vsel %vm1178, %v1115, 0
    %v1181 = vsel %vm1178, %v1117, 0
    %v1182 = vsel %vm1178, %v1119, 0
    %v1183 = vsel %vm1178, %v1121, 0
    %v1184 = vsel %vm1178, %v1123, 0
    %v1185 = vsel %vm1178, %v1125, 0
    %v1186 = vsel %vm1178, %v1127, 0
    %v1187 = vsel %vm1178, %v1129, 0
    %v1188 = vsel %vm1178, %v1131, 0
    %v1189 = vsel %vm1178, %v1133, 0
    %v1190 = vsel %vm1178, %v1135, 0
    %v1191 = vsel %vm1178, %v1137, 0
    %v1192 = vsel %vm1178, %v1139, 0
    %v1193 = vsel %vm1178, %v1141, 0
    %v1194 = vsel %vm1178, %v1143, 0
    %v1195 = vsel %vm1178, %v1145, 0
    %v1196 = vsel %vm1178, %v1147, 0
    %v1197 = vsel %vm1178, %v1149, 0
    %v1198 = vsel %vm1178, %v1151, 0
    %v1199 = vsel %vm1178, %v1153, 0
    %v1200 = vsel %vm1178, %v1155, 0
    %v1201 = vsel %vm1178, %v1157, 0
    %v1202 = vsel %vm1178, %v1159, 0
    %v1203 = vsel %vm1178, %v1161, 0
    %v1204 = vsel %vm1178, %v1163, 0
    %v1205 = vsel %vm1178, %v1165, 0
    %v1206 = vsel %vm1178, %v1167, 0
    %v1207 = vsel %vm1178, %v1169, 0
    %v1208 = vsel %vm1178, %v1171, 0
    %v1209 = vsel %vm1178, %v1173, 0
    %v1210 = vsel %vm1178, %v1175, 0
    %v1211 = vsel %vm1178, %v1177, 0
    %v1276 = vunpack.c.l.b16 %v985
    %v1277 = vunpack.c.l.b16 %v1180
    %v1278 = vunpack.c.l.b16 %v987
    %v1279 = vunpack.c.l.b16 %v1181
    %v1280 = vunpack.c.l.b16 %v989
    %v1281 = vunpack.c.l.b16 %v1182
    %v1282 = vunpack.c.l.b16 %v991
    %v1283 = vunpack.c.l.b16 %v1183
    %v1284 = vunpack.c.l.b16 %v993
    %v1285 = vunpack.c.l.b16 %v1184
    %v1286 = vunpack.c.l.b16 %v995
    %v1287 = vunpack.c.l.b16 %v1185
    %v1288 = vunpack.c.l.b16 %v997
    %v1289 = vunpack.c.l.b16 %v1186
    %v1290 = vunpack.c.l.b16 %v999
    %v1291 = vunpack.c.l.b16 %v1187
    %v1292 = vunpack.c.l.b16 %v1001
    %v1293 = vunpack.c.l.b16 %v1188
    %v1294 = vunpack.c.l.b16 %v1003
    %v1295 = vunpack.c.l.b16 %v1189
    %v1296 = vunpack.c.l.b16 %v1005
    %v1297 = vunpack.c.l.b16 %v1190
    %v1298 = vunpack.c.l.b16 %v1007
    %v1299 = vunpack.c.l.b16 %v1191
    %v1300 = vunpack.c.l.b16 %v1009
    %v1301 = vunpack.c.l.b16 %v1192
    %v1302 = vunpack.c.l.b16 %v1011
    %v1303 = vunpack.c.l.b16 %v1193
    %v1304 = vunpack.c.l.b16 %v1013
    %v1305 = vunpack.c.l.b16 %v1194
    %v1306 = vunpack.c.l.b16 %v1015
    %v1307 = vunpack.c.l.b16 %v1195
    %v1308 = vunpack.c.l.b16 %v1017
    %v1309 = vunpack.c.l.b16 %v1196
    %v1310 = vunpack.c.l.b16 %v1019
    %v1311 = vunpack.c.l.b16 %v1197
    %v1312 = vunpack.c.l.b16 %v1021
    %v1313 = vunpack.c.l.b16 %v1198
    %v1314 = vunpack.c.l.b16 %v1023
    %v1315 = vunpack.c.l.b16 %v1199
    %v1316 = vunpack.c.l.b16 %v1025
    %v1317 = vunpack.c.l.b16 %v1200
    %v1318 = vunpack.c.l.b16 %v1027
    %v1319 = vunpack.c.l.b16 %v1201
    %v1320 = vunpack.c.l.b16 %v1029
    %v1321 = vunpack.c.l.b16 %v1202
    %v1322 = vunpack.c.l.b16 %v1031
    %v1323 = vunpack.c.l.b16 %v1203
    %v1324 = vunpack.c.l.b16 %v1033
    %v1325 = vunpack.c.l.b16 %v1204
    %v1326 = vunpack.c.l.b16 %v1035
    %v1327 = vunpack.c.l.b16 %v1205
    %v1328 = vunpack.c.l.b16 %v1037
    %v1329 = vunpack.c.l.b16 %v1206
    %v1330 = vunpack.c.l.b16 %v1039
    %v1331 = vunpack.c.l.b16 %v1207
    %v1332 = vunpack.c.l.b16 %v1041
    %v1333 = vunpack.c.l.b16 %v1208
    %v1334 = vunpack.c.l.b16 %v1043
    %v1335 = vunpack.c.l.b16 %v1209
    %v1336 = vunpack.c.l.b16 %v1045
    %v1337 = vunpack.c.l.b16 %v1210
    %v1338 = vunpack.c.l.b16 %v1047
    %v1339 = vunpack.c.l.b16 %v1211
    %v1340 = vld [vmem:[%s1] sm:$0xf]
    %v1341 = vld [vmem:[%s1 + $0x4] sm:$0xf]
    %v1342 = vld [vmem:[%s1 + $0x8] sm:$0xf]
    %v1343 = vld [vmem:[%s1 + $0xc] sm:$0xf]
    %v1344 = vld [vmem:[%s1 + $0x10] sm:$0xf]
    %v1345 = vld [vmem:[%s1 + $0x14] sm:$0xf]
    %v1346 = vld [vmem:[%s1 + $0x18] sm:$0xf]
    %v1347 = vld [vmem:[%s1 + $0x1c] sm:$0xf]
    %v1348 = vld [vmem:[%s1 + $0x20] sm:$0xf]
    %v1349 = vld [vmem:[%s1 + $0x24] sm:$0xf]
    %v1350 = vld [vmem:[%s1 + $0x28] sm:$0xf]
    %v1351 = vld [vmem:[%s1 + $0x2c] sm:$0xf]
    %v1352 = vld [vmem:[%s1 + $0x30] sm:$0xf]
    %v1353 = vld [vmem:[%s1 + $0x34] sm:$0xf]
    %v1354 = vld [vmem:[%s1 + $0x38] sm:$0xf]
    %v1355 = vld [vmem:[%s1 + $0x3c] sm:$0xf]
    %v1356 = vld [vmem:[%s1 + $0x40] sm:$0xf]
    %v1357 = vld [vmem:[%s1 + $0x44] sm:$0xf]
    %v1358 = vld [vmem:[%s1 + $0x48] sm:$0xf]
    %v1359 = vld [vmem:[%s1 + $0x4c] sm:$0xf]
    %v1360 = vld [vmem:[%s1 + $0x50] sm:$0xf]
    %v1361 = vld [vmem:[%s1 + $0x54] sm:$0xf]
    %v1362 = vld [vmem:[%s1 + $0x58] sm:$0xf]
    %v1363 = vld [vmem:[%s1 + $0x5c] sm:$0xf]
    %v1364 = vld [vmem:[%s1 + $0x60] sm:$0xf]
    %v1365 = vld [vmem:[%s1 + $0x64] sm:$0xf]
    %v1366 = vld [vmem:[%s1 + $0x68] sm:$0xf]
    %v1367 = vld [vmem:[%s1 + $0x6c] sm:$0xf]
    %v1368 = vld [vmem:[%s1 + $0x70] sm:$0xf]
    %v1369 = vld [vmem:[%s1 + $0x74] sm:$0xf]
    %v1370 = vld [vmem:[%s1 + $0x78] sm:$0xf]
    %v1371 = vld [vmem:[%s1 + $0x7c] sm:$0xf]
    %v1372 = vpack.c.b16 %v1278, %v1276
    %v1373 = vpack.c.b16 %v1279, %v1277
    %v1374 = vpack.c.b16 %v1282, %v1280
    %v1375 = vpack.c.b16 %v1283, %v1281
    %v1376 = vpack.c.b16 %v1286, %v1284
    %v1377 = vpack.c.b16 %v1287, %v1285
    %v1378 = vpack.c.b16 %v1290, %v1288
    %v1379 = vpack.c.b16 %v1291, %v1289
    %v1380 = vpack.c.b16 %v1294, %v1292
    %v1381 = vpack.c.b16 %v1295, %v1293
    %v1382 = vpack.c.b16 %v1298, %v1296
    %v1383 = vpack.c.b16 %v1299, %v1297
    %v1384 = vpack.c.b16 %v1302, %v1300
    %v1385 = vpack.c.b16 %v1303, %v1301
    %v1386 = vpack.c.b16 %v1306, %v1304
    %v1387 = vpack.c.b16 %v1307, %v1305
    %v1388 = vpack.c.b16 %v1310, %v1308
    %v1389 = vpack.c.b16 %v1311, %v1309
    %v1390 = vpack.c.b16 %v1314, %v1312
    %v1391 = vpack.c.b16 %v1315, %v1313
    %v1392 = vpack.c.b16 %v1318, %v1316
    %v1393 = vpack.c.b16 %v1319, %v1317
    %v1394 = vpack.c.b16 %v1322, %v1320
    %v1395 = vpack.c.b16 %v1323, %v1321
    %v1396 = vpack.c.b16 %v1326, %v1324
    %v1397 = vpack.c.b16 %v1327, %v1325
    %v1398 = vpack.c.b16 %v1330, %v1328
    %v1399 = vpack.c.b16 %v1331, %v1329
    %v1400 = vpack.c.b16 %v1334, %v1332
    %v1401 = vpack.c.b16 %v1335, %v1333
    %v1402 = vpack.c.b16 %v1338, %v1336
    %v1403 = vpack.c.b16 %v1339, %v1337
    %v1468 = vunpack.c.l.b16 %v1340
    %v1469 = vunpack.c.l.b16 %v1341
    %v1470 = vunpack.c.l.b16 %v1342
    %v1471 = vunpack.c.l.b16 %v1343
    %v1472 = vunpack.c.l.b16 %v1344
    %v1473 = vunpack.c.l.b16 %v1345
    %v1474 = vunpack.c.l.b16 %v1346
    %v1475 = vunpack.c.l.b16 %v1347
    %v1476 = vunpack.c.l.b16 %v1348
    %v1477 = vunpack.c.l.b16 %v1349
    %v1478 = vunpack.c.l.b16 %v1350
    %v1479 = vunpack.c.l.b16 %v1351
    %v1480 = vunpack.c.l.b16 %v1352
    %v1481 = vunpack.c.l.b16 %v1353
    %v1482 = vunpack.c.l.b16 %v1354
    %v1483 = vunpack.c.l.b16 %v1355
    %v1484 = vunpack.c.l.b16 %v1356
    %v1485 = vunpack.c.l.b16 %v1357
    %v1486 = vunpack.c.l.b16 %v1358
    %v1487 = vunpack.c.l.b16 %v1359
    %v1488 = vunpack.c.l.b16 %v1360
    %v1489 = vunpack.c.l.b16 %v1361
    %v1490 = vunpack.c.l.b16 %v1362
    %v1491 = vunpack.c.l.b16 %v1363
    %v1492 = vunpack.c.l.b16 %v1364
    %v1493 = vunpack.c.l.b16 %v1365
    %v1494 = vunpack.c.l.b16 %v1366
    %v1495 = vunpack.c.l.b16 %v1367
    %v1496 = vunpack.c.l.b16 %v1368
    %v1497 = vunpack.c.l.b16 %v1369
    %v1498 = vunpack.c.l.b16 %v1370
    %v1499 = vunpack.c.l.b16 %v1371
    %v1500 = vpack.c.b16 %v1469, %v1468
    %v1501 = vpack.c.b16 %v1471, %v1470
    %v1502 = vpack.c.b16 %v1473, %v1472
    %v1503 = vpack.c.b16 %v1475, %v1474
    %v1504 = vpack.c.b16 %v1477, %v1476
    %v1505 = vpack.c.b16 %v1479, %v1478
    %v1506 = vpack.c.b16 %v1481, %v1480
    %v1507 = vpack.c.b16 %v1483, %v1482
    %v1508 = vpack.c.b16 %v1485, %v1484
    %v1509 = vpack.c.b16 %v1487, %v1486
    %v1510 = vpack.c.b16 %v1489, %v1488
    %v1511 = vpack.c.b16 %v1491, %v1490
    %v1512 = vpack.c.b16 %v1493, %v1492
    %v1513 = vpack.c.b16 %v1495, %v1494
    %v1514 = vpack.c.b16 %v1497, %v1496
    %v1515 = vpack.c.b16 %v1499, %v1498
    %1532 = vmatprep.subr.bf16.mxu0 0
    %1533 = vmatpush1.bf16.msra.mxu0 %v1500
    %1534 = vmatprep.subr.bf16.mxu0 0
    %1535 = vmatpush1.bf16.msra.mxu0 %v1501
    %1536 = vmatprep.subr.bf16.mxu0 0
    %1537 = vmatpush1.bf16.msra.mxu0 %v1502
    %1538 = vmatprep.subr.bf16.mxu0 0
    %1539 = vmatpush1.bf16.msra.mxu0 %v1503
    %1540 = vmatprep.subr.bf16.mxu0 0
    %1541 = vmatpush1.bf16.msra.mxu0 %v1504
    %1542 = vmatprep.subr.bf16.mxu0 0
    %1543 = vmatpush1.bf16.msra.mxu0 %v1505
    %1544 = vmatprep.subr.bf16.mxu0 0
    %1545 = vmatpush1.bf16.msra.mxu0 %v1506
    %1546 = vmatprep.subr.bf16.mxu0 0
    %1547 = vmatpush1.bf16.msra.mxu0 %v1507
    %1548 = vmatprep.subr.bf16.mxu0 0
    %1549 = vmatpush1.bf16.msra.mxu0 %v1508
    %1550 = vmatprep.subr.bf16.mxu0 0
    %1551 = vmatpush1.bf16.msra.mxu0 %v1509
    %1552 = vmatprep.subr.bf16.mxu0 0
    %1553 = vmatpush1.bf16.msra.mxu0 %v1510
    %1554 = vmatprep.subr.bf16.mxu0 0
    %1555 = vmatpush1.bf16.msra.mxu0 %v1511
    %1556 = vmatprep.subr.bf16.mxu0 0
    %1557 = vmatpush1.bf16.msra.mxu0 %v1512
    %1558 = vmatprep.subr.bf16.mxu0 0
    %1559 = vmatpush1.bf16.msra.mxu0 %v1513
    %1560 = vmatprep.subr.bf16.mxu0 0
    %1561 = vmatpush1.bf16.msra.mxu0 %v1514
    %1562 = vmatprep.subr.bf16.mxu0 0
    %1563 = vmatpush1.bf16.msra.mxu0 %v1515
    %1564 = vmatprep.mubr.bf16.mxu0 %v1373
    %1565 = vmatmul.mubr.bf16.gmra.mrb[0].mxu0 %v1372
    %v1566 = vpop.f32.mrb[0].mxu0
    %v1567 = vadd.f32 0.0, %v1566
    %v1568 = vpop.f32.mrb[0].mxu0
    %v1569 = vpop.f32.mrb[0].mxu0
    %v1570 = vadd.f32 0.0, %v1569
    %v1571 = vpop.f32.mrb[0].mxu0
    %1572 = vmatprep.mubr.bf16.mxu0 %v1375
    %1573 = vmatmul.mubr.bf16.gmra.mrb[0].mxu0 %v1374
    %v1574 = vpop.f32.mrb[0].mxu0
    %v1575 = vadd.f32 0.0, %v1574
    %v1576 = vpop.f32.mrb[0].mxu0
    %v1577 = vpop.f32.mrb[0].mxu0
    %v1578 = vadd.f32 0.0, %v1577
    %v1579 = vpop.f32.mrb[0].mxu0
    %1580 = vmatprep.mubr.bf16.mxu0 %v1377
    %1581 = vmatmul.mubr.bf16.gmra.mrb[0].mxu0 %v1376
    %v1582 = vpop.f32.mrb[0].mxu0
    %v1583 = vadd.f32 0.0, %v1582
    %v1584 = vpop.f32.mrb[0].mxu0
    %v1585 = vpop.f32.mrb[0].mxu0
    %v1586 = vadd.f32 0.0, %v1585
    %v1587 = vpop.f32.mrb[0].mxu0
    %1588 = vmatprep.mubr.bf16.mxu0 %v1379
    %1589 = vmatmul.mubr.bf16.gmra.mrb[0].mxu0 %v1378
    %v1590 = vpop.f32.mrb[0].mxu0
    %v1591 = vadd.f32 0.0, %v1590
    %v1592 = vpop.f32.mrb[0].mxu0
    %v1593 = vpop.f32.mrb[0].mxu0
    %v1594 = vadd.f32 0.0, %v1593
    %v1595 = vpop.f32.mrb[0].mxu0
    %1596 = vmatprep.mubr.bf16.mxu0 %v1381
    %1597 = vmatmul.mubr.bf16.gmra.mrb[0].mxu0 %v1380
    %v1598 = vpop.f32.mrb[0].mxu0
    %v1599 = vadd.f32 0.0, %v1598
    %v1600 = vpop.f32.mrb[0].mxu0
    %v1601 = vpop.f32.mrb[0].mxu0
    %v1602 = vadd.f32 0.0, %v1601
    %v1603 = vpop.f32.mrb[0].mxu0
    %1604 = vmatprep.mubr.bf16.mxu0 %v1383
    %1605 = vmatmul.mubr.bf16.gmra.mrb[0].mxu0 %v1382
    %v1606 = vpop.f32.mrb[0].mxu0
    %v1607 = vadd.f32 0.0, %v1606
    %v1608 = vpop.f32.mrb[0].mxu0
    %v1609 = vpop.f32.mrb[0].mxu0
    %v1610 = vadd.f32 0.0, %v1609
    %v1611 = vpop.f32.mrb[0].mxu0
    %1612 = vmatprep.mubr.bf16.mxu0 %v1385
    %1613 = vmatmul.mubr.bf16.gmra.mrb[0].mxu0 %v1384
    %v1614 = vpop.f32.mrb[0].mxu0
    %v1615 = vadd.f32 0.0, %v1614
    %v1616 = vpop.f32.mrb[0].mxu0
    %v1617 = vpop.f32.mrb[0].mxu0
    %v1618 = vadd.f32 0.0, %v1617
    %v1619 = vpop.f32.mrb[0].mxu0
    %1620 = vmatprep.mubr.bf16.mxu0 %v1387
    %1621 = vmatmul.mubr.bf16.gmra.mrb[0].mxu0 %v1386
    %v1622 = vpop.f32.mrb[0].mxu0
    %v1623 = vadd.f32 0.0, %v1622
    %v1624 = vpop.f32.mrb[0].mxu0
    %v1625 = vpop.f32.mrb[0].mxu0
    %v1626 = vadd.f32 0.0, %v1625
    %v1627 = vpop.f32.mrb[0].mxu0
    %1628 = vmatprep.mubr.bf16.mxu0 %v1389
    %1629 = vmatmul.mubr.bf16.gmra.mrb[0].mxu0 %v1388
    %v1630 = vpop.f32.mrb[0].mxu0
    %v1631 = vadd.f32 0.0, %v1630
    %v1632 = vpop.f32.mrb[0].mxu0
    %v1633 = vpop.f32.mrb[0].mxu0
    %v1634 = vadd.f32 0.0, %v1633
    %v1635 = vpop.f32.mrb[0].mxu0
    %1636 = vmatprep.mubr.bf16.mxu0 %v1391
    %1637 = vmatmul.mubr.bf16.gmra.mrb[0].mxu0 %v1390
    %v1638 = vpop.f32.mrb[0].mxu0
    %v1639 = vadd.f32 0.0, %v1638
    %v1640 = vpop.f32.mrb[0].mxu0
    %v1641 = vpop.f32.mrb[0].mxu0
    %v1642 = vadd.f32 0.0, %v1641
    %v1643 = vpop.f32.mrb[0].mxu0
    %1644 = vmatprep.mubr.bf16.mxu0 %v1393
    %1645 = vmatmul.mubr.bf16.gmra.mrb[0].mxu0 %v1392
    %v1646 = vpop.f32.mrb[0].mxu0
    %v1647 = vadd.f32 0.0, %v1646
    %v1648 = vpop.f32.mrb[0].mxu0
    %v1649 = vpop.f32.mrb[0].mxu0
    %v1650 = vadd.f32 0.0, %v1649
    %v1651 = vpop.f32.mrb[0].mxu0
    %1652 = vmatprep.mubr.bf16.mxu0 %v1395
    %1653 = vmatmul.mubr.bf16.gmra.mrb[0].mxu0 %v1394
    %v1654 = vpop.f32.mrb[0].mxu0
    %v1655 = vadd.f32 0.0, %v1654
    %v1656 = vpop.f32.mrb[0].mxu0
    %v1657 = vpop.f32.mrb[0].mxu0
    %v1658 = vadd.f32 0.0, %v1657
    %v1659 = vpop.f32.mrb[0].mxu0
    %1660 = vmatprep.mubr.bf16.mxu0 %v1397
    %1661 = vmatmul.mubr.bf16.gmra.mrb[0].mxu0 %v1396
    %v1662 = vpop.f32.mrb[0].mxu0
    %v1663 = vadd.f32 0.0, %v1662
    %v1664 = vpop.f32.mrb[0].mxu0
    %v1665 = vpop.f32.mrb[0].mxu0
    %v1666 = vadd.f32 0.0, %v1665
    %v1667 = vpop.f32.mrb[0].mxu0
    %1668 = vmatprep.mubr.bf16.mxu0 %v1399
    %1669 = vmatmul.mubr.bf16.gmra.mrb[0].mxu0 %v1398
    %v1670 = vpop.f32.mrb[0].mxu0
    %v1671 = vadd.f32 0.0, %v1670
    %v1672 = vpop.f32.mrb[0].mxu0
    %v1673 = vpop.f32.mrb[0].mxu0
    %v1674 = vadd.f32 0.0, %v1673
    %v1675 = vpop.f32.mrb[0].mxu0
    %1676 = vmatprep.mubr.bf16.mxu0 %v1401
    %1677 = vmatmul.mubr.bf16.gmra.mrb[0].mxu0 %v1400
    %v1678 = vpop.f32.mrb[0].mxu0
    %v1679 = vadd.f32 0.0, %v1678
    %v1680 = vpop.f32.mrb[0].mxu0
    %v1681 = vpop.f32.mrb[0].mxu0
    %v1682 = vadd.f32 0.0, %v1681
    %v1683 = vpop.f32.mrb[0].mxu0
    %1684 = vmatprep.mubr.bf16.mxu0 %v1403
    %1685 = vmatmul.mubr.bf16.gmra.mrb[0].mxu0 %v1402
    %v1686 = vpop.f32.mrb[0].mxu0
    %v1687 = vadd.f32 0.0, %v1686
    %v1688 = vpop.f32.mrb[0].mxu0
    %v1689 = vpop.f32.mrb[0].mxu0
    %v1690 = vadd.f32 0.0, %v1689
    %v1691 = vpop.f32.mrb[0].mxu0
    %1692 = vdwg.mxu0
    %v1693 = vld [vmem:[%s2] sm:$0x1]
    %v1695 = vlaneseq
    %v1696 = vshrl.u32 %v1695, 7
    %v1697 = vsub.s32 0, %v1696
    %v1698 = vrot.slane %v1693, %v1697
    %v1700 = vadd.f32 %v1567, %v1698
    %v1701 = vadd.f32 %v1570, %v1698
    %v1702 = vadd.f32 %v1575, %v1698
    %v1703 = vadd.f32 %v1578, %v1698
    %v1704 = vadd.f32 %v1583, %v1698
    %v1705 = vadd.f32 %v1586, %v1698
    %v1706 = vadd.f32 %v1591, %v1698
    %v1707 = vadd.f32 %v1594, %v1698
    %v1708 = vadd.f32 %v1599, %v1698
    %v1709 = vadd.f32 %v1602, %v1698
    %v1710 = vadd.f32 %v1607, %v1698
    %v1711 = vadd.f32 %v1610, %v1698
    %v1712 = vadd.f32 %v1615, %v1698
    %v1713 = vadd.f32 %v1618, %v1698
    %v1714 = vadd.f32 %v1623, %v1698
    %v1715 = vadd.f32 %v1626, %v1698
    %v1716 = vadd.f32 %v1631, %v1698
    %v1717 = vadd.f32 %v1634, %v1698
    %v1718 = vadd.f32 %v1639, %v1698
    %v1719 = vadd.f32 %v1642, %v1698
    %v1720 = vadd.f32 %v1647, %v1698
    %v1721 = vadd.f32 %v1650, %v1698
    %v1722 = vadd.f32 %v1655, %v1698
    %v1723 = vadd.f32 %v1658, %v1698
    %v1724 = vadd.f32 %v1663, %v1698
    %v1725 = vadd.f32 %v1666, %v1698
    %v1726 = vadd.f32 %v1671, %v1698
    %v1727 = vadd.f32 %v1674, %v1698
    %v1728 = vadd.f32 %v1679, %v1698
    %v1729 = vadd.f32 %v1682, %v1698
    %v1730 = vadd.f32 %v1687, %v1698
    %v1731 = vadd.f32 %v1690, %v1698
    %v1732 = vmax.f32 %v1700, 0.0
    %v1733 = vmax.f32 %v1701, 0.0
    %v1734 = vmax.f32 %v1702, 0.0
    %v1735 = vmax.f32 %v1703, 0.0
    %v1736 = vmax.f32 %v1704, 0.0
    %v1737 = vmax.f32 %v1705, 0.0
    %v1738 = vmax.f32 %v1706, 0.0
    %v1739 = vmax.f32 %v1707, 0.0
    %v1740 = vmax.f32 %v1708, 0.0
    %v1741 = vmax.f32 %v1709, 0.0
    %v1742 = vmax.f32 %v1710, 0.0
    %v1743 = vmax.f32 %v1711, 0.0
    %v1744 = vmax.f32 %v1712, 0.0
    %v1745 = vmax.f32 %v1713, 0.0
    %v1746 = vmax.f32 %v1714, 0.0
    %v1747 = vmax.f32 %v1715, 0.0
    %v1748 = vmax.f32 %v1716, 0.0
    %v1749 = vmax.f32 %v1717, 0.0
    %v1750 = vmax.f32 %v1718, 0.0
    %v1751 = vmax.f32 %v1719, 0.0
    %v1752 = vmax.f32 %v1720, 0.0
    %v1753 = vmax.f32 %v1721, 0.0
    %v1754 = vmax.f32 %v1722, 0.0
    %v1755 = vmax.f32 %v1723, 0.0
    %v1756 = vmax.f32 %v1724, 0.0
    %v1757 = vmax.f32 %v1725, 0.0
    %v1758 = vmax.f32 %v1726, 0.0
    %v1759 = vmax.f32 %v1727, 0.0
    %v1760 = vmax.f32 %v1728, 0.0
    %v1761 = vmax.f32 %v1729, 0.0
    %v1762 = vmax.f32 %v1730, 0.0
    %v1763 = vmax.f32 %v1731, 0.0
    %v1764 = vrot.slane %v1732, 4
    %v1765 = vmax.f32 %v1732, %v1764
    %v1766 = vrot.slane %v1765, 2
    %v1767 = vmax.f32 %v1765, %v1766
    %v1768 = vrot.slane %v1767, 1
    %v1769 = vmax.f32 %v1767, %v1768
    %v1770 = vrot.slane %v1733, 4
    %v1771 = vmax.f32 %v1733, %v1770
    %v1772 = vrot.slane %v1771, 2
    %v1773 = vmax.f32 %v1771, %v1772
    %v1774 = vrot.slane %v1773, 1
    %v1775 = vmax.f32 %v1773, %v1774
    %v1776 = vrot.slane %v1734, 4
    %v1777 = vmax.f32 %v1734, %v1776
    %v1778 = vrot.slane %v1777, 2
    %v1779 = vmax.f32 %v1777, %v1778
    %v1780 = vrot.slane %v1779, 1
    %v1781 = vmax.f32 %v1779, %v1780
    %v1782 = vrot.slane %v1735, 4
    %v1783 = vmax.f32 %v1735, %v1782
    %v1784 = vrot.slane %v1783, 2
    %v1785 = vmax.f32 %v1783, %v1784
    %v1786 = vrot.slane %v1785, 1
    %v1787 = vmax.f32 %v1785, %v1786
    %v1788 = vrot.slane %v1736, 4
    %v1789 = vmax.f32 %v1736, %v1788
    %v1790 = vrot.slane %v1789, 2
    %v1791 = vmax.f32 %v1789, %v1790
    %v1792 = vrot.slane %v1791, 1
    %v1793 = vmax.f32 %v1791, %v1792
    %v1794 = vrot.slane %v1737, 4
    %v1795 = vmax.f32 %v1737, %v1794
    %v1796 = vrot.slane %v1795, 2
    %v1797 = vmax.f32 %v1795, %v1796
    %v1798 = vrot.slane %v1797, 1
    %v1799 = vmax.f32 %v1797, %v1798
    %v1800 = vrot.slane %v1738, 4
    %v1801 = vmax.f32 %v1738, %v1800
    %v1802 = vrot.slane %v1801, 2
    %v1803 = vmax.f32 %v1801, %v1802
    %v1804 = vrot.slane %v1803, 1
    %v1805 = vmax.f32 %v1803, %v1804
    %v1806 = vrot.slane %v1739, 4
    %v1807 = vmax.f32 %v1739, %v1806
    %v1808 = vrot.slane %v1807, 2
    %v1809 = vmax.f32 %v1807, %v1808
    %v1810 = vrot.slane %v1809, 1
    %v1811 = vmax.f32 %v1809, %v1810
    %v1812 = vrot.slane %v1740, 4
    %v1813 = vmax.f32 %v1740, %v1812
    %v1814 = vrot.slane %v1813, 2
    %v1815 = vmax.f32 %v1813, %v1814
    %v1816 = vrot.slane %v1815, 1
    %v1817 = vmax.f32 %v1815, %v1816
    %v1818 = vrot.slane %v1741, 4
    %v1819 = vmax.f32 %v1741, %v1818
    %v1820 = vrot.slane %v1819, 2
    %v1821 = vmax.f32 %v1819, %v1820
    %v1822 = vrot.slane %v1821, 1
    %v1823 = vmax.f32 %v1821, %v1822
    %v1824 = vrot.slane %v1742, 4
    %v1825 = vmax.f32 %v1742, %v1824
    %v1826 = vrot.slane %v1825, 2
    %v1827 = vmax.f32 %v1825, %v1826
    %v1828 = vrot.slane %v1827, 1
    %v1829 = vmax.f32 %v1827, %v1828
    %v1830 = vrot.slane %v1743, 4
    %v1831 = vmax.f32 %v1743, %v1830
    %v1832 = vrot.slane %v1831, 2
    %v1833 = vmax.f32 %v1831, %v1832
    %v1834 = vrot.slane %v1833, 1
    %v1835 = vmax.f32 %v1833, %v1834
    %v1836 = vrot.slane %v1744, 4
    %v1837 = vmax.f32 %v1744, %v1836
    %v1838 = vrot.slane %v1837, 2
    %v1839 = vmax.f32 %v1837, %v1838
    %v1840 = vrot.slane %v1839, 1
    %v1841 = vmax.f32 %v1839, %v1840
    %v1842 = vrot.slane %v1745, 4
    %v1843 = vmax.f32 %v1745, %v1842
    %v1844 = vrot.slane %v1843, 2
    %v1845 = vmax.f32 %v1843, %v1844
    %v1846 = vrot.slane %v1845, 1
    %v1847 = vmax.f32 %v1845, %v1846
    %v1848 = vrot.slane %v1746, 4
    %v1849 = vmax.f32 %v1746, %v1848
    %v1850 = vrot.slane %v1849, 2
    %v1851 = vmax.f32 %v1849, %v1850
    %v1852 = vrot.slane %v1851, 1
    %v1853 = vmax.f32 %v1851, %v1852
    %v1854 = vrot.slane %v1747, 4
    %v1855 = vmax.f32 %v1747, %v1854
    %v1856 = vrot.slane %v1855, 2
    %v1857 = vmax.f32 %v1855, %v1856
    %v1858 = vrot.slane %v1857, 1
    %v1859 = vmax.f32 %v1857, %v1858
    %v1860 = vrot.slane %v1748, 4
    %v1861 = vmax.f32 %v1748, %v1860
    %v1862 = vrot.slane %v1861, 2
    %v1863 = vmax.f32 %v1861, %v1862
    %v1864 = vrot.slane %v1863, 1
    %v1865 = vmax.f32 %v1863, %v1864
    %v1866 = vrot.slane %v1749, 4
    %v1867 = vmax.f32 %v1749, %v1866
    %v1868 = vrot.slane %v1867, 2
    %v1869 = vmax.f32 %v1867, %v1868
    %v1870 = vrot.slane %v1869, 1
    %v1871 = vmax.f32 %v1869, %v1870
    %v1872 = vrot.slane %v1750, 4
    %v1873 = vmax.f32 %v1750, %v1872
    %v1874 = vrot.slane %v1873, 2
    %v1875 = vmax.f32 %v1873, %v1874
    %v1876 = vrot.slane %v1875, 1
    %v1877 = vmax.f32 %v1875, %v1876
    %v1878 = vrot.slane %v1751, 4
    %v1879 = vmax.f32 %v1751, %v1878
    %v1880 = vrot.slane %v1879, 2
    %v1881 = vmax.f32 %v1879, %v1880
    %v1882 = vrot.slane %v1881, 1
    %v1883 = vmax.f32 %v1881, %v1882
    %v1884 = vrot.slane %v1752, 4
    %v1885 = vmax.f32 %v1752, %v1884
    %v1886 = vrot.slane %v1885, 2
    %v1887 = vmax.f32 %v1885, %v1886
    %v1888 = vrot.slane %v1887, 1
    %v1889 = vmax.f32 %v1887, %v1888
    %v1890 = vrot.slane %v1753, 4
    %v1891 = vmax.f32 %v1753, %v1890
    %v1892 = vrot.slane %v1891, 2
    %v1893 = vmax.f32 %v1891, %v1892
    %v1894 = vrot.slane %v1893, 1
    %v1895 = vmax.f32 %v1893, %v1894
    %v1896 = vrot.slane %v1754, 4
    %v1897 = vmax.f32 %v1754, %v1896
    %v1898 = vrot.slane %v1897, 2
    %v1899 = vmax.f32 %v1897, %v1898
    %v1900 = vrot.slane %v1899, 1
    %v1901 = vmax.f32 %v1899, %v1900
    %v1902 = vrot.slane %v1755, 4
    %v1903 = vmax.f32 %v1755, %v1902
    %v1904 = vrot.slane %v1903, 2
    %v1905 = vmax.f32 %v1903, %v1904
    %v1906 = vrot.slane %v1905, 1
    %v1907 = vmax.f32 %v1905, %v1906
    %v1908 = vrot.slane %v1756, 4
    %v1909 = vmax.f32 %v1756, %v1908
    %v1910 = vrot.slane %v1909, 2
    %v1911 = vmax.f32 %v1909, %v1910
    %v1912 = vrot.slane %v1911, 1
    %v1913 = vmax.f32 %v1911, %v1912
    %v1914 = vrot.slane %v1757, 4
    %v1915 = vmax.f32 %v1757, %v1914
    %v1916 = vrot.slane %v1915, 2
    %v1917 = vmax.f32 %v1915, %v1916
    %v1918 = vrot.slane %v1917, 1
    %v1919 = vmax.f32 %v1917, %v1918
    %v1920 = vrot.slane %v1758, 4
    %v1921 = vmax.f32 %v1758, %v1920
    %v1922 = vrot.slane %v1921, 2
    %v1923 = vmax.f32 %v1921, %v1922
    %v1924 = vrot.slane %v1923, 1
    %v1925 = vmax.f32 %v1923, %v1924
    %v1926 = vrot.slane %v1759, 4
    %v1927 = vmax.f32 %v1759, %v1926
    %v1928 = vrot.slane %v1927, 2
    %v1929 = vmax.f32 %v1927, %v1928
    %v1930 = vrot.slane %v1929, 1
    %v1931 = vmax.f32 %v1929, %v1930
    %v1932 = vrot.slane %v1760, 4
    %v1933 = vmax.f32 %v1760, %v1932
    %v1934 = vrot.slane %v1933, 2
    %v1935 = vmax.f32 %v1933, %v1934
    %v1936 = vrot.slane %v1935, 1
    %v1937 = vmax.f32 %v1935, %v1936
    %v1938 = vrot.slane %v1761, 4
    %v1939 = vmax.f32 %v1761, %v1938
    %v1940 = vrot.slane %v1939, 2
    %v1941 = vmax.f32 %v1939, %v1940
    %v1942 = vrot.slane %v1941, 1
    %v1943 = vmax.f32 %v1941, %v1942
    %v1944 = vrot.slane %v1762, 4
    %v1945 = vmax.f32 %v1762, %v1944
    %v1946 = vrot.slane %v1945, 2
    %v1947 = vmax.f32 %v1945, %v1946
    %v1948 = vrot.slane %v1947, 1
    %v1949 = vmax.f32 %v1947, %v1948
    %v1950 = vrot.slane %v1763, 4
    %v1951 = vmax.f32 %v1763, %v1950
    %v1952 = vrot.slane %v1951, 2
    %v1953 = vmax.f32 %v1951, %v1952
    %v1954 = vrot.slane %v1953, 1
    %v1955 = vmax.f32 %v1953, %v1954
    %v1956 = vpack.c.bf16 %v1769, %v1769
    %v1957 = vpack.c.bf16 %v1775, %v1775
    %v1958 = vpack.c.bf16 %v1781, %v1781
    %v1959 = vpack.c.bf16 %v1787, %v1787
    %v1960 = vpack.c.bf16 %v1793, %v1793
    %v1961 = vpack.c.bf16 %v1799, %v1799
    %v1962 = vpack.c.bf16 %v1805, %v1805
    %v1963 = vpack.c.bf16 %v1811, %v1811
    %v1964 = vpack.c.bf16 %v1817, %v1817
    %v1965 = vpack.c.bf16 %v1823, %v1823
    %v1966 = vpack.c.bf16 %v1829, %v1829
    %v1967 = vpack.c.bf16 %v1835, %v1835
    %v1968 = vpack.c.bf16 %v1841, %v1841
    %v1969 = vpack.c.bf16 %v1847, %v1847
    %v1970 = vpack.c.bf16 %v1853, %v1853
    %v1971 = vpack.c.bf16 %v1859, %v1859
    %v1972 = vpack.c.bf16 %v1865, %v1865
    %v1973 = vpack.c.bf16 %v1871, %v1871
    %v1974 = vpack.c.bf16 %v1877, %v1877
    %v1975 = vpack.c.bf16 %v1883, %v1883
    %v1976 = vpack.c.bf16 %v1889, %v1889
    %v1977 = vpack.c.bf16 %v1895, %v1895
    %v1978 = vpack.c.bf16 %v1901, %v1901
    %v1979 = vpack.c.bf16 %v1907, %v1907
    %v1980 = vpack.c.bf16 %v1913, %v1913
    %v1981 = vpack.c.bf16 %v1919, %v1919
    %v1982 = vpack.c.bf16 %v1925, %v1925
    %v1983 = vpack.c.bf16 %v1931, %v1931
    %v1984 = vpack.c.bf16 %v1937, %v1937
    %v1985 = vpack.c.bf16 %v1943, %v1943
    %v1986 = vpack.c.bf16 %v1949, %v1949
    %v1987 = vpack.c.bf16 %v1955, %v1955
    %v1988 = vld [vmem:[%s3] sm:$0xff]
    %v1989 = vld [vmem:[%s3 + $0x8] sm:$0xff]
    %v1990 = vld [vmem:[%s3 + $0x10] sm:$0xff]
    %v1991 = vld [vmem:[%s3 + $0x18] sm:$0xff]
    %v1992 = vld [vmem:[%s3 + $0x20] sm:$0xff]
    %v1993 = vld [vmem:[%s3 + $0x28] sm:$0xff]
    %v1994 = vld [vmem:[%s3 + $0x30] sm:$0xff]
    %v1995 = vld [vmem:[%s3 + $0x38] sm:$0xff]
    %v1996 = vld [vmem:[%s3 + $0x40] sm:$0xff]
    %v1997 = vld [vmem:[%s3 + $0x48] sm:$0xff]
    %v1998 = vld [vmem:[%s3 + $0x50] sm:$0xff]
    %v1999 = vld [vmem:[%s3 + $0x58] sm:$0xff]
    %v2000 = vld [vmem:[%s3 + $0x60] sm:$0xff]
    %v2001 = vld [vmem:[%s3 + $0x68] sm:$0xff]
    %v2002 = vld [vmem:[%s3 + $0x70] sm:$0xff]
    %v2003 = vld [vmem:[%s3 + $0x78] sm:$0xff]
    %v2004 = vld [vmem:[%s4] sm:$0x3]
    %v2006 = vlaneseq
    %v2007 = vshrl.u32 %v2006, 7
    %v2008 = vsub.s32 0, %v2007
    %v2009 = vrot.slane %v2004, %v2008
    %v2010 = vlaneseq
    %v2011 = vshrl.u32 %v2010, 7
    %v2012 = vsub.s32 1, %v2011
    %v2013 = vrot.slane %v2004, %v2012
    %v2048 = vunpack.c.l.b16 %v1956
    %v2049 = vunpack.c.l.b16 %v1957
    %v2050 = vunpack.c.l.b16 %v1958
    %v2051 = vunpack.c.l.b16 %v1959
    %v2052 = vunpack.c.l.b16 %v1960
    %v2053 = vunpack.c.l.b16 %v1961
    %v2054 = vunpack.c.l.b16 %v1962
    %v2055 = vunpack.c.l.b16 %v1963
    %v2056 = vunpack.c.l.b16 %v1964
    %v2057 = vunpack.c.l.b16 %v1965
    %v2058 = vunpack.c.l.b16 %v1966
    %v2059 = vunpack.c.l.b16 %v1967
    %v2060 = vunpack.c.l.b16 %v1968
    %v2061 = vunpack.c.l.b16 %v1969
    %v2062 = vunpack.c.l.b16 %v1970
    %v2063 = vunpack.c.l.b16 %v1971
    %v2064 = vunpack.c.l.b16 %v1972
    %v2065 = vunpack.c.l.b16 %v1973
    %v2066 = vunpack.c.l.b16 %v1974
    %v2067 = vunpack.c.l.b16 %v1975
    %v2068 = vunpack.c.l.b16 %v1976
    %v2069 = vunpack.c.l.b16 %v1977
    %v2070 = vunpack.c.l.b16 %v1978
    %v2071 = vunpack.c.l.b16 %v1979
    %v2072 = vunpack.c.l.b16 %v1980
    %v2073 = vunpack.c.l.b16 %v1981
    %v2074 = vunpack.c.l.b16 %v1982
    %v2075 = vunpack.c.l.b16 %v1983
    %v2076 = vunpack.c.l.b16 %v1984
    %v2077 = vunpack.c.l.b16 %v1985
    %v2078 = vunpack.c.l.b16 %v1986
    %v2079 = vunpack.c.l.b16 %v1987
    %vm2080 = vcmask 1041409
    %v2081 = vsel %vm2080, %v2049, %v2048
    %vm2082 = vcmask 1042434
    %v2083 = vsel %vm2082, %v2050, %v2081
    %vm2084 = vcmask 1043459
    %v2085 = vsel %vm2084, %v2051, %v2083
    %vm2086 = vcmask 1044484
    %v2087 = vsel %vm2086, %v2052, %v2085
    %vm2088 = vcmask 1045509
    %v2089 = vsel %vm2088, %v2053, %v2087
    %vm2090 = vcmask 1046534
    %v2091 = vsel %vm2090, %v2054, %v2089
    %vm2092 = vcmask 1047559
    %v2093 = vsel %vm2092, %v2055, %v2091
    %v2094 = vsel %vm2080, %v2057, %v2056
    %v2095 = vsel %vm2082, %v2058, %v2094
    %v2096 = vsel %vm2084, %v2059, %v2095
    %v2097 = vsel %vm2086, %v2060, %v2096
    %v2098 = vsel %vm2088, %v2061, %v2097
    %v2099 = vsel %vm2090, %v2062, %v2098
    %v2100 = vsel %vm2092, %v2063, %v2099
    %v2101 = vsel %vm2080, %v2065, %v2064
    %v2102 = vsel %vm2082, %v2066, %v2101
    %v2103 = vsel %vm2084, %v2067, %v2102
    %v2104 = vsel %vm2086, %v2068, %v2103
    %v2105 = vsel %vm2088, %v2069, %v2104
    %v2106 = vsel %vm2090, %v2070, %v2105
    %v2107 = vsel %vm2092, %v2071, %v2106
    %v2108 = vsel %vm2080, %v2073, %v2072
    %v2109 = vsel %vm2082, %v2074, %v2108
    %v2110 = vsel %vm2084, %v2075, %v2109
    %v2111 = vsel %vm2086, %v2076, %v2110
    %v2112 = vsel %vm2088, %v2077, %v2111
    %v2113 = vsel %vm2090, %v2078, %v2112
    %v2114 = vsel %vm2092, %v2079, %v2113
    %v2115 = vpack.c.b16 %v2100, %v2093
    %v2116 = vpack.c.b16 %v2114, %v2107
    %v2135 = vunpack.c.l.b16 %v1988
    %v2136 = vunpack.c.h.b16 %v1988
    %v2137 = vunpack.c.l.b16 %v1989
    %v2138 = vunpack.c.h.b16 %v1989
    %v2139 = vunpack.c.l.b16 %v1990
    %v2140 = vunpack.c.h.b16 %v1990
    %v2141 = vunpack.c.l.b16 %v1991
    %v2142 = vunpack.c.h.b16 %v1991
    %v2143 = vunpack.c.l.b16 %v1992
    %v2144 = vunpack.c.h.b16 %v1992
    %v2145 = vunpack.c.l.b16 %v1993
    %v2146 = vunpack.c.h.b16 %v1993
    %v2147 = vunpack.c.l.b16 %v1994
    %v2148 = vunpack.c.h.b16 %v1994
    %v2149 = vunpack.c.l.b16 %v1995
    %v2150 = vunpack.c.h.b16 %v1995
    %v2151 = vunpack.c.l.b16 %v1996
    %v2152 = vunpack.c.h.b16 %v1996
    %v2153 = vunpack.c.l.b16 %v1997
    %v2154 = vunpack.c.h.b16 %v1997
    %v2155 = vunpack.c.l.b16 %v1998
    %v2156 = vunpack.c.h.b16 %v1998
    %v2157 = vunpack.c.l.b16 %v1999
    %v2158 = vunpack.c.h.b16 %v1999
    %v2159 = vunpack.c.l.b16 %v2000
    %v2160 = vunpack.c.h.b16 %v2000
    %v2161 = vunpack.c.l.b16 %v2001
    %v2162 = vunpack.c.h.b16 %v2001
    %v2163 = vunpack.c.l.b16 %v2002
    %v2164 = vunpack.c.h.b16 %v2002
    %v2165 = vunpack.c.l.b16 %v2003
    %v2166 = vunpack.c.h.b16 %v2003
    %v2167 = vpack.c.b16 %v2137, %v2135
    %v2168 = vpack.c.b16 %v2138, %v2136
    %v2169 = vpack.c.b16 %v2141, %v2139
    %v2170 = vpack.c.b16 %v2142, %v2140
    %v2171 = vpack.c.b16 %v2145, %v2143
    %v2172 = vpack.c.b16 %v2146, %v2144
    %v2173 = vpack.c.b16 %v2149, %v2147
    %v2174 = vpack.c.b16 %v2150, %v2148
    %v2175 = vpack.c.b16 %v2153, %v2151
    %v2176 = vpack.c.b16 %v2154, %v2152
    %v2177 = vpack.c.b16 %v2157, %v2155
    %v2178 = vpack.c.b16 %v2158, %v2156
    %v2179 = vpack.c.b16 %v2161, %v2159
    %v2180 = vpack.c.b16 %v2162, %v2160
    %v2181 = vpack.c.b16 %v2165, %v2163
    %v2182 = vpack.c.b16 %v2166, %v2164
    %2199 = vmatprep.subr.bf16.mxu0 %v2168
    %2200 = vmatpush1.bf16.msra.mxu0 %v2167
    %2201 = vmatprep.subr.bf16.mxu0 %v2170
    %2202 = vmatpush1.bf16.msra.mxu0 %v2169
    %2203 = vmatprep.subr.bf16.mxu0 %v2172
    %2204 = vmatpush1.bf16.msra.mxu0 %v2171
    %2205 = vmatprep.subr.bf16.mxu0 %v2174
    %2206 = vmatpush1.bf16.msra.mxu0 %v2173
    %2207 = vmatprep.subr.bf16.mxu0 %v2176
    %2208 = vmatpush1.bf16.msra.mxu0 %v2175
    %2209 = vmatprep.subr.bf16.mxu0 %v2178
    %2210 = vmatpush1.bf16.msra.mxu0 %v2177
    %2211 = vmatprep.subr.bf16.mxu0 %v2180
    %2212 = vmatpush1.bf16.msra.mxu0 %v2179
    %2213 = vmatprep.subr.bf16.mxu0 %v2182
    %2214 = vmatpush1.bf16.msra.mxu0 %v2181
    %2215 = vmatprep.subr.bf16.mxu0 0
    %2216 = vmatpush1.bf16.msra.mxu0 0
    %2217 = vmatprep.subr.bf16.mxu0 0
    %2218 = vmatpush1.bf16.msra.mxu0 0
    %2219 = vmatprep.subr.bf16.mxu0 0
    %2220 = vmatpush1.bf16.msra.mxu0 0
    %2221 = vmatprep.subr.bf16.mxu0 0
    %2222 = vmatpush1.bf16.msra.mxu0 0
    %2223 = vmatprep.subr.bf16.mxu0 0
    %2224 = vmatpush1.bf16.msra.mxu0 0
    %2225 = vmatprep.subr.bf16.mxu0 0
    %2226 = vmatpush1.bf16.msra.mxu0 0
    %2227 = vmatprep.subr.bf16.mxu0 0
    %2228 = vmatpush1.bf16.msra.mxu0 0
    %2229 = vmatprep.subr.bf16.mxu0 0
    %2230 = vmatpush1.bf16.msra.mxu0 0
    %2231 = vmatprep.mubr.bf16.mxu0 0
    %2232 = vmatmul.mubr.bf16.gmra.mrb[0].mxu0 %v2115
    %v2233 = vpop.f32.mrb[0].mxu0
    %v2234 = vadd.f32 %v2009, %v2233
    %v2235 = vpop.f32.mrb[0].mxu0
    %v2236 = vadd.f32 %v2013, %v2235
    %v2237 = vpop.f32.mrb[0].mxu0
    %v2238 = vadd.f32 %v2009, %v2237
    %v2239 = vpop.f32.mrb[0].mxu0
    %v2240 = vadd.f32 %v2013, %v2239
    %2241 = vmatprep.mubr.bf16.mxu0 0
    %2242 = vmatmul.mubr.bf16.gmra.mrb[0].mxu0 %v2116
    %v2243 = vpop.f32.mrb[0].mxu0
    %v2244 = vadd.f32 %v2009, %v2243
    %v2245 = vpop.f32.mrb[0].mxu0
    %v2246 = vadd.f32 %v2013, %v2245
    %v2247 = vpop.f32.mrb[0].mxu0
    %v2248 = vadd.f32 %v2009, %v2247
    %v2249 = vpop.f32.mrb[0].mxu0
    %v2250 = vadd.f32 %v2013, %v2249
    %2251 = vdwg.mxu0
    %v2252 = vmax.f32 %v2234, 0.0
    %v2253 = vmax.f32 %v2238, 0.0
    %v2254 = vmax.f32 %v2244, 0.0
    %v2255 = vmax.f32 %v2248, 0.0
    %v2256 = vxor.u32 %v2236, 2147483648
    %v2257 = vxor.u32 %v2240, 2147483648
    %v2258 = vxor.u32 %v2246, 2147483648
    %v2259 = vxor.u32 %v2250, 2147483648
    %v2260 = vmul.f32 %v2256, 1.442695
    %v2261 = vpow.pop %v2260
    %v2262 = vmul.f32 %v2257, 1.442695
    %v2263 = vpow.pop %v2262
    %v2264 = vmul.f32 %v2258, 1.442695
    %v2265 = vpow.pop %v2264
    %v2266 = vmul.f32 %v2259, 1.442695
    %v2267 = vpow.pop %v2266
    %v2268 = vadd.f32 %v2261, 1.0
    %v2269 = vadd.f32 %v2263, 1.0
    %v2270 = vadd.f32 %v2265, 1.0
    %v2271 = vadd.f32 %v2267, 1.0
    %v2272 = vrcp.pop %v2268
    %v2273 = vmul.f32 1.0, %v2272
    %v2274 = vrcp.pop %v2269
    %v2275 = vmul.f32 1.0, %v2274
    %v2276 = vrcp.pop %v2270
    %v2277 = vmul.f32 1.0, %v2276
    %v2278 = vrcp.pop %v2271
    %v2279 = vmul.f32 1.0, %v2278
    %v2280 = vmul.f32 %v2273, %v2252
    %v2281 = vmul.f32 %v2275, %v2253
    %v2282 = vmul.f32 %v2277, %v2254
    %v2283 = vmul.f32 %v2279, %v2255
    %v2284 = vsub.f32 1.0, %v2273
    %v2285 = vsub.f32 1.0, %v2275
    %v2286 = vsub.f32 1.0, %v2277
    %v2287 = vsub.f32 1.0, %v2279
    %v2320 = vsel %vm2080, %v1775, %v1769
    %v2321 = vsel %vm2082, %v1781, %v2320
    %v2322 = vsel %vm2084, %v1787, %v2321
    %v2323 = vsel %vm2086, %v1793, %v2322
    %v2324 = vsel %vm2088, %v1799, %v2323
    %v2325 = vsel %vm2090, %v1805, %v2324
    %v2326 = vsel %vm2092, %v1811, %v2325
    %v2327 = vsel %vm2080, %v1823, %v1817
    %v2328 = vsel %vm2082, %v1829, %v2327
    %v2329 = vsel %vm2084, %v1835, %v2328
    %v2330 = vsel %vm2086, %v1841, %v2329
    %v2331 = vsel %vm2088, %v1847, %v2330
    %v2332 = vsel %vm2090, %v1853, %v2331
    %v2333 = vsel %vm2092, %v1859, %v2332
    %v2334 = vsel %vm2080, %v1871, %v1865
    %v2335 = vsel %vm2082, %v1877, %v2334
    %v2336 = vsel %vm2084, %v1883, %v2335
    %v2337 = vsel %vm2086, %v1889, %v2336
    %v2338 = vsel %vm2088, %v1895, %v2337
    %v2339 = vsel %vm2090, %v1901, %v2338
    %v2340 = vsel %vm2092, %v1907, %v2339
    %v2341 = vsel %vm2080, %v1919, %v1913
    %v2342 = vsel %vm2082, %v1925, %v2341
    %v2343 = vsel %vm2084, %v1931, %v2342
    %v2344 = vsel %vm2086, %v1937, %v2343
    %v2345 = vsel %vm2088, %v1943, %v2344
    %v2346 = vsel %vm2090, %v1949, %v2345
    %v2347 = vsel %vm2092, %v1955, %v2346
    %v2352 = vmul.f32 %v2284, %v2326
    %v2353 = vmul.f32 %v2285, %v2333
    %v2354 = vmul.f32 %v2286, %v2340
    %v2355 = vmul.f32 %v2287, %v2347
    %v2356 = vadd.f32 %v2280, %v2352
    %v2357 = vadd.f32 %v2281, %v2353
    %v2358 = vadd.f32 %v2282, %v2354
    %v2359 = vadd.f32 %v2283, %v2355
    %2360 = vst [vmem:[#allocation2] sm:$0xff] %v2356
    %2361 = vst [vmem:[#allocation2 + $0x8] sm:$0xff] %v2357
    %2362 = vst [vmem:[#allocation2 + $0x10] sm:$0xff] %v2358
    %2363 = vst [vmem:[#allocation2 + $0x18] sm:$0xff] %v2359
    // Predicated region
    $region22: #{tpu_custom_call.1} parent=1 // pred_check
      _
    $region23: #{tpu_custom_call.1} parent=1 // pred_check_branch
      %2365 = sbr.rel (0) target = $region25
    $region24: #{tpu_custom_call.1} parent=1 // pred_region
      %s2367 = ssub.s32 512, 512
      %2368 = vsyncadd [#allocation3], %s2367
      %s2369 = sshll.u32 [#allocation2], 4
      %s2370 = int_to_ptr.vmem [resolvable:$true] %s2369
      %2375 = dma.vmem_to_hbm [thread:$0]  %s2370, 512, %s5, [#allocation3], 128, 128, 8
    $region25: #{tpu_custom_call.1} parent=1 // pred_fallthru
      _
    // Predicated region
    $region26: #{tpu_custom_call.1} parent=1 // pred_check
      _
    $region27: #{tpu_custom_call.1} parent=1 // pred_check_branch
      %2377 = sbr.rel (0) target = $region29
    $region28: #{tpu_custom_call.1} parent=1 // pred_region
      %2378 = dma.done [#allocation3], 512
    $region29: #{tpu_custom_call.1} parent=1 // pred_fallthru
      _
    %2379 = vsyncpa [#allocation3], 1

// kernel: tpu_custom_call.1
$region0: #{tpu_custom_call.1}
  #allocation0 [shape = 'u32[]', space=smem, size = 0x4, offset = 0x4, fixed_abs, tag = 'smem constant byte address 0x4 - core index']
  #allocation1 [shape = 'u32[144,128]{1,0:T(1,128)}', space=vmem, size = 0x12000, scoped, tag = 'internal scratch']
  %s0 = inlined_call_operand.vmem [shape: bf16[32,12,50], index: 0, kind: input, shape index: {}]
  %s1 = inlined_call_operand.vmem [shape: bf16[256,128], index: 1, kind: input, shape index: {}]
  %s2 = inlined_call_operand.vmem [shape: f32[1,128], index: 2, kind: input, shape index: {}]
  %s3 = inlined_call_operand.vmem [shape: bf16[128,256], index: 3, kind: input, shape index: {}]
  %s4 = inlined_call_operand.vmem [shape: f32[1,256], index: 4, kind: input, shape index: {}]
  %s5 = inlined_call_operand.hbm [shape: f32[32,128], index: 5, kind: output, shape index: {}]
  %s6 = sld [smem:[#allocation0]]
  $region30: #{tpu_custom_call.1} parent=0
    _
  %s8 = ssub.s32 1, %s6
  %s9 = scalar_select 0, %s8, %s6
  $region1: #{tpu_custom_call.1} parent=0
    #allocation2 [shape = 'u8[16384]{0}', space=vmem, size = 0x4000, scoped, tag = 'output window, operand 0, single buffered']
    #allocation3 [shape = 's32[1]{0}', space=sflag, size = 0x4, scoped, tag = 'scoped memory for tpu_custom_call.1']
    %10 = vsyncpa [#allocation3], 0
    // Predicated region
    $region2: #{tpu_custom_call.1} parent=1 // pred_check
      _
    $region3: #{tpu_custom_call.1} parent=1 // pred_check_branch
      %12 = sbr.rel (0) target = $region5
    $region4: #{tpu_custom_call.1} parent=1 // pred_region
      _
    $region5: #{tpu_custom_call.1} parent=1 // pred_fallthru
      _
    // Predicated region
    $region6: #{tpu_custom_call.1} parent=1 // pred_check
      _
    $region7: #{tpu_custom_call.1} parent=1 // pred_check_branch
      %14 = sbr.rel (0) target = $region9
    $region8: #{tpu_custom_call.1} parent=1 // pred_region
      _
    $region9: #{tpu_custom_call.1} parent=1 // pred_fallthru
      _
    // Predicated region
    $region10: #{tpu_custom_call.1} parent=1 // pred_check
      _
    $region11: #{tpu_custom_call.1} parent=1 // pred_check_branch
      %16 = sbr.rel (0) target = $region13
    $region12: #{tpu_custom_call.1} parent=1 // pred_region
      _
    $region13: #{tpu_custom_call.1} parent=1 // pred_fallthru
      _
    // Predicated region
    $region14: #{tpu_custom_call.1} parent=1 // pred_check
      _
    $region15: #{tpu_custom_call.1} parent=1 // pred_check_branch
      %18 = sbr.rel (0) target = $region17
    $region16: #{tpu_custom_call.1} parent=1 // pred_region
      _
    $region17: #{tpu_custom_call.1} parent=1 // pred_fallthru
      _
    // Predicated region
    $region18: #{tpu_custom_call.1} parent=1 // pred_check
      _
    $region19: #{tpu_custom_call.1} parent=1 // pred_check_branch
      %20 = sbr.rel (0) target = $region21
    $region20: #{tpu_custom_call.1} parent=1 // pred_region
      _
    $region21: #{tpu_custom_call.1} parent=1 // pred_fallthru
      _
    %v22 = vld [vmem:[%s0] sm:$0xf]
    %v23 = vld [vmem:[%s0 + $0x4] sm:$0x3]
    %v24 = vld [vmem:[%s0 + $0x8] sm:$0xf]
    %v25 = vld [vmem:[%s0 + $0xc] sm:$0x3]
    %v26 = vld [vmem:[%s0 + $0x10] sm:$0xf]
    %v27 = vld [vmem:[%s0 + $0x14] sm:$0x3]
    %v28 = vld [vmem:[%s0 + $0x18] sm:$0xf]
    %v29 = vld [vmem:[%s0 + $0x1c] sm:$0x3]
    %v30 = vld [vmem:[%s0 + $0x20] sm:$0xf]
    %v31 = vld [vmem:[%s0 + $0x24] sm:$0x3]
    %v32 = vld [vmem:[%s0 + $0x28] sm:$0xf]
    %v33 = vld [vmem:[%s0 + $0x2c] sm:$0x3]
    %v34 = vld [vmem:[%s0 + $0x30] sm:$0xf]
    %v35 = vld [vmem:[%s0 + $0x34] sm:$0x3]
    %v36 = vld [vmem:[%s0 + $0x38] sm:$0xf]
    %v37 = vld [vmem:[%s0 + $0x3c] sm:$0x3]
    %v38 = vld [vmem:[%s0 + $0x40] sm:$0xf]
    %v39 = vld [vmem:[%s0 + $0x44] sm:$0x3]
    %v40 = vld [vmem:[%s0 + $0x48] sm:$0xf]
    %v41 = vld [vmem:[%s0 + $0x4c] sm:$0x3]
    %v42 = vld [vmem:[%s0 + $0x50] sm:$0xf]
    %v43 = vld [vmem:[%s0 + $0x54] sm:$0x3]
    %v44 = vld [vmem:[%s0 + $0x58] sm:$0xf]
    %v45 = vld [vmem:[%s0 + $0x5c] sm:$0x3]
    %v46 = vld [vmem:[%s0 + $0x60] sm:$0xf]
    %v47 = vld [vmem:[%s0 + $0x64] sm:$0x3]
    %v48 = vld [vmem:[%s0 + $0x68] sm:$0xf]
    %v49 = vld [vmem:[%s0 + $0x6c] sm:$0x3]
    %v50 = vld [vmem:[%s0 + $0x70] sm:$0xf]
    %v51 = vld [vmem:[%s0 + $0x74] sm:$0x3]
    %v52 = vld [vmem:[%s0 + $0x78] sm:$0xf]
    %v53 = vld [vmem:[%s0 + $0x7c] sm:$0x3]
    %v54 = vld [vmem:[%s0 + $0x80] sm:$0xf]
    %v55 = vld [vmem:[%s0 + $0x84] sm:$0x3]
    %v56 = vld [vmem:[%s0 + $0x88] sm:$0xf]
    %v57 = vld [vmem:[%s0 + $0x8c] sm:$0x3]
    %v58 = vld [vmem:[%s0 + $0x90] sm:$0xf]
    %v59 = vld [vmem:[%s0 + $0x94] sm:$0x3]
    %v60 = vld [vmem:[%s0 + $0x98] sm:$0xf]
    %v61 = vld [vmem:[%s0 + $0x9c] sm:$0x3]
    %v62 = vld [vmem:[%s0 + $0xa0] sm:$0xf]
    %v63 = vld [vmem:[%s0 + $0xa4] sm:$0x3]
    %v64 = vld [vmem:[%s0 + $0xa8] sm:$0xf]
    %v65 = vld [vmem:[%s0 + $0xac] sm:$0x3]
    %v66 = vld [vmem:[%s0 + $0xb0] sm:$0xf]
    %v67 = vld [vmem:[%s0 + $0xb4] sm:$0x3]
    %v68 = vld [vmem:[%s0 + $0xb8] sm:$0xf]
    %v69 = vld [vmem:[%s0 + $0xbc] sm:$0x3]
    %v70 = vld [vmem:[%s0 + $0xc0] sm:$0xf]
    %v71 = vld [vmem:[%s0 + $0xc4] sm:$0x3]
    %v72 = vld [vmem:[%s0 + $0xc8] sm:$0xf]
    %v73 = vld [vmem:[%s0 + $0xcc] sm:$0x3]
    %v74 = vld [vmem:[%s0 + $0xd0] sm:$0xf]
    %v75 = vld [vmem:[%s0 + $0xd4] sm:$0x3]
    %v76 = vld [vmem:[%s0 + $0xd8] sm:$0xf]
    %v77 = vld [vmem:[%s0 + $0xdc] sm:$0x3]
    %v78 = vld [vmem:[%s0 + $0xe0] sm:$0xf]
    %v79 = vld [vmem:[%s0 + $0xe4] sm:$0x3]
    %v80 = vld [vmem:[%s0 + $0xe8] sm:$0xf]
    %v81 = vld [vmem:[%s0 + $0xec] sm:$0x3]
    %v82 = vld [vmem:[%s0 + $0xf0] sm:$0xf]
    %v83 = vld [vmem:[%s0 + $0xf4] sm:$0x3]
    %v84 = vld [vmem:[%s0 + $0xf8] sm:$0xf]
    %v85 = vld [vmem:[%s0 + $0xfc] sm:$0x3]
    %v151 = vunpack.c.l.s4 1983009808
    %v152 = vunpack.c.0.s8 %v151
    %v153 = vlaneseq
    %v154 = vshrl.u32 %v153, 7
    %v155 = vsub.s32 %v152, %v154
    %v156 = vrot.slane %v22, %v155
    %v157 = vcombine.high %v156, %v156
    %v159 = vunpack.c.l.s4 1983009808
    %v160 = vunpack.c.0.s8 %v159
    %v161 = vlaneseq
    %v162 = vshrl.u32 %v161, 7
    %v163 = vsub.s32 %v160, %v162
    %v164 = vrot.slane %v23, %v163
    %v166 = vunpack.c.l.s4 1983009808
    %v167 = vunpack.c.0.s8 %v166
    %v168 = vlaneseq
    %v169 = vshrl.u32 %v168, 7
    %v170 = vsub.s32 %v167, %v169
    %v171 = vrot.slane %v24, %v170
    %v172 = vcombine.high %v171, %v171
    %v174 = vunpack.c.l.s4 1983009808
    %v175 = vunpack.c.0.s8 %v174
    %v176 = vlaneseq
    %v177 = vshrl.u32 %v176, 7
    %v178 = vsub.s32 %v175, %v177
    %v179 = vrot.slane %v25, %v178
    %v181 = vunpack.c.l.s4 1983009808
    %v182 = vunpack.c.0.s8 %v181
    %v183 = vlaneseq
    %v184 = vshrl.u32 %v183, 7
    %v185 = vsub.s32 %v182, %v184
    %v186 = vrot.slane %v26, %v185
    %v187 = vcombine.high %v186, %v186
    %v189 = vunpack.c.l.s4 1983009808
    %v190 = vunpack.c.0.s8 %v189
    %v191 = vlaneseq
    %v192 = vshrl.u32 %v191, 7
    %v193 = vsub.s32 %v190, %v192
    %v194 = vrot.slane %v27, %v193
    %v196 = vunpack.c.l.s4 1983009808
    %v197 = vunpack.c.0.s8 %v196
    %v198 = vlaneseq
    %v199 = vshrl.u32 %v198, 7
    %v200 = vsub.s32 %v197, %v199
    %v201 = vrot.slane %v28, %v200
    %v202 = vcombine.high %v201, %v201
    %v204 = vunpack.c.l.s4 1983009808
    %v205 = vunpack.c.0.s8 %v204
    %v206 = vlaneseq
    %v207 = vshrl.u32 %v206, 7
    %v208 = vsub.s32 %v205, %v207
    %v209 = vrot.slane %v29, %v208
    %v211 = vunpack.c.l.s4 1983009808
    %v212 = vunpack.c.0.s8 %v211
    %v213 = vlaneseq
    %v214 = vshrl.u32 %v213, 7
    %v215 = vsub.s32 %v212, %v214
    %v216 = vrot.slane %v30, %v215
    %v217 = vcombine.high %v216, %v216
    %v219 = vunpack.c.l.s4 1983009808
    %v220 = vunpack.c.0.s8 %v219
    %v221 = vlaneseq
    %v222 = vshrl.u32 %v221, 7
    %v223 = vsub.s32 %v220, %v222
    %v224 = vrot.slane %v31, %v223
    %v226 = vunpack.c.l.s4 1983009808
    %v227 = vunpack.c.0.s8 %v226
    %v228 = vlaneseq
    %v229 = vshrl.u32 %v228, 7
    %v230 = vsub.s32 %v227, %v229
    %v231 = vrot.slane %v32, %v230
    %v232 = vcombine.high %v231, %v231
    %v234 = vunpack.c.l.s4 1983009808
    %v235 = vunpack.c.0.s8 %v234
    %v236 = vlaneseq
    %v237 = vshrl.u32 %v236, 7
    %v238 = vsub.s32 %v235, %v237
    %v239 = vrot.slane %v33, %v238
    %v241 = vunpack.c.l.s4 1983009808
    %v242 = vunpack.c.0.s8 %v241
    %v243 = vlaneseq
    %v244 = vshrl.u32 %v243, 7
    %v245 = vsub.s32 %v242, %v244
    %v246 = vrot.slane %v34, %v245
    %v247 = vcombine.high %v246, %v246
    %v249 = vunpack.c.l.s4 1983009808
    %v250 = vunpack.c.0.s8 %v249
    %v251 = vlaneseq
    %v252 = vshrl.u32 %v251, 7
    %v253 = vsub.s32 %v250, %v252
    %v254 = vrot.slane %v35, %v253
    %v256 = vunpack.c.l.s4 1983009808
    %v257 = vunpack.c.0.s8 %v256
    %v258 = vlaneseq
    %v259 = vshrl.u32 %v258, 7
    %v260 = vsub.s32 %v257, %v259
    %v261 = vrot.slane %v36, %v260
    %v262 = vcombine.high %v261, %v261
    %v264 = vunpack.c.l.s4 1983009808
    %v265 = vunpack.c.0.s8 %v264
    %v266 = vlaneseq
    %v267 = vshrl.u32 %v266, 7
    %v268 = vsub.s32 %v265, %v267
    %v269 = vrot.slane %v37, %v268
    %v271 = vunpack.c.l.s4 1983009808
    %v272 = vunpack.c.0.s8 %v271
    %v273 = vlaneseq
    %v274 = vshrl.u32 %v273, 7
    %v275 = vsub.s32 %v272, %v274
    %v276 = vrot.slane %v38, %v275
    %v277 = vcombine.high %v276, %v276
    %v279 = vunpack.c.l.s4 1983009808
    %v280 = vunpack.c.0.s8 %v279
    %v281 = vlaneseq
    %v282 = vshrl.u32 %v281, 7
    %v283 = vsub.s32 %v280, %v282
    %v284 = vrot.slane %v39, %v283
    %v286 = vunpack.c.l.s4 1983009808
    %v287 = vunpack.c.0.s8 %v286
    %v288 = vlaneseq
    %v289 = vshrl.u32 %v288, 7
    %v290 = vsub.s32 %v287, %v289
    %v291 = vrot.slane %v40, %v290
    %v292 = vcombine.high %v291, %v291
    %v294 = vunpack.c.l.s4 1983009808
    %v295 = vunpack.c.0.s8 %v294
    %v296 = vlaneseq
    %v297 = vshrl.u32 %v296, 7
    %v298 = vsub.s32 %v295, %v297
    %v299 = vrot.slane %v41, %v298
    %v301 = vunpack.c.l.s4 1983009808
    %v302 = vunpack.c.0.s8 %v301
    %v303 = vlaneseq
    %v304 = vshrl.u32 %v303, 7
    %v305 = vsub.s32 %v302, %v304
    %v306 = vrot.slane %v42, %v305
    %v307 = vcombine.high %v306, %v306
    %v309 = vunpack.c.l.s4 1983009808
    %v310 = vunpack.c.0.s8 %v309
    %v311 = vlaneseq
    %v312 = vshrl.u32 %v311, 7
    %v313 = vsub.s32 %v310, %v312
    %v314 = vrot.slane %v43, %v313
    %v316 = vunpack.c.l.s4 1983009808
    %v317 = vunpack.c.0.s8 %v316
    %v318 = vlaneseq
    %v319 = vshrl.u32 %v318, 7
    %v320 = vsub.s32 %v317, %v319
    %v321 = vrot.slane %v44, %v320
    %v322 = vcombine.high %v321, %v321
    %v324 = vunpack.c.l.s4 1983009808
    %v325 = vunpack.c.0.s8 %v324
    %v326 = vlaneseq
    %v327 = vshrl.u32 %v326, 7
    %v328 = vsub.s32 %v325, %v327
    %v329 = vrot.slane %v45, %v328
    %v331 = vunpack.c.l.s4 1983009808
    %v332 = vunpack.c.0.s8 %v331
    %v333 = vlaneseq
    %v334 = vshrl.u32 %v333, 7
    %v335 = vsub.s32 %v332, %v334
    %v336 = vrot.slane %v46, %v335
    %v337 = vcombine.high %v336, %v336
    %v339 = vunpack.c.l.s4 1983009808
    %v340 = vunpack.c.0.s8 %v339
    %v341 = vlaneseq
    %v342 = vshrl.u32 %v341, 7
    %v343 = vsub.s32 %v340, %v342
    %v344 = vrot.slane %v47, %v343
    %v346 = vunpack.c.l.s4 1983009808
    %v347 = vunpack.c.0.s8 %v346
    %v348 = vlaneseq
    %v349 = vshrl.u32 %v348, 7
    %v350 = vsub.s32 %v347, %v349
    %v351 = vrot.slane %v48, %v350
    %v352 = vcombine.high %v351, %v351
    %v354 = vunpack.c.l.s4 1983009808
    %v355 = vunpack.c.0.s8 %v354
    %v356 = vlaneseq
    %v357 = vshrl.u32 %v356, 7
    %v358 = vsub.s32 %v355, %v357
    %v359 = vrot.slane %v49, %v358
    %v361 = vunpack.c.l.s4 1983009808
    %v362 = vunpack.c.0.s8 %v361
    %v363 = vlaneseq
    %v364 = vshrl.u32 %v363, 7
    %v365 = vsub.s32 %v362, %v364
    %v366 = vrot.slane %v50, %v365
    %v367 = vcombine.high %v366, %v366
    %v369 = vunpack.c.l.s4 1983009808
    %v370 = vunpack.c.0.s8 %v369
    %v371 = vlaneseq
    %v372 = vshrl.u32 %v371, 7
    %v373 = vsub.s32 %v370, %v372
    %v374 = vrot.slane %v51, %v373
    %v376 = vunpack.c.l.s4 1983009808
    %v377 = vunpack.c.0.s8 %v376
    %v378 = vlaneseq
    %v379 = vshrl.u32 %v378, 7
    %v380 = vsub.s32 %v377, %v379
    %v381 = vrot.slane %v52, %v380
    %v382 = vcombine.high %v381, %v381
    %v384 = vunpack.c.l.s4 1983009808
    %v385 = vunpack.c.0.s8 %v384
    %v386 = vlaneseq
    %v387 = vshrl.u32 %v386, 7
    %v388 = vsub.s32 %v385, %v387
    %v389 = vrot.slane %v53, %v388
    %v391 = vunpack.c.l.s4 1983009808
    %v392 = vunpack.c.0.s8 %v391
    %v393 = vlaneseq
    %v394 = vshrl.u32 %v393, 7
    %v395 = vsub.s32 %v392, %v394
    %v396 = vrot.slane %v54, %v395
    %v397 = vcombine.high %v396, %v396
    %v399 = vunpack.c.l.s4 1983009808
    %v400 = vunpack.c.0.s8 %v399
    %v401 = vlaneseq
    %v402 = vshrl.u32 %v401, 7
    %v403 = vsub.s32 %v400, %v402
    %v404 = vrot.slane %v55, %v403
    %v406 = vunpack.c.l.s4 1983009808
    %v407 = vunpack.c.0.s8 %v406
    %v408 = vlaneseq
    %v409 = vshrl.u32 %v408, 7
    %v410 = vsub.s32 %v407, %v409
    %v411 = vrot.slane %v56, %v410
    %v412 = vcombine.high %v411, %v411
    %v414 = vunpack.c.l.s4 1983009808
    %v415 = vunpack.c.0.s8 %v414
    %v416 = vlaneseq
    %v417 = vshrl.u32 %v416, 7
    %v418 = vsub.s32 %v415, %v417
    %v419 = vrot.slane %v57, %v418
    %v421 = vunpack.c.l.s4 1983009808
    %v422 = vunpack.c.0.s8 %v421
    %v423 = vlaneseq
    %v424 = vshrl.u32 %v423, 7
    %v425 = vsub.s32 %v422, %v424
    %v426 = vrot.slane %v58, %v425
    %v427 = vcombine.high %v426, %v426
    %v429 = vunpack.c.l.s4 1983009808
    %v430 = vunpack.c.0.s8 %v429
    %v431 = vlaneseq
    %v432 = vshrl.u32 %v431, 7
    %v433 = vsub.s32 %v430, %v432
    %v434 = vrot.slane %v59, %v433
    %v436 = vunpack.c.l.s4 1983009808
    %v437 = vunpack.c.0.s8 %v436
    %v438 = vlaneseq
    %v439 = vshrl.u32 %v438, 7
    %v440 = vsub.s32 %v437, %v439
    %v441 = vrot.slane %v60, %v440
    %v442 = vcombine.high %v441, %v441
    %v444 = vunpack.c.l.s4 1983009808
    %v445 = vunpack.c.0.s8 %v444
    %v446 = vlaneseq
    %v447 = vshrl.u32 %v446, 7
    %v448 = vsub.s32 %v445, %v447
    %v449 = vrot.slane %v61, %v448
    %v451 = vunpack.c.l.s4 1983009808
    %v452 = vunpack.c.0.s8 %v451
    %v453 = vlaneseq
    %v454 = vshrl.u32 %v453, 7
    %v455 = vsub.s32 %v452, %v454
    %v456 = vrot.slane %v62, %v455
    %v457 = vcombine.high %v456, %v456
    %v459 = vunpack.c.l.s4 1983009808
    %v460 = vunpack.c.0.s8 %v459
    %v461 = vlaneseq
    %v462 = vshrl.u32 %v461, 7
    %v463 = vsub.s32 %v460, %v462
    %v464 = vrot.slane %v63, %v463
    %v466 = vunpack.c.l.s4 1983009808
    %v467 = vunpack.c.0.s8 %v466
    %v468 = vlaneseq
    %v469 = vshrl.u32 %v468, 7
    %v470 = vsub.s32 %v467, %v469
    %v471 = vrot.slane %v64, %v470
    %v472 = vcombine.high %v471, %v471
    %v474 = vunpack.c.l.s4 1983009808
    %v475 = vunpack.c.0.s8 %v474
    %v476 = vlaneseq
    %v477 = vshrl.u32 %v476, 7
    %v478 = vsub.s32 %v475, %v477
    %v479 = vrot.slane %v65, %v478
    %v481 = vunpack.c.l.s4 1983009808
    %v482 = vunpack.c.0.s8 %v481
    %v483 = vlaneseq
    %v484 = vshrl.u32 %v483, 7
    %v485 = vsub.s32 %v482, %v484
    %v486 = vrot.slane %v66, %v485
    %v487 = vcombine.high %v486, %v486
    %v489 = vunpack.c.l.s4 1983009808
    %v490 = vunpack.c.0.s8 %v489
    %v491 = vlaneseq
    %v492 = vshrl.u32 %v491, 7
    %v493 = vsub.s32 %v490, %v492
    %v494 = vrot.slane %v67, %v493
    %v496 = vunpack.c.l.s4 1983009808
    %v497 = vunpack.c.0.s8 %v496
    %v498 = vlaneseq
    %v499 = vshrl.u32 %v498, 7
    %v500 = vsub.s32 %v497, %v499
    %v501 = vrot.slane %v68, %v500
    %v502 = vcombine.high %v501, %v501
    %v504 = vunpack.c.l.s4 1983009808
    %v505 = vunpack.c.0.s8 %v504
    %v506 = vlaneseq
    %v507 = vshrl.u32 %v506, 7
    %v508 = vsub.s32 %v505, %v507
    %v509 = vrot.slane %v69, %v508
    %v511 = vunpack.c.l.s4 1983009808
    %v512 = vunpack.c.0.s8 %v511
    %v513 = vlaneseq
    %v514 = vshrl.u32 %v513, 7
    %v515 = vsub.s32 %v512, %v514
    %v516 = vrot.slane %v70, %v515
    %v517 = vcombine.high %v516, %v516
    %v519 = vunpack.c.l.s4 1983009808
    %v520 = vunpack.c.0.s8 %v519
    %v521 = vlaneseq
    %v522 = vshrl.u32 %v521, 7
    %v523 = vsub.s32 %v520, %v522
    %v524 = vrot.slane %v71, %v523
    %v526 = vunpack.c.l.s4 1983009808
    %v527 = vunpack.c.0.s8 %v526
    %v528 = vlaneseq
    %v529 = vshrl.u32 %v528, 7
    %v530 = vsub.s32 %v527, %v529
    %v531 = vrot.slane %v72, %v530
    %v532 = vcombine.high %v531, %v531
    %v534 = vunpack.c.l.s4 1983009808
    %v535 = vunpack.c.0.s8 %v534
    %v536 = vlaneseq
    %v537 = vshrl.u32 %v536, 7
    %v538 = vsub.s32 %v535, %v537
    %v539 = vrot.slane %v73, %v538
    %v541 = vunpack.c.l.s4 1983009808
    %v542 = vunpack.c.0.s8 %v541
    %v543 = vlaneseq
    %v544 = vshrl.u32 %v543, 7
    %v545 = vsub.s32 %v542, %v544
    %v546 = vrot.slane %v74, %v545
    %v547 = vcombine.high %v546, %v546
    %v549 = vunpack.c.l.s4 1983009808
    %v550 = vunpack.c.0.s8 %v549
    %v551 = vlaneseq
    %v552 = vshrl.u32 %v551, 7
    %v553 = vsub.s32 %v550, %v552
    %v554 = vrot.slane %v75, %v553
    %v556 = vunpack.c.l.s4 1983009808
    %v557 = vunpack.c.0.s8 %v556
    %v558 = vlaneseq
    %v559 = vshrl.u32 %v558, 7
    %v560 = vsub.s32 %v557, %v559
    %v561 = vrot.slane %v76, %v560
    %v562 = vcombine.high %v561, %v561
    %v564 = vunpack.c.l.s4 1983009808
    %v565 = vunpack.c.0.s8 %v564
    %v566 = vlaneseq
    %v567 = vshrl.u32 %v566, 7
    %v568 = vsub.s32 %v565, %v567
    %v569 = vrot.slane %v77, %v568
    %v571 = vunpack.c.l.s4 1983009808
    %v572 = vunpack.c.0.s8 %v571
    %v573 = vlaneseq
    %v574 = vshrl.u32 %v573, 7
    %v575 = vsub.s32 %v572, %v574
    %v576 = vrot.slane %v78, %v575
    %v577 = vcombine.high %v576, %v576
    %v579 = vunpack.c.l.s4 1983009808
    %v580 = vunpack.c.0.s8 %v579
    %v581 = vlaneseq
    %v582 = vshrl.u32 %v581, 7
    %v583 = vsub.s32 %v580, %v582
    %v584 = vrot.slane %v79, %v583
    %v586 = vunpack.c.l.s4 1983009808
    %v587 = vunpack.c.0.s8 %v586
    %v588 = vlaneseq
    %v589 = vshrl.u32 %v588, 7
    %v590 = vsub.s32 %v587, %v589
    %v591 = vrot.slane %v80, %v590
    %v592 = vcombine.high %v591, %v591
    %v594 = vunpack.c.l.s4 1983009808
    %v595 = vunpack.c.0.s8 %v594
    %v596 = vlaneseq
    %v597 = vshrl.u32 %v596, 7
    %v598 = vsub.s32 %v595, %v597
    %v599 = vrot.slane %v81, %v598
    %v601 = vunpack.c.l.s4 1983009808
    %v602 = vunpack.c.0.s8 %v601
    %v603 = vlaneseq
    %v604 = vshrl.u32 %v603, 7
    %v605 = vsub.s32 %v602, %v604
    %v606 = vrot.slane %v82, %v605
    %v607 = vcombine.high %v606, %v606
    %v609 = vunpack.c.l.s4 1983009808
    %v610 = vunpack.c.0.s8 %v609
    %v611 = vlaneseq
    %v612 = vshrl.u32 %v611, 7
    %v613 = vsub.s32 %v610, %v612
    %v614 = vrot.slane %v83, %v613
    %v616 = vunpack.c.l.s4 1983009808
    %v617 = vunpack.c.0.s8 %v616
    %v618 = vlaneseq
    %v619 = vshrl.u32 %v618, 7
    %v620 = vsub.s32 %v617, %v619
    %v621 = vrot.slane %v84, %v620
    %v622 = vcombine.high %v621, %v621
    %v624 = vunpack.c.l.s4 1983009808
    %v625 = vunpack.c.0.s8 %v624
    %v626 = vlaneseq
    %v627 = vshrl.u32 %v626, 7
    %v628 = vsub.s32 %v625, %v627
    %v629 = vrot.slane %v85, %v628
    %v630 = vld [vmem:[%s1] sm:$0xf]
    %v631 = vld [vmem:[%s1 + $0x4] sm:$0xf]
    %v632 = vld [vmem:[%s1 + $0x8] sm:$0xf]
    %v633 = vld [vmem:[%s1 + $0xc] sm:$0xf]
    %v634 = vld [vmem:[%s1 + $0x10] sm:$0xf]
    %v635 = vld [vmem:[%s1 + $0x14] sm:$0xf]
    %v636 = vld [vmem:[%s1 + $0x18] sm:$0x1]
    %v637 = vcombine.low %v156, %v157
    %v638 = vcombine.low %v164, %v171
    %v640 = vunpack.c.l.s4 1983009808
    %v641 = vunpack.c.0.s8 %v640
    %v642 = vlaneseq
    %v643 = vshrl.u32 %v642, 7
    %v644 = vsub.s32 %v641, %v643
    %v645 = vrot.slane %v637, %v644
    %v647 = vunpack.c.l.s4 1983009808
    %v648 = vunpack.c.0.s8 %v647
    %v649 = vlaneseq
    %v650 = vshrl.u32 %v649, 7
    %v651 = vsub.s32 %v648, %v650
    %v652 = vrot.slane %v638, %v651
    %v653 = vcombine.low %v645, %v652
    %v654 = vcombine.low %v172, %v179
    %v655 = vcombine.low %v186, %v187
    %v657 = vunpack.c.l.s4 1983009808
    %v658 = vunpack.c.0.s8 %v657
    %v659 = vlaneseq
    %v660 = vshrl.u32 %v659, 7
    %v661 = vsub.s32 %v658, %v660
    %v662 = vrot.slane %v654, %v661
    %v664 = vunpack.c.l.s4 1983009808
    %v665 = vunpack.c.0.s8 %v664
    %v666 = vlaneseq
    %v667 = vshrl.u32 %v666, 7
    %v668 = vsub.s32 %v665, %v667
    %v669 = vrot.slane %v655, %v668
    %v670 = vcombine.low %v662, %v669
    %v671 = vcombine.low %v194, %v201
    %v672 = vcombine.low %v202, %v209
    %v674 = vunpack.c.l.s4 1983009808
    %v675 = vunpack.c.0.s8 %v674
    %v676 = vlaneseq
    %v677 = vshrl.u32 %v676, 7
    %v678 = vsub.s32 %v675, %v677
    %v679 = vrot.slane %v671, %v678
    %v681 = vunpack.c.l.s4 1983009808
    %v682 = vunpack.c.0.s8 %v681
    %v683 = vlaneseq
    %v684 = vshrl.u32 %v683, 7
    %v685 = vsub.s32 %v682, %v684
    %v686 = vrot.slane %v672, %v685
    %v687 = vcombine.low %v679, %v686
    %v688 = vcombine.low %v216, %v217
    %v689 = vcombine.low %v224, %v231
    %v691 = vunpack.c.l.s4 1983009808
    %v692 = vunpack.c.0.s8 %v691
    %v693 = vlaneseq
    %v694 = vshrl.u32 %v693, 7
    %v695 = vsub.s32 %v692, %v694
    %v696 = vrot.slane %v688, %v695
    %v698 = vunpack.c.l.s4 1983009808
    %v699 = vunpack.c.0.s8 %v698
    %v700 = vlaneseq
    %v701 = vshrl.u32 %v700, 7
    %v702 = vsub.s32 %v699, %v701
    %v703 = vrot.slane %v689, %v702
    %v704 = vcombine.low %v696, %v703
    %v705 = vcombine.low %v232, %v239
    %v706 = vcombine.low %v246, %v247
    %v708 = vunpack.c.l.s4 1983009808
    %v709 = vunpack.c.0.s8 %v708
    %v710 = vlaneseq
    %v711 = vshrl.u32 %v710, 7
    %v712 = vsub.s32 %v709, %v711
    %v713 = vrot.slane %v705, %v712
    %v715 = vunpack.c.l.s4 1983009808
    %v716 = vunpack.c.0.s8 %v715
    %v717 = vlaneseq
    %v718 = vshrl.u32 %v717, 7
    %v719 = vsub.s32 %v716, %v718
    %v720 = vrot.slane %v706, %v719
    %v721 = vcombine.low %v713, %v720
    %v722 = vcombine.low %v254, %v261
    %v723 = vcombine.low %v262, %v269
    %v725 = vunpack.c.l.s4 1983009808
    %v726 = vunpack.c.0.s8 %v725
    %v727 = vlaneseq
    %v728 = vshrl.u32 %v727, 7
    %v729 = vsub.s32 %v726, %v728
    %v730 = vrot.slane %v722, %v729
    %v732 = vunpack.c.l.s4 1983009808
    %v733 = vunpack.c.0.s8 %v732
    %v734 = vlaneseq
    %v735 = vshrl.u32 %v734, 7
    %v736 = vsub.s32 %v733, %v735
    %v737 = vrot.slane %v723, %v736
    %v738 = vcombine.low %v730, %v737
    %v739 = vcombine.low %v276, %v277
    %v740 = vcombine.low %v284, %v291
    %v742 = vunpack.c.l.s4 1983009808
    %v743 = vunpack.c.0.s8 %v742
    %v744 = vlaneseq
    %v745 = vshrl.u32 %v744, 7
    %v746 = vsub.s32 %v743, %v745
    %v747 = vrot.slane %v739, %v746
    %v749 = vunpack.c.l.s4 1983009808
    %v750 = vunpack.c.0.s8 %v749
    %v751 = vlaneseq
    %v752 = vshrl.u32 %v751, 7
    %v753 = vsub.s32 %v750, %v752
    %v754 = vrot.slane %v740, %v753
    %v755 = vcombine.low %v747, %v754
    %v756 = vcombine.low %v292, %v299
    %v757 = vcombine.low %v306, %v307
    %v759 = vunpack.c.l.s4 1983009808
    %v760 = vunpack.c.0.s8 %v759
    %v761 = vlaneseq
    %v762 = vshrl.u32 %v761, 7
    %v763 = vsub.s32 %v760, %v762
    %v764 = vrot.slane %v756, %v763
    %v766 = vunpack.c.l.s4 1983009808
    %v767 = vunpack.c.0.s8 %v766
    %v768 = vlaneseq
    %v769 = vshrl.u32 %v768, 7
    %v770 = vsub.s32 %v767, %v769
    %v771 = vrot.slane %v757, %v770
    %v772 = vcombine.low %v764, %v771
    %v773 = vcombine.low %v314, %v321
    %v774 = vcombine.low %v322, %v329
    %v776 = vunpack.c.l.s4 1983009808
    %v777 = vunpack.c.0.s8 %v776
    %v778 = vlaneseq
    %v779 = vshrl.u32 %v778, 7
    %v780 = vsub.s32 %v777, %v779
    %v781 = vrot.slane %v773, %v780
    %v783 = vunpack.c.l.s4 1983009808
    %v784 = vunpack.c.0.s8 %v783
    %v785 = vlaneseq
    %v786 = vshrl.u32 %v785, 7
    %v787 = vsub.s32 %v784, %v786
    %v788 = vrot.slane %v774, %v787
    %v789 = vcombine.low %v781, %v788
    %v790 = vcombine.low %v336, %v337
    %v791 = vcombine.low %v344, %v351
    %v793 = vunpack.c.l.s4 1983009808
    %v794 = vunpack.c.0.s8 %v793
    %v795 = vlaneseq
    %v796 = vshrl.u32 %v795, 7
    %v797 = vsub.s32 %v794, %v796
    %v798 = vrot.slane %v790, %v797
    %v800 = vunpack.c.l.s4 1983009808
    %v801 = vunpack.c.0.s8 %v800
    %v802 = vlaneseq
    %v803 = vshrl.u32 %v802, 7
    %v804 = vsub.s32 %v801, %v803
    %v805 = vrot.slane %v791, %v804
    %v806 = vcombine.low %v798, %v805
    %v807 = vcombine.low %v352, %v359
    %v808 = vcombine.low %v366, %v367
    %v810 = vunpack.c.l.s4 1983009808
    %v811 = vunpack.c.0.s8 %v810
    %v812 = vlaneseq
    %v813 = vshrl.u32 %v812, 7
    %v814 = vsub.s32 %v811, %v813
    %v815 = vrot.slane %v807, %v814
    %v817 = vunpack.c.l.s4 1983009808
    %v818 = vunpack.c.0.s8 %v817
    %v819 = vlaneseq
    %v820 = vshrl.u32 %v819, 7
    %v821 = vsub.s32 %v818, %v820
    %v822 = vrot.slane %v808, %v821
    %v823 = vcombine.low %v815, %v822
    %v824 = vcombine.low %v374, %v381
    %v825 = vcombine.low %v382, %v389
    %v827 = vunpack.c.l.s4 1983009808
    %v828 = vunpack.c.0.s8 %v827
    %v829 = vlaneseq
    %v830 = vshrl.u32 %v829, 7
    %v831 = vsub.s32 %v828, %v830
    %v832 = vrot.slane %v824, %v831
    %v834 = vunpack.c.l.s4 1983009808
    %v835 = vunpack.c.0.s8 %v834
    %v836 = vlaneseq
    %v837 = vshrl.u32 %v836, 7
    %v838 = vsub.s32 %v835, %v837
    %v839 = vrot.slane %v825, %v838
    %v840 = vcombine.low %v832, %v839
    %v841 = vcombine.low %v396, %v397
    %v842 = vcombine.low %v404, %v411
    %v844 = vunpack.c.l.s4 1983009808
    %v845 = vunpack.c.0.s8 %v844
    %v846 = vlaneseq
    %v847 = vshrl.u32 %v846, 7
    %v848 = vsub.s32 %v845, %v847
    %v849 = vrot.slane %v841, %v848
    %v851 = vunpack.c.l.s4 1983009808
    %v852 = vunpack.c.0.s8 %v851
    %v853 = vlaneseq
    %v854 = vshrl.u32 %v853, 7
    %v855 = vsub.s32 %v852, %v854
    %v856 = vrot.slane %v842, %v855
    %v857 = vcombine.low %v849, %v856
    %v858 = vcombine.low %v412, %v419
    %v859 = vcombine.low %v426, %v427
    %v861 = vunpack.c.l.s4 1983009808
    %v862 = vunpack.c.0.s8 %v861
    %v863 = vlaneseq
    %v864 = vshrl.u32 %v863, 7
    %v865 = vsub.s32 %v862, %v864
    %v866 = vrot.slane %v858, %v865
    %v868 = vunpack.c.l.s4 1983009808
    %v869 = vunpack.c.0.s8 %v868
    %v870 = vlaneseq
    %v871 = vshrl.u32 %v870, 7
    %v872 = vsub.s32 %v869, %v871
    %v873 = vrot.slane %v859, %v872
    %v874 = vcombine.low %v866, %v873
    %v875 = vcombine.low %v434, %v441
    %v876 = vcombine.low %v442, %v449
    %v878 = vunpack.c.l.s4 1983009808
    %v879 = vunpack.c.0.s8 %v878
    %v880 = vlaneseq
    %v881 = vshrl.u32 %v880, 7
    %v882 = vsub.s32 %v879, %v881
    %v883 = vrot.slane %v875, %v882
    %v885 = vunpack.c.l.s4 1983009808
    %v886 = vunpack.c.0.s8 %v885
    %v887 = vlaneseq
    %v888 = vshrl.u32 %v887, 7
    %v889 = vsub.s32 %v886, %v888
    %v890 = vrot.slane %v876, %v889
    %v891 = vcombine.low %v883, %v890
    %v892 = vcombine.low %v456, %v457
    %v893 = vcombine.low %v464, %v471
    %v895 = vunpack.c.l.s4 1983009808
    %v896 = vunpack.c.0.s8 %v895
    %v897 = vlaneseq
    %v898 = vshrl.u32 %v897, 7
    %v899 = vsub.s32 %v896, %v898
    %v900 = vrot.slane %v892, %v899
    %v902 = vunpack.c.l.s4 1983009808
    %v903 = vunpack.c.0.s8 %v902
    %v904 = vlaneseq
    %v905 = vshrl.u32 %v904, 7
    %v906 = vsub.s32 %v903, %v905
    %v907 = vrot.slane %v893, %v906
    %v908 = vcombine.low %v900, %v907
    %v909 = vcombine.low %v472, %v479
    %v910 = vcombine.low %v486, %v487
    %v912 = vunpack.c.l.s4 1983009808
    %v913 = vunpack.c.0.s8 %v912
    %v914 = vlaneseq
    %v915 = vshrl.u32 %v914, 7
    %v916 = vsub.s32 %v913, %v915
    %v917 = vrot.slane %v909, %v916
    %v919 = vunpack.c.l.s4 1983009808
    %v920 = vunpack.c.0.s8 %v919
    %v921 = vlaneseq
    %v922 = vshrl.u32 %v921, 7
    %v923 = vsub.s32 %v920, %v922
    %v924 = vrot.slane %v910, %v923
    %v925 = vcombine.low %v917, %v924
    %v926 = vcombine.low %v494, %v501
    %v927 = vcombine.low %v502, %v509
    %v929 = vunpack.c.l.s4 1983009808
    %v930 = vunpack.c.0.s8 %v929
    %v931 = vlaneseq
    %v932 = vshrl.u32 %v931, 7
    %v933 = vsub.s32 %v930, %v932
    %v934 = vrot.slane %v926, %v933
    %v936 = vunpack.c.l.s4 1983009808
    %v937 = vunpack.c.0.s8 %v936
    %v938 = vlaneseq
    %v939 = vshrl.u32 %v938, 7
    %v940 = vsub.s32 %v937, %v939
    %v941 = vrot.slane %v927, %v940
    %v942 = vcombine.low %v934, %v941
    %v943 = vcombine.low %v516, %v517
    %v944 = vcombine.low %v524, %v531
    %v946 = vunpack.c.l.s4 1983009808
    %v947 = vunpack.c.0.s8 %v946
    %v948 = vlaneseq
    %v949 = vshrl.u32 %v948, 7
    %v950 = vsub.s32 %v947, %v949
    %v951 = vrot.slane %v943, %v950
    %v953 = vunpack.c.l.s4 1983009808
    %v954 = vunpack.c.0.s8 %v953
    %v955 = vlaneseq
    %v956 = vshrl.u32 %v955, 7
    %v957 = vsub.s32 %v954, %v956
    %v958 = vrot.slane %v944, %v957
    %v959 = vcombine.low %v951, %v958
    %v960 = vcombine.low %v532, %v539
    %v961 = vcombine.low %v546, %v547
    %v963 = vunpack.c.l.s4 1983009808
    %v964 = vunpack.c.0.s8 %v963
    %v965 = vlaneseq
    %v966 = vshrl.u32 %v965, 7
    %v967 = vsub.s32 %v964, %v966
    %v968 = vrot.slane %v960, %v967
    %v970 = vunpack.c.l.s4 1983009808
    %v971 = vunpack.c.0.s8 %v970
    %v972 = vlaneseq
    %v973 = vshrl.u32 %v972, 7
    %v974 = vsub.s32 %v971, %v973
    %v975 = vrot.slane %v961, %v974
    %v976 = vcombine.low %v968, %v975
    %v977 = vcombine.low %v554, %v561
    %v978 = vcombine.low %v562, %v569
    %v980 = vunpack.c.l.s4 1983009808
    %v981 = vunpack.c.0.s8 %v980
    %v982 = vlaneseq
    %v983 = vshrl.u32 %v982, 7
    %v984 = vsub.s32 %v981, %v983
    %v985 = vrot.slane %v977, %v984
    %v987 = vunpack.c.l.s4 1983009808
    %v988 = vunpack.c.0.s8 %v987
    %v989 = vlaneseq
    %v990 = vshrl.u32 %v989, 7
    %v991 = vsub.s32 %v988, %v990
    %v992 = vrot.slane %v978, %v991
    %v993 = vcombine.low %v985, %v992
    %v994 = vcombine.low %v576, %v577
    %v995 = vcombine.low %v584, %v591
    %v997 = vunpack.c.l.s4 1983009808
    %v998 = vunpack.c.0.s8 %v997
    %v999 = vlaneseq
    %v1000 = vshrl.u32 %v999, 7
    %v1001 = vsub.s32 %v998, %v1000
    %v1002 = vrot.slane %v994, %v1001
    %v1004 = vunpack.c.l.s4 1983009808
    %v1005 = vunpack.c.0.s8 %v1004
    %v1006 = vlaneseq
    %v1007 = vshrl.u32 %v1006, 7
    %v1008 = vsub.s32 %v1005, %v1007
    %v1009 = vrot.slane %v995, %v1008
    %v1010 = vcombine.low %v1002, %v1009
    %v1011 = vcombine.low %v592, %v599
    %v1012 = vcombine.low %v606, %v607
    %v1014 = vunpack.c.l.s4 1983009808
    %v1015 = vunpack.c.0.s8 %v1014
    %v1016 = vlaneseq
    %v1017 = vshrl.u32 %v1016, 7
    %v1018 = vsub.s32 %v1015, %v1017
    %v1019 = vrot.slane %v1011, %v1018
    %v1021 = vunpack.c.l.s4 1983009808
    %v1022 = vunpack.c.0.s8 %v1021
    %v1023 = vlaneseq
    %v1024 = vshrl.u32 %v1023, 7
    %v1025 = vsub.s32 %v1022, %v1024
    %v1026 = vrot.slane %v1012, %v1025
    %v1027 = vcombine.low %v1019, %v1026
    %v1028 = vcombine.low %v614, %v621
    %v1029 = vcombine.low %v622, %v629
    %v1031 = vunpack.c.l.s4 1983009808
    %v1032 = vunpack.c.0.s8 %v1031
    %v1033 = vlaneseq
    %v1034 = vshrl.u32 %v1033, 7
    %v1035 = vsub.s32 %v1032, %v1034
    %v1036 = vrot.slane %v1028, %v1035
    %v1038 = vunpack.c.l.s4 1983009808
    %v1039 = vunpack.c.0.s8 %v1038
    %v1040 = vlaneseq
    %v1041 = vshrl.u32 %v1040, 7
    %v1042 = vsub.s32 %v1039, %v1041
    %v1043 = vrot.slane %v1029, %v1042
    %v1044 = vcombine.low %v1036, %v1043
    %v1052 = vunpack.c.l.b16 %v630
    %v1053 = vunpack.c.l.b16 %v631
    %v1054 = vunpack.c.l.b16 %v632
    %v1055 = vunpack.c.l.b16 %v633
    %v1056 = vunpack.c.l.b16 %v634
    %v1057 = vunpack.c.l.b16 %v635
    %v1058 = vunpack.c.l.b16 %v636
    %v1059 = vpack.c.b16 %v1053, %v1052
    %v1060 = vpack.c.b16 %v1055, %v1054
    %v1061 = vpack.c.b16 %v1057, %v1056
    %v1062 = vpack.c.b16 %v1058, %v1058
    %vm1066 = vcmask 408576
    %v1068 = vsel %vm1066, %v653, 0
    %v1071 = vsel %vm1066, %v670, 0
    %v1074 = vsel %vm1066, %v687, 0
    %v1077 = vsel %vm1066, %v704, 0
    %v1080 = vsel %vm1066, %v721, 0
    %v1083 = vsel %vm1066, %v738, 0
    %v1086 = vsel %vm1066, %v755, 0
    %v1089 = vsel %vm1066, %v772, 0
    %v1092 = vsel %vm1066, %v789, 0
    %v1095 = vsel %vm1066, %v806, 0
    %v1098 = vsel %vm1066, %v823, 0
    %v1101 = vsel %vm1066, %v840, 0
    %v1104 = vsel %vm1066, %v857, 0
    %v1107 = vsel %vm1066, %v874, 0
    %v1110 = vsel %vm1066, %v891, 0
    %v1113 = vsel %vm1066, %v908, 0
    %v1116 = vsel %vm1066, %v925, 0
    %v1119 = vsel %vm1066, %v942, 0
    %v1122 = vsel %vm1066, %v959, 0
    %v1125 = vsel %vm1066, %v976, 0
    %v1128 = vsel %vm1066, %v993, 0
    %v1131 = vsel %vm1066, %v1010, 0
    %v1134 = vsel %vm1066, %v1027, 0
    %v1137 = vsel %vm1066, %v1044, 0
    %vm1139 = vcmask 1040384
    %v1141 = vsel %vm1139, %v1062, 0
    %1143 = vmatprep.subr.bf16.mxu0 0
    %1144 = vmatpush1.bf16.msra.mxu0 %v1059
    %1145 = vmatprep.subr.bf16.mxu0 0
    %1146 = vmatpush1.bf16.msra.mxu0 %v1060
    %1147 = vmatprep.subr.bf16.mxu0 0
    %1148 = vmatpush1.bf16.msra.mxu0 %v1061
    %1149 = vmatprep.subr.bf16.mxu0 0
    %1150 = vmatpush1.bf16.msra.mxu0 %v1141
    %1151 = vmatprep.subr.bf16.mxu0 0
    %1152 = vmatpush1.bf16.msra.mxu0 0
    %1153 = vmatprep.subr.bf16.mxu0 0
    %1154 = vmatpush1.bf16.msra.mxu0 0
    %1155 = vmatprep.subr.bf16.mxu0 0
    %1156 = vmatpush1.bf16.msra.mxu0 0
    %1157 = vmatprep.subr.bf16.mxu0 0
    %1158 = vmatpush1.bf16.msra.mxu0 0
    %1159 = vmatprep.subr.bf16.mxu0 0
    %1160 = vmatpush1.bf16.msra.mxu0 0
    %1161 = vmatprep.subr.bf16.mxu0 0
    %1162 = vmatpush1.bf16.msra.mxu0 0
    %1163 = vmatprep.subr.bf16.mxu0 0
    %1164 = vmatpush1.bf16.msra.mxu0 0
    %1165 = vmatprep.subr.bf16.mxu0 0
    %1166 = vmatpush1.bf16.msra.mxu0 0
    %1167 = vmatprep.subr.bf16.mxu0 0
    %1168 = vmatpush1.bf16.msra.mxu0 0
    %1169 = vmatprep.subr.bf16.mxu0 0
    %1170 = vmatpush1.bf16.msra.mxu0 0
    %1171 = vmatprep.subr.bf16.mxu0 0
    %1172 = vmatpush1.bf16.msra.mxu0 0
    %1173 = vmatprep.subr.bf16.mxu0 0
    %1174 = vmatpush1.bf16.msra.mxu0 0
    %1175 = vmatprep.mubr.bf16.mxu0 0
    %1176 = vmatmul.mubr.bf16.gmra.mrb[0].mxu0 %v1068
    %v1177 = vpop.f32.mrb[0].mxu0
    %v1178 = vadd.f32 0.0, %v1177
    %v1179 = vpop.f32.mrb[0].mxu0
    %v1180 = vpop.f32.mrb[0].mxu0
    %v1181 = vadd.f32 0.0, %v1180
    %v1182 = vpop.f32.mrb[0].mxu0
    %1183 = vmatprep.mubr.bf16.mxu0 0
    %1184 = vmatmul.mubr.bf16.gmra.mrb[0].mxu0 %v1071
    %v1185 = vpop.f32.mrb[0].mxu0
    %v1186 = vadd.f32 0.0, %v1185
    %v1187 = vpop.f32.mrb[0].mxu0
    %v1188 = vpop.f32.mrb[0].mxu0
    %v1189 = vadd.f32 0.0, %v1188
    %v1190 = vpop.f32.mrb[0].mxu0
    %1191 = vmatprep.mubr.bf16.mxu0 0
    %1192 = vmatmul.mubr.bf16.gmra.mrb[0].mxu0 %v1074
    %v1193 = vpop.f32.mrb[0].mxu0
    %v1194 = vadd.f32 0.0, %v1193
    %v1195 = vpop.f32.mrb[0].mxu0
    %v1196 = vpop.f32.mrb[0].mxu0
    %v1197 = vadd.f32 0.0, %v1196
    %v1198 = vpop.f32.mrb[0].mxu0
    %1199 = vmatprep.mubr.bf16.mxu0 0
    %1200 = vmatmul.mubr.bf16.gmra.mrb[0].mxu0 %v1077
    %v1201 = vpop.f32.mrb[0].mxu0
    %v1202 = vadd.f32 0.0, %v1201
    %v1203 = vpop.f32.mrb[0].mxu0
    %v1204 = vpop.f32.mrb[0].mxu0
    %v1205 = vadd.f32 0.0, %v1204
    %v1206 = vpop.f32.mrb[0].mxu0
    %1207 = vmatprep.mubr.bf16.mxu0 0
    %1208 = vmatmul.mubr.bf16.gmra.mrb[0].mxu0 %v1080
    %v1209 = vpop.f32.mrb[0].mxu0
    %v1210 = vadd.f32 0.0, %v1209
    %v1211 = vpop.f32.mrb[0].mxu0
    %v1212 = vpop.f32.mrb[0].mxu0
    %v1213 = vadd.f32 0.0, %v1212
    %v1214 = vpop.f32.mrb[0].mxu0
    %1215 = vmatprep.mubr.bf16.mxu0 0
    %1216 = vmatmul.mubr.bf16.gmra.mrb[0].mxu0 %v1083
    %v1217 = vpop.f32.mrb[0].mxu0
    %v1218 = vadd.f32 0.0, %v1217
    %v1219 = vpop.f32.mrb[0].mxu0
    %v1220 = vpop.f32.mrb[0].mxu0
    %v1221 = vadd.f32 0.0, %v1220
    %v1222 = vpop.f32.mrb[0].mxu0
    %1223 = vmatprep.mubr.bf16.mxu0 0
    %1224 = vmatmul.mubr.bf16.gmra.mrb[0].mxu0 %v1086
    %v1225 = vpop.f32.mrb[0].mxu0
    %v1226 = vadd.f32 0.0, %v1225
    %v1227 = vpop.f32.mrb[0].mxu0
    %v1228 = vpop.f32.mrb[0].mxu0
    %v1229 = vadd.f32 0.0, %v1228
    %v1230 = vpop.f32.mrb[0].mxu0
    %1231 = vmatprep.mubr.bf16.mxu0 0
    %1232 = vmatmul.mubr.bf16.gmra.mrb[0].mxu0 %v1089
    %v1233 = vpop.f32.mrb[0].mxu0
    %v1234 = vadd.f32 0.0, %v1233
    %v1235 = vpop.f32.mrb[0].mxu0
    %v1236 = vpop.f32.mrb[0].mxu0
    %v1237 = vadd.f32 0.0, %v1236
    %v1238 = vpop.f32.mrb[0].mxu0
    %1239 = vmatprep.mubr.bf16.mxu0 0
    %1240 = vmatmul.mubr.bf16.gmra.mrb[0].mxu0 %v1092
    %v1241 = vpop.f32.mrb[0].mxu0
    %v1242 = vadd.f32 0.0, %v1241
    %v1243 = vpop.f32.mrb[0].mxu0
    %v1244 = vpop.f32.mrb[0].mxu0
    %v1245 = vadd.f32 0.0, %v1244
    %v1246 = vpop.f32.mrb[0].mxu0
    %1247 = vmatprep.mubr.bf16.mxu0 0
    %1248 = vmatmul.mubr.bf16.gmra.mrb[0].mxu0 %v1095
    %v1249 = vpop.f32.mrb[0].mxu0
    %v1250 = vadd.f32 0.0, %v1249
    %v1251 = vpop.f32.mrb[0].mxu0
    %v1252 = vpop.f32.mrb[0].mxu0
    %v1253 = vadd.f32 0.0, %v1252
    %v1254 = vpop.f32.mrb[0].mxu0
    %1255 = vmatprep.mubr.bf16.mxu0 0
    %1256 = vmatmul.mubr.bf16.gmra.mrb[0].mxu0 %v1098
    %v1257 = vpop.f32.mrb[0].mxu0
    %v1258 = vadd.f32 0.0, %v1257
    %v1259 = vpop.f32.mrb[0].mxu0
    %v1260 = vpop.f32.mrb[0].mxu0
    %v1261 = vadd.f32 0.0, %v1260
    %v1262 = vpop.f32.mrb[0].mxu0
    %1263 = vmatprep.mubr.bf16.mxu0 0
    %1264 = vmatmul.mubr.bf16.gmra.mrb[0].mxu0 %v1101
    %v1265 = vpop.f32.mrb[0].mxu0
    %v1266 = vadd.f32 0.0, %v1265
    %v1267 = vpop.f32.mrb[0].mxu0
    %v1268 = vpop.f32.mrb[0].mxu0
    %v1269 = vadd.f32 0.0, %v1268
    %v1270 = vpop.f32.mrb[0].mxu0
    %1271 = vmatprep.mubr.bf16.mxu0 0
    %1272 = vmatmul.mubr.bf16.gmra.mrb[0].mxu0 %v1104
    %v1273 = vpop.f32.mrb[0].mxu0
    %v1274 = vadd.f32 0.0, %v1273
    %v1275 = vpop.f32.mrb[0].mxu0
    %v1276 = vpop.f32.mrb[0].mxu0
    %v1277 = vadd.f32 0.0, %v1276
    %v1278 = vpop.f32.mrb[0].mxu0
    %1279 = vmatprep.mubr.bf16.mxu0 0
    %1280 = vmatmul.mubr.bf16.gmra.mrb[0].mxu0 %v1107
    %v1281 = vpop.f32.mrb[0].mxu0
    %v1282 = vadd.f32 0.0, %v1281
    %v1283 = vpop.f32.mrb[0].mxu0
    %v1284 = vpop.f32.mrb[0].mxu0
    %v1285 = vadd.f32 0.0, %v1284
    %v1286 = vpop.f32.mrb[0].mxu0
    %1287 = vmatprep.mubr.bf16.mxu0 0
    %1288 = vmatmul.mubr.bf16.gmra.mrb[0].mxu0 %v1110
    %v1289 = vpop.f32.mrb[0].mxu0
    %v1290 = vadd.f32 0.0, %v1289
    %v1291 = vpop.f32.mrb[0].mxu0
    %v1292 = vpop.f32.mrb[0].mxu0
    %v1293 = vadd.f32 0.0, %v1292
    %v1294 = vpop.f32.mrb[0].mxu0
    %1295 = vmatprep.mubr.bf16.mxu0 0
    %1296 = vmatmul.mubr.bf16.gmra.mrb[0].mxu0 %v1113
    %v1297 = vpop.f32.mrb[0].mxu0
    %v1298 = vadd.f32 0.0, %v1297
    %v1299 = vpop.f32.mrb[0].mxu0
    %v1300 = vpop.f32.mrb[0].mxu0
    %v1301 = vadd.f32 0.0, %v1300
    %v1302 = vpop.f32.mrb[0].mxu0
    %1303 = vmatprep.mubr.bf16.mxu0 0
    %1304 = vmatmul.mubr.bf16.gmra.mrb[0].mxu0 %v1116
    %v1305 = vpop.f32.mrb[0].mxu0
    %v1306 = vadd.f32 0.0, %v1305
    %v1307 = vpop.f32.mrb[0].mxu0
    %v1308 = vpop.f32.mrb[0].mxu0
    %v1309 = vadd.f32 0.0, %v1308
    %v1310 = vpop.f32.mrb[0].mxu0
    %1311 = vmatprep.mubr.bf16.mxu0 0
    %1312 = vmatmul.mubr.bf16.gmra.mrb[0].mxu0 %v1119
    %v1313 = vpop.f32.mrb[0].mxu0
    %v1314 = vadd.f32 0.0, %v1313
    %v1315 = vpop.f32.mrb[0].mxu0
    %v1316 = vpop.f32.mrb[0].mxu0
    %v1317 = vadd.f32 0.0, %v1316
    %v1318 = vpop.f32.mrb[0].mxu0
    %1319 = vmatprep.mubr.bf16.mxu0 0
    %1320 = vmatmul.mubr.bf16.gmra.mrb[0].mxu0 %v1122
    %v1321 = vpop.f32.mrb[0].mxu0
    %v1322 = vadd.f32 0.0, %v1321
    %v1323 = vpop.f32.mrb[0].mxu0
    %v1324 = vpop.f32.mrb[0].mxu0
    %v1325 = vadd.f32 0.0, %v1324
    %v1326 = vpop.f32.mrb[0].mxu0
    %1327 = vmatprep.mubr.bf16.mxu0 0
    %1328 = vmatmul.mubr.bf16.gmra.mrb[0].mxu0 %v1125
    %v1329 = vpop.f32.mrb[0].mxu0
    %v1330 = vadd.f32 0.0, %v1329
    %v1331 = vpop.f32.mrb[0].mxu0
    %v1332 = vpop.f32.mrb[0].mxu0
    %v1333 = vadd.f32 0.0, %v1332
    %v1334 = vpop.f32.mrb[0].mxu0
    %1335 = vmatprep.mubr.bf16.mxu0 0
    %1336 = vmatmul.mubr.bf16.gmra.mrb[0].mxu0 %v1128
    %v1337 = vpop.f32.mrb[0].mxu0
    %v1338 = vadd.f32 0.0, %v1337
    %v1339 = vpop.f32.mrb[0].mxu0
    %v1340 = vpop.f32.mrb[0].mxu0
    %v1341 = vadd.f32 0.0, %v1340
    %v1342 = vpop.f32.mrb[0].mxu0
    %1343 = vmatprep.mubr.bf16.mxu0 0
    %1344 = vmatmul.mubr.bf16.gmra.mrb[0].mxu0 %v1131
    %v1345 = vpop.f32.mrb[0].mxu0
    %v1346 = vadd.f32 0.0, %v1345
    %v1347 = vpop.f32.mrb[0].mxu0
    %v1348 = vpop.f32.mrb[0].mxu0
    %v1349 = vadd.f32 0.0, %v1348
    %v1350 = vpop.f32.mrb[0].mxu0
    %1351 = vmatprep.mubr.bf16.mxu0 0
    %1352 = vmatmul.mubr.bf16.gmra.mrb[0].mxu0 %v1134
    %v1353 = vpop.f32.mrb[0].mxu0
    %v1354 = vadd.f32 0.0, %v1353
    %v1355 = vpop.f32.mrb[0].mxu0
    %v1356 = vpop.f32.mrb[0].mxu0
    %v1357 = vadd.f32 0.0, %v1356
    %v1358 = vpop.f32.mrb[0].mxu0
    %1359 = vmatprep.mubr.bf16.mxu0 0
    %1360 = vmatmul.mubr.bf16.gmra.mrb[0].mxu0 %v1137
    %v1361 = vpop.f32.mrb[0].mxu0
    %v1362 = vadd.f32 0.0, %v1361
    %v1363 = vpop.f32.mrb[0].mxu0
    %v1364 = vpop.f32.mrb[0].mxu0
    %v1365 = vadd.f32 0.0, %v1364
    %v1366 = vpop.f32.mrb[0].mxu0
    %1367 = vdwg.mxu0
    %v1400 = vcombine.high %v1178, %v1178
    %v1401 = vcombine.high %v1181, %v1181
    %v1402 = vcombine.high %v1189, %v1189
    %v1403 = vcombine.high %v1194, %v1194
    %v1404 = vcombine.high %v1202, %v1202
    %v1405 = vcombine.high %v1205, %v1205
    %v1406 = vcombine.high %v1213, %v1213
    %v1407 = vcombine.high %v1218, %v1218
    %v1408 = vcombine.high %v1226, %v1226
    %v1409 = vcombine.high %v1229, %v1229
    %v1410 = vcombine.high %v1237, %v1237
    %v1411 = vcombine.high %v1242, %v1242
    %v1412 = vcombine.high %v1250, %v1250
    %v1413 = vcombine.high %v1253, %v1253
    %v1414 = vcombine.high %v1261, %v1261
    %v1415 = vcombine.high %v1266, %v1266
    %v1416 = vcombine.high %v1274, %v1274
    %v1417 = vcombine.high %v1277, %v1277
    %v1418 = vcombine.high %v1285, %v1285
    %v1419 = vcombine.high %v1290, %v1290
    %v1420 = vcombine.high %v1298, %v1298
    %v1421 = vcombine.high %v1301, %v1301
    %v1422 = vcombine.high %v1309, %v1309
    %v1423 = vcombine.high %v1314, %v1314
    %v1424 = vcombine.high %v1322, %v1322
    %v1425 = vcombine.high %v1325, %v1325
    %v1426 = vcombine.high %v1333, %v1333
    %v1427 = vcombine.high %v1338, %v1338
    %v1428 = vcombine.high %v1346, %v1346
    %v1429 = vcombine.high %v1349, %v1349
    %v1430 = vcombine.high %v1357, %v1357
    %v1431 = vcombine.high %v1362, %v1362
    %v1464 = vadd.f32 %v1178, 0.0
    %v1465 = vadd.f32 %v1400, 0.0
    %v1466 = vadd.f32 %v1401, 0.0
    %v1467 = vadd.f32 %v1186, 0.0
    %v1468 = vadd.f32 %v1189, 0.0
    %v1469 = vadd.f32 %v1402, 0.0
    %v1470 = vadd.f32 %v1403, 0.0
    %v1471 = vadd.f32 %v1197, 0.0
    %v1472 = vadd.f32 %v1202, 0.0
    %v1473 = vadd.f32 %v1404, 0.0
    %v1474 = vadd.f32 %v1405, 0.0
    %v1475 = vadd.f32 %v1210, 0.0
    %v1476 = vadd.f32 %v1213, 0.0
    %v1477 = vadd.f32 %v1406, 0.0
    %v1478 = vadd.f32 %v1407, 0.0
    %v1479 = vadd.f32 %v1221, 0.0
    %v1480 = vadd.f32 %v1226, 0.0
    %v1481 = vadd.f32 %v1408, 0.0
    %v1482 = vadd.f32 %v1409, 0.0
    %v1483 = vadd.f32 %v1234, 0.0
    %v1484 = vadd.f32 %v1237, 0.0
    %v1485 = vadd.f32 %v1410, 0.0
    %v1486 = vadd.f32 %v1411, 0.0
    %v1487 = vadd.f32 %v1245, 0.0
    %v1488 = vadd.f32 %v1250, 0.0
    %v1489 = vadd.f32 %v1412, 0.0
    %v1490 = vadd.f32 %v1413, 0.0
    %v1491 = vadd.f32 %v1258, 0.0
    %v1492 = vadd.f32 %v1261, 0.0
    %v1493 = vadd.f32 %v1414, 0.0
    %v1494 = vadd.f32 %v1415, 0.0
    %v1495 = vadd.f32 %v1269, 0.0
    %v1496 = vadd.f32 %v1274, 0.0
    %v1497 = vadd.f32 %v1416, 0.0
    %v1498 = vadd.f32 %v1417, 0.0
    %v1499 = vadd.f32 %v1282, 0.0
    %v1500 = vadd.f32 %v1285, 0.0
    %v1501 = vadd.f32 %v1418, 0.0
    %v1502 = vadd.f32 %v1419, 0.0
    %v1503 = vadd.f32 %v1293, 0.0
    %v1504 = vadd.f32 %v1298, 0.0
    %v1505 = vadd.f32 %v1420, 0.0
    %v1506 = vadd.f32 %v1421, 0.0
    %v1507 = vadd.f32 %v1306, 0.0
    %v1508 = vadd.f32 %v1309, 0.0
    %v1509 = vadd.f32 %v1422, 0.0
    %v1510 = vadd.f32 %v1423, 0.0
    %v1511 = vadd.f32 %v1317, 0.0
    %v1512 = vadd.f32 %v1322, 0.0
    %v1513 = vadd.f32 %v1424, 0.0
    %v1514 = vadd.f32 %v1425, 0.0
    %v1515 = vadd.f32 %v1330, 0.0
    %v1516 = vadd.f32 %v1333, 0.0
    %v1517 = vadd.f32 %v1426, 0.0
    %v1518 = vadd.f32 %v1427, 0.0
    %v1519 = vadd.f32 %v1341, 0.0
    %v1520 = vadd.f32 %v1346, 0.0
    %v1521 = vadd.f32 %v1428, 0.0
    %v1522 = vadd.f32 %v1429, 0.0
    %v1523 = vadd.f32 %v1354, 0.0
    %v1524 = vadd.f32 %v1357, 0.0
    %v1525 = vadd.f32 %v1430, 0.0
    %v1526 = vadd.f32 %v1431, 0.0
    %v1527 = vadd.f32 %v1365, 0.0
    %v1528 = vld [vmem:[%s1 + $0x18] sm:$0xe]
    %v1529 = vld [vmem:[%s1 + $0x1c] sm:$0xf]
    %v1530 = vld [vmem:[%s1 + $0x20] sm:$0xf]
    %v1531 = vld [vmem:[%s1 + $0x24] sm:$0xf]
    %v1532 = vld [vmem:[%s1 + $0x28] sm:$0xf]
    %v1533 = vld [vmem:[%s1 + $0x2c] sm:$0xf]
    %v1534 = vld [vmem:[%s1 + $0x30] sm:$0x3]
    %v1542 = vunpack.c.l.b16 %v1528
    %v1543 = vunpack.c.l.b16 %v1529
    %v1544 = vunpack.c.l.b16 %v1530
    %v1545 = vunpack.c.l.b16 %v1531
    %v1546 = vunpack.c.l.b16 %v1532
    %v1547 = vunpack.c.l.b16 %v1533
    %v1548 = vunpack.c.l.b16 %v1534
    %v1549 = vpack.c.b16 %v1543, %v1542
    %v1550 = vpack.c.b16 %v1545, %v1544
    %v1551 = vpack.c.b16 %v1547, %v1546
    %v1552 = vpack.c.b16 %v1548, %v1548
    %vm1553 = vcmask 1046528
    %v1554 = vrot.slane %v1549, 1
    %v1555 = vrot.slane %v1550, 1
    %v1556 = vsel %vm1553, %v1554, %v1555
    %v1557 = vrot.slane %v1551, 1
    %v1558 = vsel %vm1553, %v1555, %v1557
    %v1559 = vrot.slane %v1552, 1
    %v1560 = vsel %vm1553, %v1557, %v1559
    %v1565 = vsel %vm1139, %v1559, 0
    %1567 = vmatprep.subr.bf16.mxu0 0
    %1568 = vmatpush1.bf16.msra.mxu0 %v1556
    %1569 = vmatprep.subr.bf16.mxu0 0
    %1570 = vmatpush1.bf16.msra.mxu0 %v1558
    %1571 = vmatprep.subr.bf16.mxu0 0
    %1572 = vmatpush1.bf16.msra.mxu0 %v1560
    %1573 = vmatprep.subr.bf16.mxu0 0
    %1574 = vmatpush1.bf16.msra.mxu0 %v1565
    %1575 = vmatprep.subr.bf16.mxu0 0
    %1576 = vmatpush1.bf16.msra.mxu0 0
    %1577 = vmatprep.subr.bf16.mxu0 0
    %1578 = vmatpush1.bf16.msra.mxu0 0
    %1579 = vmatprep.subr.bf16.mxu0 0
    %1580 = vmatpush1.bf16.msra.mxu0 0
    %1581 = vmatprep.subr.bf16.mxu0 0
    %1582 = vmatpush1.bf16.msra.mxu0 0
    %1583 = vmatprep.subr.bf16.mxu0 0
    %1584 = vmatpush1.bf16.msra.mxu0 0
    %1585 = vmatprep.subr.bf16.mxu0 0
    %1586 = vmatpush1.bf16.msra.mxu0 0
    %1587 = vmatprep.subr.bf16.mxu0 0
    %1588 = vmatpush1.bf16.msra.mxu0 0
    %1589 = vmatprep.subr.bf16.mxu0 0
    %1590 = vmatpush1.bf16.msra.mxu0 0
    %1591 = vmatprep.subr.bf16.mxu0 0
    %1592 = vmatpush1.bf16.msra.mxu0 0
    %1593 = vmatprep.subr.bf16.mxu0 0
    %1594 = vmatpush1.bf16.msra.mxu0 0
    %1595 = vmatprep.subr.bf16.mxu0 0
    %1596 = vmatpush1.bf16.msra.mxu0 0
    %1597 = vmatprep.subr.bf16.mxu0 0
    %1598 = vmatpush1.bf16.msra.mxu0 0
    %1599 = vmatprep.mubr.bf16.mxu0 0
    %1600 = vmatmul.mubr.bf16.gmra.mrb[0].mxu0 %v1068
    %v1601 = vpop.f32.mrb[0].mxu0
    %v1602 = vadd.f32 0.0, %v1601
    %v1603 = vpop.f32.mrb[0].mxu0
    %v1604 = vpop.f32.mrb[0].mxu0
    %v1605 = vadd.f32 0.0, %v1604
    %v1606 = vpop.f32.mrb[0].mxu0
    %1607 = vmatprep.mubr.bf16.mxu0 0
    %1608 = vmatmul.mubr.bf16.gmra.mrb[0].mxu0 %v1071
    %v1609 = vpop.f32.mrb[0].mxu0
    %v1610 = vadd.f32 0.0, %v1609
    %v1611 = vpop.f32.mrb[0].mxu0
    %v1612 = vpop.f32.mrb[0].mxu0
    %v1613 = vadd.f32 0.0, %v1612
    %v1614 = vpop.f32.mrb[0].mxu0
    %1615 = vmatprep.mubr.bf16.mxu0 0
    %1616 = vmatmul.mubr.bf16.gmra.mrb[0].mxu0 %v1074
    %v1617 = vpop.f32.mrb[0].mxu0
    %v1618 = vadd.f32 0.0, %v1617
    %v1619 = vpop.f32.mrb[0].mxu0
    %v1620 = vpop.f32.mrb[0].mxu0
    %v1621 = vadd.f32 0.0, %v1620
    %v1622 = vpop.f32.mrb[0].mxu0
    %1623 = vmatprep.mubr.bf16.mxu0 0
    %1624 = vmatmul.mubr.bf16.gmra.mrb[0].mxu0 %v1077
    %v1625 = vpop.f32.mrb[0].mxu0
    %v1626 = vadd.f32 0.0, %v1625
    %v1627 = vpop.f32.mrb[0].mxu0
    %v1628 = vpop.f32.mrb[0].mxu0
    %v1629 = vadd.f32 0.0, %v1628
    %v1630 = vpop.f32.mrb[0].mxu0
    %1631 = vmatprep.mubr.bf16.mxu0 0
    %1632 = vmatmul.mubr.bf16.gmra.mrb[0].mxu0 %v1080
    %v1633 = vpop.f32.mrb[0].mxu0
    %v1634 = vadd.f32 0.0, %v1633
    %v1635 = vpop.f32.mrb[0].mxu0
    %v1636 = vpop.f32.mrb[0].mxu0
    %v1637 = vadd.f32 0.0, %v1636
    %v1638 = vpop.f32.mrb[0].mxu0
    %1639 = vmatprep.mubr.bf16.mxu0 0
    %1640 = vmatmul.mubr.bf16.gmra.mrb[0].mxu0 %v1083
    %v1641 = vpop.f32.mrb[0].mxu0
    %v1642 = vadd.f32 0.0, %v1641
    %v1643 = vpop.f32.mrb[0].mxu0
    %v1644 = vpop.f32.mrb[0].mxu0
    %v1645 = vadd.f32 0.0, %v1644
    %v1646 = vpop.f32.mrb[0].mxu0
    %1647 = vmatprep.mubr.bf16.mxu0 0
    %1648 = vmatmul.mubr.bf16.gmra.mrb[0].mxu0 %v1086
    %v1649 = vpop.f32.mrb[0].mxu0
    %v1650 = vadd.f32 0.0, %v1649
    %v1651 = vpop.f32.mrb[0].mxu0
    %v1652 = vpop.f32.mrb[0].mxu0
    %v1653 = vadd.f32 0.0, %v1652
    %v1654 = vpop.f32.mrb[0].mxu0
    %1655 = vmatprep.mubr.bf16.mxu0 0
    %1656 = vmatmul.mubr.bf16.gmra.mrb[0].mxu0 %v1089
    %v1657 = vpop.f32.mrb[0].mxu0
    %v1658 = vadd.f32 0.0, %v1657
    %v1659 = vpop.f32.mrb[0].mxu0
    %v1660 = vpop.f32.mrb[0].mxu0
    %v1661 = vadd.f32 0.0, %v1660
    %v1662 = vpop.f32.mrb[0].mxu0
    %1663 = vmatprep.mubr.bf16.mxu0 0
    %1664 = vmatmul.mubr.bf16.gmra.mrb[0].mxu0 %v1092
    %v1665 = vpop.f32.mrb[0].mxu0
    %v1666 = vadd.f32 0.0, %v1665
    %v1667 = vpop.f32.mrb[0].mxu0
    %v1668 = vpop.f32.mrb[0].mxu0
    %v1669 = vadd.f32 0.0, %v1668
    %v1670 = vpop.f32.mrb[0].mxu0
    %1671 = vmatprep.mubr.bf16.mxu0 0
    %1672 = vmatmul.mubr.bf16.gmra.mrb[0].mxu0 %v1095
    %v1673 = vpop.f32.mrb[0].mxu0
    %v1674 = vadd.f32 0.0, %v1673
    %v1675 = vpop.f32.mrb[0].mxu0
    %v1676 = vpop.f32.mrb[0].mxu0
    %v1677 = vadd.f32 0.0, %v1676
    %v1678 = vpop.f32.mrb[0].mxu0
    %1679 = vmatprep.mubr.bf16.mxu0 0
    %1680 = vmatmul.mubr.bf16.gmra.mrb[0].mxu0 %v1098
    %v1681 = vpop.f32.mrb[0].mxu0
    %v1682 = vadd.f32 0.0, %v1681
    %v1683 = vpop.f32.mrb[0].mxu0
    %v1684 = vpop.f32.mrb[0].mxu0
    %v1685 = vadd.f32 0.0, %v1684
    %v1686 = vpop.f32.mrb[0].mxu0
    %1687 = vmatprep.mubr.bf16.mxu0 0
    %1688 = vmatmul.mubr.bf16.gmra.mrb[0].mxu0 %v1101
    %v1689 = vpop.f32.mrb[0].mxu0
    %v1690 = vadd.f32 0.0, %v1689
    %v1691 = vpop.f32.mrb[0].mxu0
    %v1692 = vpop.f32.mrb[0].mxu0
    %v1693 = vadd.f32 0.0, %v1692
    %v1694 = vpop.f32.mrb[0].mxu0
    %1695 = vmatprep.mubr.bf16.mxu0 0
    %1696 = vmatmul.mubr.bf16.gmra.mrb[0].mxu0 %v1104
    %v1697 = vpop.f32.mrb[0].mxu0
    %v1698 = vadd.f32 0.0, %v1697
    %v1699 = vpop.f32.mrb[0].mxu0
    %v1700 = vpop.f32.mrb[0].mxu0
    %v1701 = vadd.f32 0.0, %v1700
    %v1702 = vpop.f32.mrb[0].mxu0
    %1703 = vmatprep.mubr.bf16.mxu0 0
    %1704 = vmatmul.mubr.bf16.gmra.mrb[0].mxu0 %v1107
    %v1705 = vpop.f32.mrb[0].mxu0
    %v1706 = vadd.f32 0.0, %v1705
    %v1707 = vpop.f32.mrb[0].mxu0
    %v1708 = vpop.f32.mrb[0].mxu0
    %v1709 = vadd.f32 0.0, %v1708
    %v1710 = vpop.f32.mrb[0].mxu0
    %1711 = vmatprep.mubr.bf16.mxu0 0
    %1712 = vmatmul.mubr.bf16.gmra.mrb[0].mxu0 %v1110
    %v1713 = vpop.f32.mrb[0].mxu0
    %v1714 = vadd.f32 0.0, %v1713
    %v1715 = vpop.f32.mrb[0].mxu0
    %v1716 = vpop.f32.mrb[0].mxu0
    %v1717 = vadd.f32 0.0, %v1716
    %v1718 = vpop.f32.mrb[0].mxu0
    %1719 = vmatprep.mubr.bf16.mxu0 0
    %1720 = vmatmul.mubr.bf16.gmra.mrb[0].mxu0 %v1113
    %v1721 = vpop.f32.mrb[0].mxu0
    %v1722 = vadd.f32 0.0, %v1721
    %v1723 = vpop.f32.mrb[0].mxu0
    %v1724 = vpop.f32.mrb[0].mxu0
    %v1725 = vadd.f32 0.0, %v1724
    %v1726 = vpop.f32.mrb[0].mxu0
    %1727 = vmatprep.mubr.bf16.mxu0 0
    %1728 = vmatmul.mubr.bf16.gmra.mrb[0].mxu0 %v1116
    %v1729 = vpop.f32.mrb[0].mxu0
    %v1730 = vadd.f32 0.0, %v1729
    %v1731 = vpop.f32.mrb[0].mxu0
    %v1732 = vpop.f32.mrb[0].mxu0
    %v1733 = vadd.f32 0.0, %v1732
    %v1734 = vpop.f32.mrb[0].mxu0
    %1735 = vmatprep.mubr.bf16.mxu0 0
    %1736 = vmatmul.mubr.bf16.gmra.mrb[0].mxu0 %v1119
    %v1737 = vpop.f32.mrb[0].mxu0
    %v1738 = vadd.f32 0.0, %v1737
    %v1739 = vpop.f32.mrb[0].mxu0
    %v1740 = vpop.f32.mrb[0].mxu0
    %v1741 = vadd.f32 0.0, %v1740
    %v1742 = vpop.f32.mrb[0].mxu0
    %1743 = vmatprep.mubr.bf16.mxu0 0
    %1744 = vmatmul.mubr.bf16.gmra.mrb[0].mxu0 %v1122
    %v1745 = vpop.f32.mrb[0].mxu0
    %v1746 = vadd.f32 0.0, %v1745
    %v1747 = vpop.f32.mrb[0].mxu0
    %v1748 = vpop.f32.mrb[0].mxu0
    %v1749 = vadd.f32 0.0, %v1748
    %v1750 = vpop.f32.mrb[0].mxu0
    %1751 = vmatprep.mubr.bf16.mxu0 0
    %1752 = vmatmul.mubr.bf16.gmra.mrb[0].mxu0 %v1125
    %v1753 = vpop.f32.mrb[0].mxu0
    %v1754 = vadd.f32 0.0, %v1753
    %v1755 = vpop.f32.mrb[0].mxu0
    %v1756 = vpop.f32.mrb[0].mxu0
    %v1757 = vadd.f32 0.0, %v1756
    %v1758 = vpop.f32.mrb[0].mxu0
    %1759 = vmatprep.mubr.bf16.mxu0 0
    %1760 = vmatmul.mubr.bf16.gmra.mrb[0].mxu0 %v1128
    %v1761 = vpop.f32.mrb[0].mxu0
    %v1762 = vadd.f32 0.0, %v1761
    %v1763 = vpop.f32.mrb[0].mxu0
    %v1764 = vpop.f32.mrb[0].mxu0
    %v1765 = vadd.f32 0.0, %v1764
    %v1766 = vpop.f32.mrb[0].mxu0
    %1767 = vmatprep.mubr.bf16.mxu0 0
    %1768 = vmatmul.mubr.bf16.gmra.mrb[0].mxu0 %v1131
    %v1769 = vpop.f32.mrb[0].mxu0
    %v1770 = vadd.f32 0.0, %v1769
    %v1771 = vpop.f32.mrb[0].mxu0
    %v1772 = vpop.f32.mrb[0].mxu0
    %v1773 = vadd.f32 0.0, %v1772
    %v1774 = vpop.f32.mrb[0].mxu0
    %1775 = vmatprep.mubr.bf16.mxu0 0
    %1776 = vmatmul.mubr.bf16.gmra.mrb[0].mxu0 %v1134
    %v1777 = vpop.f32.mrb[0].mxu0
    %v1778 = vadd.f32 0.0, %v1777
    %v1779 = vpop.f32.mrb[0].mxu0
    %v1780 = vpop.f32.mrb[0].mxu0
    %v1781 = vadd.f32 0.0, %v1780
    %v1782 = vpop.f32.mrb[0].mxu0
    %1783 = vmatprep.mubr.bf16.mxu0 0
    %1784 = vmatmul.mubr.bf16.gmra.mrb[0].mxu0 %v1137
    %v1785 = vpop.f32.mrb[0].mxu0
    %v1786 = vadd.f32 0.0, %v1785
    %v1787 = vpop.f32.mrb[0].mxu0
    %v1788 = vpop.f32.mrb[0].mxu0
    %v1789 = vadd.f32 0.0, %v1788
    %v1790 = vpop.f32.mrb[0].mxu0
    %1791 = vdwg.mxu0
    %v1840 = vcombine.high %v1602, %v1602
    %v1841 = vcombine.high %v1605, %v1605
    %v1842 = vcombine.high %v1610, %v1610
    %v1843 = vcombine.high %v1613, %v1613
    %v1844 = vcombine.high %v1618, %v1618
    %v1845 = vcombine.high %v1621, %v1621
    %v1846 = vcombine.high %v1626, %v1626
    %v1847 = vcombine.high %v1629, %v1629
    %v1848 = vcombine.high %v1634, %v1634
    %v1849 = vcombine.high %v1637, %v1637
    %v1850 = vcombine.high %v1642, %v1642
    %v1851 = vcombine.high %v1645, %v1645
    %v1852 = vcombine.high %v1650, %v1650
    %v1853 = vcombine.high %v1653, %v1653
    %v1854 = vcombine.high %v1658, %v1658
    %v1855 = vcombine.high %v1661, %v1661
    %v1856 = vcombine.high %v1666, %v1666
    %v1857 = vcombine.high %v1669, %v1669
    %v1858 = vcombine.high %v1674, %v1674
    %v1859 = vcombine.high %v1677, %v1677
    %v1860 = vcombine.high %v1682, %v1682
    %v1861 = vcombine.high %v1685, %v1685
    %v1862 = vcombine.high %v1690, %v1690
    %v1863 = vcombine.high %v1693, %v1693
    %v1864 = vcombine.high %v1698, %v1698
    %v1865 = vcombine.high %v1701, %v1701
    %v1866 = vcombine.high %v1706, %v1706
    %v1867 = vcombine.high %v1709, %v1709
    %v1868 = vcombine.high %v1714, %v1714
    %v1869 = vcombine.high %v1717, %v1717
    %v1870 = vcombine.high %v1722, %v1722
    %v1871 = vcombine.high %v1725, %v1725
    %v1872 = vcombine.high %v1730, %v1730
    %v1873 = vcombine.high %v1733, %v1733
    %v1874 = vcombine.high %v1738, %v1738
    %v1875 = vcombine.high %v1741, %v1741
    %v1876 = vcombine.high %v1746, %v1746
    %v1877 = vcombine.high %v1749, %v1749
    %v1878 = vcombine.high %v1754, %v1754
    %v1879 = vcombine.high %v1757, %v1757
    %v1880 = vcombine.high %v1762, %v1762
    %v1881 = vcombine.high %v1765, %v1765
    %v1882 = vcombine.high %v1770, %v1770
    %v1883 = vcombine.high %v1773, %v1773
    %v1884 = vcombine.high %v1778, %v1778
    %v1885 = vcombine.high %v1781, %v1781
    %v1886 = vcombine.high %v1786, %v1786
    %v1887 = vcombine.high %v1789, %v1789
    %vm1888 = vcmask 1042432
    %vm1889 = vcmask 1046532
    %vm1890 = vmor %vm1888, %vm1889
    %v1891 = vrot.slane %v1602, 5
    %v1892 = vrot.slane %v1891, 4
    %v1893 = vrot.slane %v1840, 5
    %v1894 = vsel %vm1890, %v1892, %v1893
    %v1895 = vrot.slane %v1893, 4
    %v1896 = vrot.slane %v1605, 5
    %v1897 = vsel %vm1890, %v1895, %v1896
    %v1898 = vrot.slane %v1841, 5
    %v1899 = vrot.slane %v1898, 4
    %v1900 = vrot.slane %v1610, 5
    %v1901 = vsel %vm1890, %v1899, %v1900
    %v1902 = vrot.slane %v1900, 4
    %v1903 = vrot.slane %v1842, 5
    %v1904 = vsel %vm1890, %v1902, %v1903
    %v1905 = vrot.slane %v1613, 5
    %v1906 = vrot.slane %v1905, 4
    %v1907 = vrot.slane %v1843, 5
    %v1908 = vsel %vm1890, %v1906, %v1907
    %v1909 = vrot.slane %v1907, 4
    %v1910 = vrot.slane %v1618, 5
    %v1911 = vsel %vm1890, %v1909, %v1910
    %v1912 = vrot.slane %v1844, 5
    %v1913 = vrot.slane %v1912, 4
    %v1914 = vrot.slane %v1621, 5
    %v1915 = vsel %vm1890, %v1913, %v1914
    %v1916 = vrot.slane %v1914, 4
    %v1917 = vrot.slane %v1845, 5
    %v1918 = vsel %vm1890, %v1916, %v1917
    %v1919 = vrot.slane %v1626, 5
    %v1920 = vrot.slane %v1919, 4
    %v1921 = vrot.slane %v1846, 5
    %v1922 = vsel %vm1890, %v1920, %v1921
    %v1923 = vrot.slane %v1921, 4
    %v1924 = vrot.slane %v1629, 5
    %v1925 = vsel %vm1890, %v1923, %v1924
    %v1926 = vrot.slane %v1847, 5
    %v1927 = vrot.slane %v1926, 4
    %v1928 = vrot.slane %v1634, 5
    %v1929 = vsel %vm1890, %v1927, %v1928
    %v1930 = vrot.slane %v1928, 4
    %v1931 = vrot.slane %v1848, 5
    %v1932 = vsel %vm1890, %v1930, %v1931
    %v1933 = vrot.slane %v1637, 5
    %v1934 = vrot.slane %v1933, 4
    %v1935 = vrot.slane %v1849, 5
    %v1936 = vsel %vm1890, %v1934, %v1935
    %v1937 = vrot.slane %v1935, 4
    %v1938 = vrot.slane %v1642, 5
    %v1939 = vsel %vm1890, %v1937, %v1938
    %v1940 = vrot.slane %v1850, 5
    %v1941 = vrot.slane %v1940, 4
    %v1942 = vrot.slane %v1645, 5
    %v1943 = vsel %vm1890, %v1941, %v1942
    %v1944 = vrot.slane %v1942, 4
    %v1945 = vrot.slane %v1851, 5
    %v1946 = vsel %vm1890, %v1944, %v1945
    %v1947 = vrot.slane %v1650, 5
    %v1948 = vrot.slane %v1947, 4
    %v1949 = vrot.slane %v1852, 5
    %v1950 = vsel %vm1890, %v1948, %v1949
    %v1951 = vrot.slane %v1949, 4
    %v1952 = vrot.slane %v1653, 5
    %v1953 = vsel %vm1890, %v1951, %v1952
    %v1954 = vrot.slane %v1853, 5
    %v1955 = vrot.slane %v1954, 4
    %v1956 = vrot.slane %v1658, 5
    %v1957 = vsel %vm1890, %v1955, %v1956
    %v1958 = vrot.slane %v1956, 4
    %v1959 = vrot.slane %v1854, 5
    %v1960 = vsel %vm1890, %v1958, %v1959
    %v1961 = vrot.slane %v1661, 5
    %v1962 = vrot.slane %v1961, 4
    %v1963 = vrot.slane %v1855, 5
    %v1964 = vsel %vm1890, %v1962, %v1963
    %v1965 = vrot.slane %v1963, 4
    %v1966 = vrot.slane %v1666, 5
    %v1967 = vsel %vm1890, %v1965, %v1966
    %v1968 = vrot.slane %v1856, 5
    %v1969 = vrot.slane %v1968, 4
    %v1970 = vrot.slane %v1669, 5
    %v1971 = vsel %vm1890, %v1969, %v1970
    %v1972 = vrot.slane %v1970, 4
    %v1973 = vrot.slane %v1857, 5
    %v1974 = vsel %vm1890, %v1972, %v1973
    %v1975 = vrot.slane %v1674, 5
    %v1976 = vrot.slane %v1975, 4
    %v1977 = vrot.slane %v1858, 5
    %v1978 = vsel %vm1890, %v1976, %v1977
    %v1979 = vrot.slane %v1977, 4
    %v1980 = vrot.slane %v1677, 5
    %v1981 = vsel %vm1890, %v1979, %v1980
    %v1982 = vrot.slane %v1859, 5
    %v1983 = vrot.slane %v1982, 4
    %v1984 = vrot.slane %v1682, 5
    %v1985 = vsel %vm1890, %v1983, %v1984
    %v1986 = vrot.slane %v1984, 4
    %v1987 = vrot.slane %v1860, 5
    %v1988 = vsel %vm1890, %v1986, %v1987
    %v1989 = vrot.slane %v1685, 5
    %v1990 = vrot.slane %v1989, 4
    %v1991 = vrot.slane %v1861, 5
    %v1992 = vsel %vm1890, %v1990, %v1991
    %v1993 = vrot.slane %v1991, 4
    %v1994 = vrot.slane %v1690, 5
    %v1995 = vsel %vm1890, %v1993, %v1994
    %v1996 = vrot.slane %v1862, 5
    %v1997 = vrot.slane %v1996, 4
    %v1998 = vrot.slane %v1693, 5
    %v1999 = vsel %vm1890, %v1997, %v1998
    %v2000 = vrot.slane %v1998, 4
    %v2001 = vrot.slane %v1863, 5
    %v2002 = vsel %vm1890, %v2000, %v2001
    %v2003 = vrot.slane %v1698, 5
    %v2004 = vrot.slane %v2003, 4
    %v2005 = vrot.slane %v1864, 5
    %v2006 = vsel %vm1890, %v2004, %v2005
    %v2007 = vrot.slane %v2005, 4
    %v2008 = vrot.slane %v1701, 5
    %v2009 = vsel %vm1890, %v2007, %v2008
    %v2010 = vrot.slane %v1865, 5
    %v2011 = vrot.slane %v2010, 4
    %v2012 = vrot.slane %v1706, 5
    %v2013 = vsel %vm1890, %v2011, %v2012
    %v2014 = vrot.slane %v2012, 4
    %v2015 = vrot.slane %v1866, 5
    %v2016 = vsel %vm1890, %v2014, %v2015
    %v2017 = vrot.slane %v1709, 5
    %v2018 = vrot.slane %v2017, 4
    %v2019 = vrot.slane %v1867, 5
    %v2020 = vsel %vm1890, %v2018, %v2019
    %v2021 = vrot.slane %v2019, 4
    %v2022 = vrot.slane %v1714, 5
    %v2023 = vsel %vm1890, %v2021, %v2022
    %v2024 = vrot.slane %v1868, 5
    %v2025 = vrot.slane %v2024, 4
    %v2026 = vrot.slane %v1717, 5
    %v2027 = vsel %vm1890, %v2025, %v2026
    %v2028 = vrot.slane %v2026, 4
    %v2029 = vrot.slane %v1869, 5
    %v2030 = vsel %vm1890, %v2028, %v2029
    %v2031 = vrot.slane %v1722, 5
    %v2032 = vrot.slane %v2031, 4
    %v2033 = vrot.slane %v1870, 5
    %v2034 = vsel %vm1890, %v2032, %v2033
    %v2035 = vrot.slane %v2033, 4
    %v2036 = vrot.slane %v1725, 5
    %v2037 = vsel %vm1890, %v2035, %v2036
    %v2038 = vrot.slane %v1871, 5
    %v2039 = vrot.slane %v2038, 4
    %v2040 = vrot.slane %v1730, 5
    %v2041 = vsel %vm1890, %v2039, %v2040
    %v2042 = vrot.slane %v2040, 4
    %v2043 = vrot.slane %v1872, 5
    %v2044 = vsel %vm1890, %v2042, %v2043
    %v2045 = vrot.slane %v1733, 5
    %v2046 = vrot.slane %v2045, 4
    %v2047 = vrot.slane %v1873, 5
    %v2048 = vsel %vm1890, %v2046, %v2047
    %v2049 = vrot.slane %v2047, 4
    %v2050 = vrot.slane %v1738, 5
    %v2051 = vsel %vm1890, %v2049, %v2050
    %v2052 = vrot.slane %v1874, 5
    %v2053 = vrot.slane %v2052, 4
    %v2054 = vrot.slane %v1741, 5
    %v2055 = vsel %vm1890, %v2053, %v2054
    %v2056 = vrot.slane %v2054, 4
    %v2057 = vrot.slane %v1875, 5
    %v2058 = vsel %vm1890, %v2056, %v2057
    %v2059 = vrot.slane %v1746, 5
    %v2060 = vrot.slane %v2059, 4
    %v2061 = vrot.slane %v1876, 5
    %v2062 = vsel %vm1890, %v2060, %v2061
    %v2063 = vrot.slane %v2061, 4
    %v2064 = vrot.slane %v1749, 5
    %v2065 = vsel %vm1890, %v2063, %v2064
    %v2066 = vrot.slane %v1877, 5
    %v2067 = vrot.slane %v2066, 4
    %v2068 = vrot.slane %v1754, 5
    %v2069 = vsel %vm1890, %v2067, %v2068
    %v2070 = vrot.slane %v2068, 4
    %v2071 = vrot.slane %v1878, 5
    %v2072 = vsel %vm1890, %v2070, %v2071
    %v2073 = vrot.slane %v1757, 5
    %v2074 = vrot.slane %v2073, 4
    %v2075 = vrot.slane %v1879, 5
    %v2076 = vsel %vm1890, %v2074, %v2075
    %v2077 = vrot.slane %v2075, 4
    %v2078 = vrot.slane %v1762, 5
    %v2079 = vsel %vm1890, %v2077, %v2078
    %v2080 = vrot.slane %v1880, 5
    %v2081 = vrot.slane %v2080, 4
    %v2082 = vrot.slane %v1765, 5
    %v2083 = vsel %vm1890, %v2081, %v2082
    %v2084 = vrot.slane %v2082, 4
    %v2085 = vrot.slane %v1881, 5
    %v2086 = vsel %vm1890, %v2084, %v2085
    %v2087 = vrot.slane %v1770, 5
    %v2088 = vrot.slane %v2087, 4
    %v2089 = vrot.slane %v1882, 5
    %v2090 = vsel %vm1890, %v2088, %v2089
    %v2091 = vrot.slane %v2089, 4
    %v2092 = vrot.slane %v1773, 5
    %v2093 = vsel %vm1890, %v2091, %v2092
    %v2094 = vrot.slane %v1883, 5
    %v2095 = vrot.slane %v2094, 4
    %v2096 = vrot.slane %v1778, 5
    %v2097 = vsel %vm1890, %v2095, %v2096
    %v2098 = vrot.slane %v2096, 4
    %v2099 = vrot.slane %v1884, 5
    %v2100 = vsel %vm1890, %v2098, %v2099
    %v2101 = vrot.slane %v1781, 5
    %v2102 = vrot.slane %v2101, 4
    %v2103 = vrot.slane %v1885, 5
    %v2104 = vsel %vm1890, %v2102, %v2103
    %v2105 = vrot.slane %v2103, 4
    %v2106 = vrot.slane %v1786, 5
    %v2107 = vsel %vm1890, %v2105, %v2106
    %v2108 = vrot.slane %v1886, 5
    %v2109 = vrot.slane %v2108, 4
    %v2110 = vrot.slane %v1789, 5
    %v2111 = vsel %vm1890, %v2109, %v2110
    %v2112 = vrot.slane %v2110, 4
    %v2113 = vrot.slane %v1887, 5
    %v2114 = vsel %vm1890, %v2112, %v2113
    %v2179 = vadd.f32 %v1464, %v1894
    %v2180 = vadd.f32 %v1465, %v1897
    %v2181 = vadd.f32 %v1466, %v1901
    %v2182 = vadd.f32 %v1467, %v1904
    %v2183 = vadd.f32 %v1468, %v1908
    %v2184 = vadd.f32 %v1469, %v1911
    %v2185 = vadd.f32 %v1470, %v1915
    %v2186 = vadd.f32 %v1471, %v1918
    %v2187 = vadd.f32 %v1472, %v1922
    %v2188 = vadd.f32 %v1473, %v1925
    %v2189 = vadd.f32 %v1474, %v1929
    %v2190 = vadd.f32 %v1475, %v1932
    %v2191 = vadd.f32 %v1476, %v1936
    %v2192 = vadd.f32 %v1477, %v1939
    %v2193 = vadd.f32 %v1478, %v1943
    %v2194 = vadd.f32 %v1479, %v1946
    %v2195 = vadd.f32 %v1480, %v1950
    %v2196 = vadd.f32 %v1481, %v1953
    %v2197 = vadd.f32 %v1482, %v1957
    %v2198 = vadd.f32 %v1483, %v1960
    %v2199 = vadd.f32 %v1484, %v1964
    %v2200 = vadd.f32 %v1485, %v1967
    %v2201 = vadd.f32 %v1486, %v1971
    %v2202 = vadd.f32 %v1487, %v1974
    %v2203 = vadd.f32 %v1488, %v1978
    %v2204 = vadd.f32 %v1489, %v1981
    %v2205 = vadd.f32 %v1490, %v1985
    %v2206 = vadd.f32 %v1491, %v1988
    %v2207 = vadd.f32 %v1492, %v1992
    %v2208 = vadd.f32 %v1493, %v1995
    %v2209 = vadd.f32 %v1494, %v1999
    %v2210 = vadd.f32 %v1495, %v2002
    %v2211 = vadd.f32 %v1496, %v2006
    %v2212 = vadd.f32 %v1497, %v2009
    %v2213 = vadd.f32 %v1498, %v2013
    %v2214 = vadd.f32 %v1499, %v2016
    %v2215 = vadd.f32 %v1500, %v2020
    %v2216 = vadd.f32 %v1501, %v2023
    %v2217 = vadd.f32 %v1502, %v2027
    %v2218 = vadd.f32 %v1503, %v2030
    %v2219 = vadd.f32 %v1504, %v2034
    %v2220 = vadd.f32 %v1505, %v2037
    %v2221 = vadd.f32 %v1506, %v2041
    %v2222 = vadd.f32 %v1507, %v2044
    %v2223 = vadd.f32 %v1508, %v2048
    %v2224 = vadd.f32 %v1509, %v2051
    %v2225 = vadd.f32 %v1510, %v2055
    %v2226 = vadd.f32 %v1511, %v2058
    %v2227 = vadd.f32 %v1512, %v2062
    %v2228 = vadd.f32 %v1513, %v2065
    %v2229 = vadd.f32 %v1514, %v2069
    %v2230 = vadd.f32 %v1515, %v2072
    %v2231 = vadd.f32 %v1516, %v2076
    %v2232 = vadd.f32 %v1517, %v2079
    %v2233 = vadd.f32 %v1518, %v2083
    %v2234 = vadd.f32 %v1519, %v2086
    %v2235 = vadd.f32 %v1520, %v2090
    %v2236 = vadd.f32 %v1521, %v2093
    %v2237 = vadd.f32 %v1522, %v2097
    %v2238 = vadd.f32 %v1523, %v2100
    %v2239 = vadd.f32 %v1524, %v2104
    %v2240 = vadd.f32 %v1525, %v2107
    %v2241 = vadd.f32 %v1526, %v2111
    %v2242 = vadd.f32 %v1527, %v2114
    %v2243 = vld [vmem:[%s1 + $0x30] sm:$0xc]
    %v2244 = vld [vmem:[%s1 + $0x34] sm:$0xf]
    %v2245 = vld [vmem:[%s1 + $0x38] sm:$0xf]
    %v2246 = vld [vmem:[%s1 + $0x3c] sm:$0xf]
    %v2247 = vld [vmem:[%s1 + $0x40] sm:$0xf]
    %v2248 = vld [vmem:[%s1 + $0x44] sm:$0xf]
    %v2249 = vld [vmem:[%s1 + $0x48] sm:$0x7]
    %v2257 = vunpack.c.l.b16 %v2243
    %v2258 = vunpack.c.l.b16 %v2244
    %v2259 = vunpack.c.l.b16 %v2245
    %v2260 = vunpack.c.l.b16 %v2246
    %v2261 = vunpack.c.l.b16 %v2247
    %v2262 = vunpack.c.l.b16 %v2248
    %v2263 = vunpack.c.l.b16 %v2249
    %v2264 = vpack.c.b16 %v2258, %v2257
    %v2265 = vpack.c.b16 %v2260, %v2259
    %v2266 = vpack.c.b16 %v2262, %v2261
    %v2267 = vpack.c.b16 %v2263, %v2263
    %vm2268 = vcmask 1045504
    %v2269 = vrot.slane %v2264, 2
    %v2270 = vrot.slane %v2265, 2
    %v2271 = vsel %vm2268, %v2269, %v2270
    %v2272 = vrot.slane %v2266, 2
    %v2273 = vsel %vm2268, %v2270, %v2272
    %v2274 = vrot.slane %v2267, 2
    %v2275 = vsel %vm2268, %v2272, %v2274
    %v2280 = vsel %vm1139, %v2274, 0
    %2282 = vmatprep.subr.bf16.mxu0 0
    %2283 = vmatpush1.bf16.msra.mxu0 %v2271
    %2284 = vmatprep.subr.bf16.mxu0 0
    %2285 = vmatpush1.bf16.msra.mxu0 %v2273
    %2286 = vmatprep.subr.bf16.mxu0 0
    %2287 = vmatpush1.bf16.msra.mxu0 %v2275
    %2288 = vmatprep.subr.bf16.mxu0 0
    %2289 = vmatpush1.bf16.msra.mxu0 %v2280
    %2290 = vmatprep.subr.bf16.mxu0 0
    %2291 = vmatpush1.bf16.msra.mxu0 0
    %2292 = vmatprep.subr.bf16.mxu0 0
    %2293 = vmatpush1.bf16.msra.mxu0 0
    %2294 = vmatprep.subr.bf16.mxu0 0
    %2295 = vmatpush1.bf16.msra.mxu0 0
    %2296 = vmatprep.subr.bf16.mxu0 0
    %2297 = vmatpush1.bf16.msra.mxu0 0
    %2298 = vmatprep.subr.bf16.mxu0 0
    %2299 = vmatpush1.bf16.msra.mxu0 0
    %2300 = vmatprep.subr.bf16.mxu0 0
    %2301 = vmatpush1.bf16.msra.mxu0 0
    %2302 = vmatprep.subr.bf16.mxu0 0
    %2303 = vmatpush1.bf16.msra.mxu0 0
    %2304 = vmatprep.subr.bf16.mxu0 0
    %2305 = vmatpush1.bf16.msra.mxu0 0
    %2306 = vmatprep.subr.bf16.mxu0 0
    %2307 = vmatpush1.bf16.msra.mxu0 0
    %2308 = vmatprep.subr.bf16.mxu0 0
    %2309 = vmatpush1.bf16.msra.mxu0 0
    %2310 = vmatprep.subr.bf16.mxu0 0
    %2311 = vmatpush1.bf16.msra.mxu0 0
    %2312 = vmatprep.subr.bf16.mxu0 0
    %2313 = vmatpush1.bf16.msra.mxu0 0
    %2314 = vmatprep.mubr.bf16.mxu0 0
    %2315 = vmatmul.mubr.bf16.gmra.mrb[0].mxu0 %v1068
    %v2316 = vpop.f32.mrb[0].mxu0
    %v2317 = vadd.f32 0.0, %v2316
    %v2318 = vpop.f32.mrb[0].mxu0
    %v2319 = vpop.f32.mrb[0].mxu0
    %v2320 = vadd.f32 0.0, %v2319
    %v2321 = vpop.f32.mrb[0].mxu0
    %2322 = vmatprep.mubr.bf16.mxu0 0
    %2323 = vmatmul.mubr.bf16.gmra.mrb[0].mxu0 %v1071
    %v2324 = vpop.f32.mrb[0].mxu0
    %v2325 = vadd.f32 0.0, %v2324
    %v2326 = vpop.f32.mrb[0].mxu0
    %v2327 = vpop.f32.mrb[0].mxu0
    %v2328 = vadd.f32 0.0, %v2327
    %v2329 = vpop.f32.mrb[0].mxu0
    %2330 = vmatprep.mubr.bf16.mxu0 0
    %2331 = vmatmul.mubr.bf16.gmra.mrb[0].mxu0 %v1074
    %v2332 = vpop.f32.mrb[0].mxu0
    %v2333 = vadd.f32 0.0, %v2332
    %v2334 = vpop.f32.mrb[0].mxu0
    %v2335 = vpop.f32.mrb[0].mxu0
    %v2336 = vadd.f32 0.0, %v2335
    %v2337 = vpop.f32.mrb[0].mxu0
    %2338 = vmatprep.mubr.bf16.mxu0 0
    %2339 = vmatmul.mubr.bf16.gmra.mrb[0].mxu0 %v1077
    %v2340 = vpop.f32.mrb[0].mxu0
    %v2341 = vadd.f32 0.0, %v2340
    %v2342 = vpop.f32.mrb[0].mxu0
    %v2343 = vpop.f32.mrb[0].mxu0
    %v2344 = vadd.f32 0.0, %v2343
    %v2345 = vpop.f32.mrb[0].mxu0
    %2346 = vmatprep.mubr.bf16.mxu0 0
    %2347 = vmatmul.mubr.bf16.gmra.mrb[0].mxu0 %v1080
    %v2348 = vpop.f32.mrb[0].mxu0
    %v2349 = vadd.f32 0.0, %v2348
    %v2350 = vpop.f32.mrb[0].mxu0
    %v2351 = vpop.f32.mrb[0].mxu0
    %v2352 = vadd.f32 0.0, %v2351
    %v2353 = vpop.f32.mrb[0].mxu0
    %2354 = vmatprep.mubr.bf16.mxu0 0
    %2355 = vmatmul.mubr.bf16.gmra.mrb[0].mxu0 %v1083
    %v2356 = vpop.f32.mrb[0].mxu0
    %v2357 = vadd.f32 0.0, %v2356
    %v2358 = vpop.f32.mrb[0].mxu0
    %v2359 = vpop.f32.mrb[0].mxu0
    %v2360 = vadd.f32 0.0, %v2359
    %v2361 = vpop.f32.mrb[0].mxu0
    %2362 = vmatprep.mubr.bf16.mxu0 0
    %2363 = vmatmul.mubr.bf16.gmra.mrb[0].mxu0 %v1086
    %v2364 = vpop.f32.mrb[0].mxu0
    %v2365 = vadd.f32 0.0, %v2364
    %v2366 = vpop.f32.mrb[0].mxu0
    %v2367 = vpop.f32.mrb[0].mxu0
    %v2368 = vadd.f32 0.0, %v2367
    %v2369 = vpop.f32.mrb[0].mxu0
    %2370 = vmatprep.mubr.bf16.mxu0 0
    %2371 = vmatmul.mubr.bf16.gmra.mrb[0].mxu0 %v1089
    %v2372 = vpop.f32.mrb[0].mxu0
    %v2373 = vadd.f32 0.0, %v2372
    %v2374 = vpop.f32.mrb[0].mxu0
    %v2375 = vpop.f32.mrb[0].mxu0
    %v2376 = vadd.f32 0.0, %v2375
    %v2377 = vpop.f32.mrb[0].mxu0
    %2378 = vmatprep.mubr.bf16.mxu0 0
    %2379 = vmatmul.mubr.bf16.gmra.mrb[0].mxu0 %v1092
    %v2380 = vpop.f32.mrb[0].mxu0
    %v2381 = vadd.f32 0.0, %v2380
    %v2382 = vpop.f32.mrb[0].mxu0
    %v2383 = vpop.f32.mrb[0].mxu0
    %v2384 = vadd.f32 0.0, %v2383
    %v2385 = vpop.f32.mrb[0].mxu0
    %2386 = vmatprep.mubr.bf16.mxu0 0
    %2387 = vmatmul.mubr.bf16.gmra.mrb[0].mxu0 %v1095
    %v2388 = vpop.f32.mrb[0].mxu0
    %v2389 = vadd.f32 0.0, %v2388
    %v2390 = vpop.f32.mrb[0].mxu0
    %v2391 = vpop.f32.mrb[0].mxu0
    %v2392 = vadd.f32 0.0, %v2391
    %v2393 = vpop.f32.mrb[0].mxu0
    %2394 = vmatprep.mubr.bf16.mxu0 0
    %2395 = vmatmul.mubr.bf16.gmra.mrb[0].mxu0 %v1098
    %v2396 = vpop.f32.mrb[0].mxu0
    %v2397 = vadd.f32 0.0, %v2396
    %v2398 = vpop.f32.mrb[0].mxu0
    %v2399 = vpop.f32.mrb[0].mxu0
    %v2400 = vadd.f32 0.0, %v2399
    %v2401 = vpop.f32.mrb[0].mxu0
    %2402 = vmatprep.mubr.bf16.mxu0 0
    %2403 = vmatmul.mubr.bf16.gmra.mrb[0].mxu0 %v1101
    %v2404 = vpop.f32.mrb[0].mxu0
    %v2405 = vadd.f32 0.0, %v2404
    %v2406 = vpop.f32.mrb[0].mxu0
    %v2407 = vpop.f32.mrb[0].mxu0
    %v2408 = vadd.f32 0.0, %v2407
    %v2409 = vpop.f32.mrb[0].mxu0
    %2410 = vmatprep.mubr.bf16.mxu0 0
    %2411 = vmatmul.mubr.bf16.gmra.mrb[0].mxu0 %v1104
    %v2412 = vpop.f32.mrb[0].mxu0
    %v2413 = vadd.f32 0.0, %v2412
    %v2414 = vpop.f32.mrb[0].mxu0
    %v2415 = vpop.f32.mrb[0].mxu0
    %v2416 = vadd.f32 0.0, %v2415
    %v2417 = vpop.f32.mrb[0].mxu0
    %2418 = vmatprep.mubr.bf16.mxu0 0
    %2419 = vmatmul.mubr.bf16.gmra.mrb[0].mxu0 %v1107
    %v2420 = vpop.f32.mrb[0].mxu0
    %v2421 = vadd.f32 0.0, %v2420
    %v2422 = vpop.f32.mrb[0].mxu0
    %v2423 = vpop.f32.mrb[0].mxu0
    %v2424 = vadd.f32 0.0, %v2423
    %v2425 = vpop.f32.mrb[0].mxu0
    %2426 = vmatprep.mubr.bf16.mxu0 0
    %2427 = vmatmul.mubr.bf16.gmra.mrb[0].mxu0 %v1110
    %v2428 = vpop.f32.mrb[0].mxu0
    %v2429 = vadd.f32 0.0, %v2428
    %v2430 = vpop.f32.mrb[0].mxu0
    %v2431 = vpop.f32.mrb[0].mxu0
    %v2432 = vadd.f32 0.0, %v2431
    %v2433 = vpop.f32.mrb[0].mxu0
    %2434 = vmatprep.mubr.bf16.mxu0 0
    %2435 = vmatmul.mubr.bf16.gmra.mrb[0].mxu0 %v1113
    %v2436 = vpop.f32.mrb[0].mxu0
    %v2437 = vadd.f32 0.0, %v2436
    %v2438 = vpop.f32.mrb[0].mxu0
    %v2439 = vpop.f32.mrb[0].mxu0
    %v2440 = vadd.f32 0.0, %v2439
    %v2441 = vpop.f32.mrb[0].mxu0
    %2442 = vmatprep.mubr.bf16.mxu0 0
    %2443 = vmatmul.mubr.bf16.gmra.mrb[0].mxu0 %v1116
    %v2444 = vpop.f32.mrb[0].mxu0
    %v2445 = vadd.f32 0.0, %v2444
    %v2446 = vpop.f32.mrb[0].mxu0
    %v2447 = vpop.f32.mrb[0].mxu0
    %v2448 = vadd.f32 0.0, %v2447
    %v2449 = vpop.f32.mrb[0].mxu0
    %2450 = vmatprep.mubr.bf16.mxu0 0
    %2451 = vmatmul.mubr.bf16.gmra.mrb[0].mxu0 %v1119
    %v2452 = vpop.f32.mrb[0].mxu0
    %v2453 = vadd.f32 0.0, %v2452
    %v2454 = vpop.f32.mrb[0].mxu0
    %v2455 = vpop.f32.mrb[0].mxu0
    %v2456 = vadd.f32 0.0, %v2455
    %v2457 = vpop.f32.mrb[0].mxu0
    %2458 = vmatprep.mubr.bf16.mxu0 0
    %2459 = vmatmul.mubr.bf16.gmra.mrb[0].mxu0 %v1122
    %v2460 = vpop.f32.mrb[0].mxu0
    %v2461 = vadd.f32 0.0, %v2460
    %v2462 = vpop.f32.mrb[0].mxu0
    %v2463 = vpop.f32.mrb[0].mxu0
    %v2464 = vadd.f32 0.0, %v2463
    %v2465 = vpop.f32.mrb[0].mxu0
    %2466 = vmatprep.mubr.bf16.mxu0 0
    %2467 = vmatmul.mubr.bf16.gmra.mrb[0].mxu0 %v1125
    %v2468 = vpop.f32.mrb[0].mxu0
    %v2469 = vadd.f32 0.0, %v2468
    %v2470 = vpop.f32.mrb[0].mxu0
    %v2471 = vpop.f32.mrb[0].mxu0
    %v2472 = vadd.f32 0.0, %v2471
    %v2473 = vpop.f32.mrb[0].mxu0
    %2474 = vmatprep.mubr.bf16.mxu0 0
    %2475 = vmatmul.mubr.bf16.gmra.mrb[0].mxu0 %v1128
    %v2476 = vpop.f32.mrb[0].mxu0
    %v2477 = vadd.f32 0.0, %v2476
    %v2478 = vpop.f32.mrb[0].mxu0
    %v2479 = vpop.f32.mrb[0].mxu0
    %v2480 = vadd.f32 0.0, %v2479
    %v2481 = vpop.f32.mrb[0].mxu0
    %2482 = vmatprep.mubr.bf16.mxu0 0
    %2483 = vmatmul.mubr.bf16.gmra.mrb[0].mxu0 %v1131
    %v2484 = vpop.f32.mrb[0].mxu0
    %v2485 = vadd.f32 0.0, %v2484
    %v2486 = vpop.f32.mrb[0].mxu0
    %v2487 = vpop.f32.mrb[0].mxu0
    %v2488 = vadd.f32 0.0, %v2487
    %v2489 = vpop.f32.mrb[0].mxu0
    %2490 = vmatprep.mubr.bf16.mxu0 0
    %2491 = vmatmul.mubr.bf16.gmra.mrb[0].mxu0 %v1134
    %v2492 = vpop.f32.mrb[0].mxu0
    %v2493 = vadd.f32 0.0, %v2492
    %v2494 = vpop.f32.mrb[0].mxu0
    %v2495 = vpop.f32.mrb[0].mxu0
    %v2496 = vadd.f32 0.0, %v2495
    %v2497 = vpop.f32.mrb[0].mxu0
    %2498 = vmatprep.mubr.bf16.mxu0 0
    %2499 = vmatmul.mubr.bf16.gmra.mrb[0].mxu0 %v1137
    %v2500 = vpop.f32.mrb[0].mxu0
    %v2501 = vadd.f32 0.0, %v2500
    %v2502 = vpop.f32.mrb[0].mxu0
    %v2503 = vpop.f32.mrb[0].mxu0
    %v2504 = vadd.f32 0.0, %v2503
    %v2505 = vpop.f32.mrb[0].mxu0
    %2506 = vdwg.mxu0
    %v2555 = vcombine.high %v2317, %v2317
    %v2556 = vcombine.high %v2320, %v2320
    %v2557 = vcombine.high %v2325, %v2325
    %v2558 = vcombine.high %v2328, %v2328
    %v2559 = vcombine.high %v2333, %v2333
    %v2560 = vcombine.high %v2336, %v2336
    %v2561 = vcombine.high %v2341, %v2341
    %v2562 = vcombine.high %v2344, %v2344
    %v2563 = vcombine.high %v2349, %v2349
    %v2564 = vcombine.high %v2352, %v2352
    %v2565 = vcombine.high %v2357, %v2357
    %v2566 = vcombine.high %v2360, %v2360
    %v2567 = vcombine.high %v2365, %v2365
    %v2568 = vcombine.high %v2368, %v2368
    %v2569 = vcombine.high %v2373, %v2373
    %v2570 = vcombine.high %v2376, %v2376
    %v2571 = vcombine.high %v2381, %v2381
    %v2572 = vcombine.high %v2384, %v2384
    %v2573 = vcombine.high %v2389, %v2389
    %v2574 = vcombine.high %v2392, %v2392
    %v2575 = vcombine.high %v2397, %v2397
    %v2576 = vcombine.high %v2400, %v2400
    %v2577 = vcombine.high %v2405, %v2405
    %v2578 = vcombine.high %v2408, %v2408
    %v2579 = vcombine.high %v2413, %v2413
    %v2580 = vcombine.high %v2416, %v2416
    %v2581 = vcombine.high %v2421, %v2421
    %v2582 = vcombine.high %v2424, %v2424
    %v2583 = vcombine.high %v2429, %v2429
    %v2584 = vcombine.high %v2432, %v2432
    %v2585 = vcombine.high %v2437, %v2437
    %v2586 = vcombine.high %v2440, %v2440
    %v2587 = vcombine.high %v2445, %v2445
    %v2588 = vcombine.high %v2448, %v2448
    %v2589 = vcombine.high %v2453, %v2453
    %v2590 = vcombine.high %v2456, %v2456
    %v2591 = vcombine.high %v2461, %v2461
    %v2592 = vcombine.high %v2464, %v2464
    %v2593 = vcombine.high %v2469, %v2469
    %v2594 = vcombine.high %v2472, %v2472
    %v2595 = vcombine.high %v2477, %v2477
    %v2596 = vcombine.high %v2480, %v2480
    %v2597 = vcombine.high %v2485, %v2485
    %v2598 = vcombine.high %v2488, %v2488
    %v2599 = vcombine.high %v2493, %v2493
    %v2600 = vcombine.high %v2496, %v2496
    %v2601 = vcombine.high %v2501, %v2501
    %v2602 = vcombine.high %v2504, %v2504
    %vm2603 = vcmask 1041408
    %vm2604 = vcmask 1045508
    %vm2605 = vmor %vm2603, %vm2604
    %v2606 = vrot.slane %v2317, 6
    %v2607 = vrot.slane %v2606, 4
    %v2608 = vrot.slane %v2555, 6
    %v2609 = vsel %vm2605, %v2607, %v2608
    %v2610 = vrot.slane %v2608, 4
    %v2611 = vrot.slane %v2320, 6
    %v2612 = vsel %vm2605, %v2610, %v2611
    %v2613 = vrot.slane %v2556, 6
    %v2614 = vrot.slane %v2613, 4
    %v2615 = vrot.slane %v2325, 6
    %v2616 = vsel %vm2605, %v2614, %v2615
    %v2617 = vrot.slane %v2615, 4
    %v2618 = vrot.slane %v2557, 6
    %v2619 = vsel %vm2605, %v2617, %v2618
    %v2620 = vrot.slane %v2328, 6
    %v2621 = vrot.slane %v2620, 4
    %v2622 = vrot.slane %v2558, 6
    %v2623 = vsel %vm2605, %v2621, %v2622
    %v2624 = vrot.slane %v2622, 4
    %v2625 = vrot.slane %v2333, 6
    %v2626 = vsel %vm2605, %v2624, %v2625
    %v2627 = vrot.slane %v2559, 6
    %v2628 = vrot.slane %v2627, 4
    %v2629 = vrot.slane %v2336, 6
    %v2630 = vsel %vm2605, %v2628, %v2629
    %v2631 = vrot.slane %v2629, 4
    %v2632 = vrot.slane %v2560, 6
    %v2633 = vsel %vm2605, %v2631, %v2632
    %v2634 = vrot.slane %v2341, 6
    %v2635 = vrot.slane %v2634, 4
    %v2636 = vrot.slane %v2561, 6
    %v2637 = vsel %vm2605, %v2635, %v2636
    %v2638 = vrot.slane %v2636, 4
    %v2639 = vrot.slane %v2344, 6
    %v2640 = vsel %vm2605, %v2638, %v2639
    %v2641 = vrot.slane %v2562, 6
    %v2642 = vrot.slane %v2641, 4
    %v2643 = vrot.slane %v2349, 6
    %v2644 = vsel %vm2605, %v2642, %v2643
    %v2645 = vrot.slane %v2643, 4
    %v2646 = vrot.slane %v2563, 6
    %v2647 = vsel %vm2605, %v2645, %v2646
    %v2648 = vrot.slane %v2352, 6
    %v2649 = vrot.slane %v2648, 4
    %v2650 = vrot.slane %v2564, 6
    %v2651 = vsel %vm2605, %v2649, %v2650
    %v2652 = vrot.slane %v2650, 4
    %v2653 = vrot.slane %v2357, 6
    %v2654 = vsel %vm2605, %v2652, %v2653
    %v2655 = vrot.slane %v2565, 6
    %v2656 = vrot.slane %v2655, 4
    %v2657 = vrot.slane %v2360, 6
    %v2658 = vsel %vm2605, %v2656, %v2657
    %v2659 = vrot.slane %v2657, 4
    %v2660 = vrot.slane %v2566, 6
    %v2661 = vsel %vm2605, %v2659, %v2660
    %v2662 = vrot.slane %v2365, 6
    %v2663 = vrot.slane %v2662, 4
    %v2664 = vrot.slane %v2567, 6
    %v2665 = vsel %vm2605, %v2663, %v2664
    %v2666 = vrot.slane %v2664, 4
    %v2667 = vrot.slane %v2368, 6
    %v2668 = vsel %vm2605, %v2666, %v2667
    %v2669 = vrot.slane %v2568, 6
    %v2670 = vrot.slane %v2669, 4
    %v2671 = vrot.slane %v2373, 6
    %v2672 = vsel %vm2605, %v2670, %v2671
    %v2673 = vrot.slane %v2671, 4
    %v2674 = vrot.slane %v2569, 6
    %v2675 = vsel %vm2605, %v2673, %v2674
    %v2676 = vrot.slane %v2376, 6
    %v2677 = vrot.slane %v2676, 4
    %v2678 = vrot.slane %v2570, 6
    %v2679 = vsel %vm2605, %v2677, %v2678
    %v2680 = vrot.slane %v2678, 4
    %v2681 = vrot.slane %v2381, 6
    %v2682 = vsel %vm2605, %v2680, %v2681
    %v2683 = vrot.slane %v2571, 6
    %v2684 = vrot.slane %v2683, 4
    %v2685 = vrot.slane %v2384, 6
    %v2686 = vsel %vm2605, %v2684, %v2685
    %v2687 = vrot.slane %v2685, 4
    %v2688 = vrot.slane %v2572, 6
    %v2689 = vsel %vm2605, %v2687, %v2688
    %v2690 = vrot.slane %v2389, 6
    %v2691 = vrot.slane %v2690, 4
    %v2692 = vrot.slane %v2573, 6
    %v2693 = vsel %vm2605, %v2691, %v2692
    %v2694 = vrot.slane %v2692, 4
    %v2695 = vrot.slane %v2392, 6
    %v2696 = vsel %vm2605, %v2694, %v2695
    %v2697 = vrot.slane %v2574, 6
    %v2698 = vrot.slane %v2697, 4
    %v2699 = vrot.slane %v2397, 6
    %v2700 = vsel %vm2605, %v2698, %v2699
    %v2701 = vrot.slane %v2699, 4
    %v2702 = vrot.slane %v2575, 6
    %v2703 = vsel %vm2605, %v2701, %v2702
    %v2704 = vrot.slane %v2400, 6
    %v2705 = vrot.slane %v2704, 4
    %v2706 = vrot.slane %v2576, 6
    %v2707 = vsel %vm2605, %v2705, %v2706
    %v2708 = vrot.slane %v2706, 4
    %v2709 = vrot.slane %v2405, 6
    %v2710 = vsel %vm2605, %v2708, %v2709
    %v2711 = vrot.slane %v2577, 6
    %v2712 = vrot.slane %v2711, 4
    %v2713 = vrot.slane %v2408, 6
    %v2714 = vsel %vm2605, %v2712, %v2713
    %v2715 = vrot.slane %v2713, 4
    %v2716 = vrot.slane %v2578, 6
    %v2717 = vsel %vm2605, %v2715, %v2716
    %v2718 = vrot.slane %v2413, 6
    %v2719 = vrot.slane %v2718, 4
    %v2720 = vrot.slane %v2579, 6
    %v2721 = vsel %vm2605, %v2719, %v2720
    %v2722 = vrot.slane %v2720, 4
    %v2723 = vrot.slane %v2416, 6
    %v2724 = vsel %vm2605, %v2722, %v2723
    %v2725 = vrot.slane %v2580, 6
    %v2726 = vrot.slane %v2725, 4
    %v2727 = vrot.slane %v2421, 6
    %v2728 = vsel %vm2605, %v2726, %v2727
    %v2729 = vrot.slane %v2727, 4
    %v2730 = vrot.slane %v2581, 6
    %v2731 = vsel %vm2605, %v2729, %v2730
    %v2732 = vrot.slane %v2424, 6
    %v2733 = vrot.slane %v2732, 4
    %v2734 = vrot.slane %v2582, 6
    %v2735 = vsel %vm2605, %v2733, %v2734
    %v2736 = vrot.slane %v2734, 4
    %v2737 = vrot.slane %v2429, 6
    %v2738 = vsel %vm2605, %v2736, %v2737
    %v2739 = vrot.slane %v2583, 6
    %v2740 = vrot.slane %v2739, 4
    %v2741 = vrot.slane %v2432, 6
    %v2742 = vsel %vm2605, %v2740, %v2741
    %v2743 = vrot.slane %v2741, 4
    %v2744 = vrot.slane %v2584, 6
    %v2745 = vsel %vm2605, %v2743, %v2744
    %v2746 = vrot.slane %v2437, 6
    %v2747 = vrot.slane %v2746, 4
    %v2748 = vrot.slane %v2585, 6
    %v2749 = vsel %vm2605, %v2747, %v2748
    %v2750 = vrot.slane %v2748, 4
    %v2751 = vrot.slane %v2440, 6
    %v2752 = vsel %vm2605, %v2750, %v2751
    %v2753 = vrot.slane %v2586, 6
    %v2754 = vrot.slane %v2753, 4
    %v2755 = vrot.slane %v2445, 6
    %v2756 = vsel %vm2605, %v2754, %v2755
    %v2757 = vrot.slane %v2755, 4
    %v2758 = vrot.slane %v2587, 6
    %v2759 = vsel %vm2605, %v2757, %v2758
    %v2760 = vrot.slane %v2448, 6
    %v2761 = vrot.slane %v2760, 4
    %v2762 = vrot.slane %v2588, 6
    %v2763 = vsel %vm2605, %v2761, %v2762
    %v2764 = vrot.slane %v2762, 4
    %v2765 = vrot.slane %v2453, 6
    %v2766 = vsel %vm2605, %v2764, %v2765
    %v2767 = vrot.slane %v2589, 6
    %v2768 = vrot.slane %v2767, 4
    %v2769 = vrot.slane %v2456, 6
    %v2770 = vsel %vm2605, %v2768, %v2769
    %v2771 = vrot.slane %v2769, 4
    %v2772 = vrot.slane %v2590, 6
    %v2773 = vsel %vm2605, %v2771, %v2772
    %v2774 = vrot.slane %v2461, 6
    %v2775 = vrot.slane %v2774, 4
    %v2776 = vrot.slane %v2591, 6
    %v2777 = vsel %vm2605, %v2775, %v2776
    %v2778 = vrot.slane %v2776, 4
    %v2779 = vrot.slane %v2464, 6
    %v2780 = vsel %vm2605, %v2778, %v2779
    %v2781 = vrot.slane %v2592, 6
    %v2782 = vrot.slane %v2781, 4
    %v2783 = vrot.slane %v2469, 6
    %v2784 = vsel %vm2605, %v2782, %v2783
    %v2785 = vrot.slane %v2783, 4
    %v2786 = vrot.slane %v2593, 6
    %v2787 = vsel %vm2605, %v2785, %v2786
    %v2788 = vrot.slane %v2472, 6
    %v2789 = vrot.slane %v2788, 4
    %v2790 = vrot.slane %v2594, 6
    %v2791 = vsel %vm2605, %v2789, %v2790
    %v2792 = vrot.slane %v2790, 4
    %v2793 = vrot.slane %v2477, 6
    %v2794 = vsel %vm2605, %v2792, %v2793
    %v2795 = vrot.slane %v2595, 6
    %v2796 = vrot.slane %v2795, 4
    %v2797 = vrot.slane %v2480, 6
    %v2798 = vsel %vm2605, %v2796, %v2797
    %v2799 = vrot.slane %v2797, 4
    %v2800 = vrot.slane %v2596, 6
    %v2801 = vsel %vm2605, %v2799, %v2800
    %v2802 = vrot.slane %v2485, 6
    %v2803 = vrot.slane %v2802, 4
    %v2804 = vrot.slane %v2597, 6
    %v2805 = vsel %vm2605, %v2803, %v2804
    %v2806 = vrot.slane %v2804, 4
    %v2807 = vrot.slane %v2488, 6
    %v2808 = vsel %vm2605, %v2806, %v2807
    %v2809 = vrot.slane %v2598, 6
    %v2810 = vrot.slane %v2809, 4
    %v2811 = vrot.slane %v2493, 6
    %v2812 = vsel %vm2605, %v2810, %v2811
    %v2813 = vrot.slane %v2811, 4
    %v2814 = vrot.slane %v2599, 6
    %v2815 = vsel %vm2605, %v2813, %v2814
    %v2816 = vrot.slane %v2496, 6
    %v2817 = vrot.slane %v2816, 4
    %v2818 = vrot.slane %v2600, 6
    %v2819 = vsel %vm2605, %v2817, %v2818
    %v2820 = vrot.slane %v2818, 4
    %v2821 = vrot.slane %v2501, 6
    %v2822 = vsel %vm2605, %v2820, %v2821
    %v2823 = vrot.slane %v2601, 6
    %v2824 = vrot.slane %v2823, 4
    %v2825 = vrot.slane %v2504, 6
    %v2826 = vsel %vm2605, %v2824, %v2825
    %v2827 = vrot.slane %v2825, 4
    %v2828 = vrot.slane %v2602, 6
    %v2829 = vsel %vm2605, %v2827, %v2828
    %v2894 = vadd.f32 %v2179, %v2609
    %v2895 = vadd.f32 %v2180, %v2612
    %v2896 = vadd.f32 %v2181, %v2616
    %v2897 = vadd.f32 %v2182, %v2619
    %v2898 = vadd.f32 %v2183, %v2623
    %v2899 = vadd.f32 %v2184, %v2626
    %v2900 = vadd.f32 %v2185, %v2630
    %v2901 = vadd.f32 %v2186, %v2633
    %v2902 = vadd.f32 %v2187, %v2637
    %v2903 = vadd.f32 %v2188, %v2640
    %v2904 = vadd.f32 %v2189, %v2644
    %v2905 = vadd.f32 %v2190, %v2647
    %v2906 = vadd.f32 %v2191, %v2651
    %v2907 = vadd.f32 %v2192, %v2654
    %v2908 = vadd.f32 %v2193, %v2658
    %v2909 = vadd.f32 %v2194, %v2661
    %v2910 = vadd.f32 %v2195, %v2665
    %v2911 = vadd.f32 %v2196, %v2668
    %v2912 = vadd.f32 %v2197, %v2672
    %v2913 = vadd.f32 %v2198, %v2675
    %v2914 = vadd.f32 %v2199, %v2679
    %v2915 = vadd.f32 %v2200, %v2682
    %v2916 = vadd.f32 %v2201, %v2686
    %v2917 = vadd.f32 %v2202, %v2689
    %v2918 = vadd.f32 %v2203, %v2693
    %v2919 = vadd.f32 %v2204, %v2696
    %v2920 = vadd.f32 %v2205, %v2700
    %v2921 = vadd.f32 %v2206, %v2703
    %v2922 = vadd.f32 %v2207, %v2707
    %v2923 = vadd.f32 %v2208, %v2710
    %v2924 = vadd.f32 %v2209, %v2714
    %v2925 = vadd.f32 %v2210, %v2717
    %v2926 = vadd.f32 %v2211, %v2721
    %v2927 = vadd.f32 %v2212, %v2724
    %v2928 = vadd.f32 %v2213, %v2728
    %v2929 = vadd.f32 %v2214, %v2731
    %v2930 = vadd.f32 %v2215, %v2735
    %v2931 = vadd.f32 %v2216, %v2738
    %v2932 = vadd.f32 %v2217, %v2742
    %v2933 = vadd.f32 %v2218, %v2745
    %v2934 = vadd.f32 %v2219, %v2749
    %v2935 = vadd.f32 %v2220, %v2752
    %v2936 = vadd.f32 %v2221, %v2756
    %v2937 = vadd.f32 %v2222, %v2759
    %v2938 = vadd.f32 %v2223, %v2763
    %v2939 = vadd.f32 %v2224, %v2766
    %v2940 = vadd.f32 %v2225, %v2770
    %v2941 = vadd.f32 %v2226, %v2773
    %v2942 = vadd.f32 %v2227, %v2777
    %v2943 = vadd.f32 %v2228, %v2780
    %v2944 = vadd.f32 %v2229, %v2784
    %v2945 = vadd.f32 %v2230, %v2787
    %v2946 = vadd.f32 %v2231, %v2791
    %v2947 = vadd.f32 %v2232, %v2794
    %v2948 = vadd.f32 %v2233, %v2798
    %v2949 = vadd.f32 %v2234, %v2801
    %v2950 = vadd.f32 %v2235, %v2805
    %v2951 = vadd.f32 %v2236, %v2808
    %v2952 = vadd.f32 %v2237, %v2812
    %v2953 = vadd.f32 %v2238, %v2815
    %v2954 = vadd.f32 %v2239, %v2819
    %v2955 = vadd.f32 %v2240, %v2822
    %v2956 = vadd.f32 %v2241, %v2826
    %v2957 = vadd.f32 %v2242, %v2829
    %v2958 = vld [vmem:[%s1 + $0x48] sm:$0x8]
    %v2959 = vld [vmem:[%s1 + $0x4c] sm:$0xf]
    %v2960 = vld [vmem:[%s1 + $0x50] sm:$0xf]
    %v2961 = vld [vmem:[%s1 + $0x54] sm:$0xf]
    %v2962 = vld [vmem:[%s1 + $0x58] sm:$0xf]
    %v2963 = vld [vmem:[%s1 + $0x5c] sm:$0xf]
    %v2964 = vld [vmem:[%s1 + $0x60] sm:$0xf]
    %v2972 = vunpack.c.l.b16 %v2958
    %v2973 = vunpack.c.l.b16 %v2959
    %v2974 = vunpack.c.l.b16 %v2960
    %v2975 = vunpack.c.l.b16 %v2961
    %v2976 = vunpack.c.l.b16 %v2962
    %v2977 = vunpack.c.l.b16 %v2963
    %v2978 = vunpack.c.l.b16 %v2964
    %v2979 = vpack.c.b16 %v2973, %v2972
    %v2980 = vpack.c.b16 %v2975, %v2974
    %v2981 = vpack.c.b16 %v2977, %v2976
    %v2982 = vpack.c.b16 %v2978, %v2978
    %vm2983 = vcmask 1044480
    %v2984 = vrot.slane %v2979, 3
    %v2985 = vrot.slane %v2980, 3
    %v2986 = vsel %vm2983, %v2984, %v2985
    %v2987 = vrot.slane %v2981, 3
    %v2988 = vsel %vm2983, %v2985, %v2987
    %v2989 = vrot.slane %v2982, 3
    %v2990 = vsel %vm2983, %v2987, %v2989
    %v2995 = vsel %vm1139, %v2989, 0
    %2997 = vmatprep.subr.bf16.mxu0 0
    %2998 = vmatpush1.bf16.msra.mxu0 %v2986
    %2999 = vmatprep.subr.bf16.mxu0 0
    %3000 = vmatpush1.bf16.msra.mxu0 %v2988
    %3001 = vmatprep.subr.bf16.mxu0 0
    %3002 = vmatpush1.bf16.msra.mxu0 %v2990
    %3003 = vmatprep.subr.bf16.mxu0 0
    %3004 = vmatpush1.bf16.msra.mxu0 %v2995
    %3005 = vmatprep.subr.bf16.mxu0 0
    %3006 = vmatpush1.bf16.msra.mxu0 0
    %3007 = vmatprep.subr.bf16.mxu0 0
    %3008 = vmatpush1.bf16.msra.mxu0 0
    %3009 = vmatprep.subr.bf16.mxu0 0
    %3010 = vmatpush1.bf16.msra.mxu0 0
    %3011 = vmatprep.subr.bf16.mxu0 0
    %3012 = vmatpush1.bf16.msra.mxu0 0
    %3013 = vmatprep.subr.bf16.mxu0 0
    %3014 = vmatpush1.bf16.msra.mxu0 0
    %3015 = vmatprep.subr.bf16.mxu0 0
    %3016 = vmatpush1.bf16.msra.mxu0 0
    %3017 = vmatprep.subr.bf16.mxu0 0
    %3018 = vmatpush1.bf16.msra.mxu0 0
    %3019 = vmatprep.subr.bf16.mxu0 0
    %3020 = vmatpush1.bf16.msra.mxu0 0
    %3021 = vmatprep.subr.bf16.mxu0 0
    %3022 = vmatpush1.bf16.msra.mxu0 0
    %3023 = vmatprep.subr.bf16.mxu0 0
    %3024 = vmatpush1.bf16.msra.mxu0 0
    %3025 = vmatprep.subr.bf16.mxu0 0
    %3026 = vmatpush1.bf16.msra.mxu0 0
    %3027 = vmatprep.subr.bf16.mxu0 0
    %3028 = vmatpush1.bf16.msra.mxu0 0
    %3029 = vmatprep.mubr.bf16.mxu0 0
    %3030 = vmatmul.mubr.bf16.gmra.mrb[0].mxu0 %v1068
    %v3031 = vpop.f32.mrb[0].mxu0
    %v3032 = vadd.f32 0.0, %v3031
    %v3033 = vpop.f32.mrb[0].mxu0
    %v3034 = vpop.f32.mrb[0].mxu0
    %v3035 = vadd.f32 0.0, %v3034
    %v3036 = vpop.f32.mrb[0].mxu0
    %3037 = vmatprep.mubr.bf16.mxu0 0
    %3038 = vmatmul.mubr.bf16.gmra.mrb[0].mxu0 %v1071
    %v3039 = vpop.f32.mrb[0].mxu0
    %v3040 = vadd.f32 0.0, %v3039
    %v3041 = vpop.f32.mrb[0].mxu0
    %v3042 = vpop.f32.mrb[0].mxu0
    %v3043 = vadd.f32 0.0, %v3042
    %v3044 = vpop.f32.mrb[0].mxu0
    %3045 = vmatprep.mubr.bf16.mxu0 0
    %3046 = vmatmul.mubr.bf16.gmra.mrb[0].mxu0 %v1074
    %v3047 = vpop.f32.mrb[0].mxu0
    %v3048 = vadd.f32 0.0, %v3047
    %v3049 = vpop.f32.mrb[0].mxu0
    %v3050 = vpop.f32.mrb[0].mxu0
    %v3051 = vadd.f32 0.0, %v3050
    %v3052 = vpop.f32.mrb[0].mxu0
    %3053 = vmatprep.mubr.bf16.mxu0 0
    %3054 = vmatmul.mubr.bf16.gmra.mrb[0].mxu0 %v1077
    %v3055 = vpop.f32.mrb[0].mxu0
    %v3056 = vadd.f32 0.0, %v3055
    %v3057 = vpop.f32.mrb[0].mxu0
    %v3058 = vpop.f32.mrb[0].mxu0
    %v3059 = vadd.f32 0.0, %v3058
    %v3060 = vpop.f32.mrb[0].mxu0
    %3061 = vmatprep.mubr.bf16.mxu0 0
    %3062 = vmatmul.mubr.bf16.gmra.mrb[0].mxu0 %v1080
    %v3063 = vpop.f32.mrb[0].mxu0
    %v3064 = vadd.f32 0.0, %v3063
    %v3065 = vpop.f32.mrb[0].mxu0
    %v3066 = vpop.f32.mrb[0].mxu0
    %v3067 = vadd.f32 0.0, %v3066
    %v3068 = vpop.f32.mrb[0].mxu0
    %3069 = vmatprep.mubr.bf16.mxu0 0
    %3070 = vmatmul.mubr.bf16.gmra.mrb[0].mxu0 %v1083
    %v3071 = vpop.f32.mrb[0].mxu0
    %v3072 = vadd.f32 0.0, %v3071
    %v3073 = vpop.f32.mrb[0].mxu0
    %v3074 = vpop.f32.mrb[0].mxu0
    %v3075 = vadd.f32 0.0, %v3074
    %v3076 = vpop.f32.mrb[0].mxu0
    %3077 = vmatprep.mubr.bf16.mxu0 0
    %3078 = vmatmul.mubr.bf16.gmra.mrb[0].mxu0 %v1086
    %v3079 = vpop.f32.mrb[0].mxu0
    %v3080 = vadd.f32 0.0, %v3079
    %v3081 = vpop.f32.mrb[0].mxu0
    %v3082 = vpop.f32.mrb[0].mxu0
    %v3083 = vadd.f32 0.0, %v3082
    %v3084 = vpop.f32.mrb[0].mxu0
    %3085 = vmatprep.mubr.bf16.mxu0 0
    %3086 = vmatmul.mubr.bf16.gmra.mrb[0].mxu0 %v1089
    %v3087 = vpop.f32.mrb[0].mxu0
    %v3088 = vadd.f32 0.0, %v3087
    %v3089 = vpop.f32.mrb[0].mxu0
    %v3090 = vpop.f32.mrb[0].mxu0
    %v3091 = vadd.f32 0.0, %v3090
    %v3092 = vpop.f32.mrb[0].mxu0
    %3093 = vmatprep.mubr.bf16.mxu0 0
    %3094 = vmatmul.mubr.bf16.gmra.mrb[0].mxu0 %v1092
    %v3095 = vpop.f32.mrb[0].mxu0
    %v3096 = vadd.f32 0.0, %v3095
    %v3097 = vpop.f32.mrb[0].mxu0
    %v3098 = vpop.f32.mrb[0].mxu0
    %v3099 = vadd.f32 0.0, %v3098
    %v3100 = vpop.f32.mrb[0].mxu0
    %3101 = vmatprep.mubr.bf16.mxu0 0
    %3102 = vmatmul.mubr.bf16.gmra.mrb[0].mxu0 %v1095
    %v3103 = vpop.f32.mrb[0].mxu0
    %v3104 = vadd.f32 0.0, %v3103
    %v3105 = vpop.f32.mrb[0].mxu0
    %v3106 = vpop.f32.mrb[0].mxu0
    %v3107 = vadd.f32 0.0, %v3106
    %v3108 = vpop.f32.mrb[0].mxu0
    %3109 = vmatprep.mubr.bf16.mxu0 0
    %3110 = vmatmul.mubr.bf16.gmra.mrb[0].mxu0 %v1098
    %v3111 = vpop.f32.mrb[0].mxu0
    %v3112 = vadd.f32 0.0, %v3111
    %v3113 = vpop.f32.mrb[0].mxu0
    %v3114 = vpop.f32.mrb[0].mxu0
    %v3115 = vadd.f32 0.0, %v3114
    %v3116 = vpop.f32.mrb[0].mxu0
    %3117 = vmatprep.mubr.bf16.mxu0 0
    %3118 = vmatmul.mubr.bf16.gmra.mrb[0].mxu0 %v1101
    %v3119 = vpop.f32.mrb[0].mxu0
    %v3120 = vadd.f32 0.0, %v3119
    %v3121 = vpop.f32.mrb[0].mxu0
    %v3122 = vpop.f32.mrb[0].mxu0
    %v3123 = vadd.f32 0.0, %v3122
    %v3124 = vpop.f32.mrb[0].mxu0
    %3125 = vmatprep.mubr.bf16.mxu0 0
    %3126 = vmatmul.mubr.bf16.gmra.mrb[0].mxu0 %v1104
    %v3127 = vpop.f32.mrb[0].mxu0
    %v3128 = vadd.f32 0.0, %v3127
    %v3129 = vpop.f32.mrb[0].mxu0
    %v3130 = vpop.f32.mrb[0].mxu0
    %v3131 = vadd.f32 0.0, %v3130
    %v3132 = vpop.f32.mrb[0].mxu0
    %3133 = vmatprep.mubr.bf16.mxu0 0
    %3134 = vmatmul.mubr.bf16.gmra.mrb[0].mxu0 %v1107
    %v3135 = vpop.f32.mrb[0].mxu0
    %v3136 = vadd.f32 0.0, %v3135
    %v3137 = vpop.f32.mrb[0].mxu0
    %v3138 = vpop.f32.mrb[0].mxu0
    %v3139 = vadd.f32 0.0, %v3138
    %v3140 = vpop.f32.mrb[0].mxu0
    %3141 = vmatprep.mubr.bf16.mxu0 0
    %3142 = vmatmul.mubr.bf16.gmra.mrb[0].mxu0 %v1110
    %v3143 = vpop.f32.mrb[0].mxu0
    %v3144 = vadd.f32 0.0, %v3143
    %v3145 = vpop.f32.mrb[0].mxu0
    %v3146 = vpop.f32.mrb[0].mxu0
    %v3147 = vadd.f32 0.0, %v3146
    %v3148 = vpop.f32.mrb[0].mxu0
    %3149 = vmatprep.mubr.bf16.mxu0 0
    %3150 = vmatmul.mubr.bf16.gmra.mrb[0].mxu0 %v1113
    %v3151 = vpop.f32.mrb[0].mxu0
    %v3152 = vadd.f32 0.0, %v3151
    %v3153 = vpop.f32.mrb[0].mxu0
    %v3154 = vpop.f32.mrb[0].mxu0
    %v3155 = vadd.f32 0.0, %v3154
    %v3156 = vpop.f32.mrb[0].mxu0
    %3157 = vmatprep.mubr.bf16.mxu0 0
    %3158 = vmatmul.mubr.bf16.gmra.mrb[0].mxu0 %v1116
    %v3159 = vpop.f32.mrb[0].mxu0
    %v3160 = vadd.f32 0.0, %v3159
    %v3161 = vpop.f32.mrb[0].mxu0
    %v3162 = vpop.f32.mrb[0].mxu0
    %v3163 = vadd.f32 0.0, %v3162
    %v3164 = vpop.f32.mrb[0].mxu0
    %3165 = vmatprep.mubr.bf16.mxu0 0
    %3166 = vmatmul.mubr.bf16.gmra.mrb[0].mxu0 %v1119
    %v3167 = vpop.f32.mrb[0].mxu0
    %v3168 = vadd.f32 0.0, %v3167
    %v3169 = vpop.f32.mrb[0].mxu0
    %v3170 = vpop.f32.mrb[0].mxu0
    %v3171 = vadd.f32 0.0, %v3170
    %v3172 = vpop.f32.mrb[0].mxu0
    %3173 = vmatprep.mubr.bf16.mxu0 0
    %3174 = vmatmul.mubr.bf16.gmra.mrb[0].mxu0 %v1122
    %v3175 = vpop.f32.mrb[0].mxu0
    %v3176 = vadd.f32 0.0, %v3175
    %v3177 = vpop.f32.mrb[0].mxu0
    %v3178 = vpop.f32.mrb[0].mxu0
    %v3179 = vadd.f32 0.0, %v3178
    %v3180 = vpop.f32.mrb[0].mxu0
    %3181 = vmatprep.mubr.bf16.mxu0 0
    %3182 = vmatmul.mubr.bf16.gmra.mrb[0].mxu0 %v1125
    %v3183 = vpop.f32.mrb[0].mxu0
    %v3184 = vadd.f32 0.0, %v3183
    %v3185 = vpop.f32.mrb[0].mxu0
    %v3186 = vpop.f32.mrb[0].mxu0
    %v3187 = vadd.f32 0.0, %v3186
    %v3188 = vpop.f32.mrb[0].mxu0
    %3189 = vmatprep.mubr.bf16.mxu0 0
    %3190 = vmatmul.mubr.bf16.gmra.mrb[0].mxu0 %v1128
    %v3191 = vpop.f32.mrb[0].mxu0
    %v3192 = vadd.f32 0.0, %v3191
    %v3193 = vpop.f32.mrb[0].mxu0
    %v3194 = vpop.f32.mrb[0].mxu0
    %v3195 = vadd.f32 0.0, %v3194
    %v3196 = vpop.f32.mrb[0].mxu0
    %3197 = vmatprep.mubr.bf16.mxu0 0
    %3198 = vmatmul.mubr.bf16.gmra.mrb[0].mxu0 %v1131
    %v3199 = vpop.f32.mrb[0].mxu0
    %v3200 = vadd.f32 0.0, %v3199
    %v3201 = vpop.f32.mrb[0].mxu0
    %v3202 = vpop.f32.mrb[0].mxu0
    %v3203 = vadd.f32 0.0, %v3202
    %v3204 = vpop.f32.mrb[0].mxu0
    %3205 = vmatprep.mubr.bf16.mxu0 0
    %3206 = vmatmul.mubr.bf16.gmra.mrb[0].mxu0 %v1134
    %v3207 = vpop.f32.mrb[0].mxu0
    %v3208 = vadd.f32 0.0, %v3207
    %v3209 = vpop.f32.mrb[0].mxu0
    %v3210 = vpop.f32.mrb[0].mxu0
    %v3211 = vadd.f32 0.0, %v3210
    %v3212 = vpop.f32.mrb[0].mxu0
    %3213 = vmatprep.mubr.bf16.mxu0 0
    %3214 = vmatmul.mubr.bf16.gmra.mrb[0].mxu0 %v1137
    %v3215 = vpop.f32.mrb[0].mxu0
    %v3216 = vadd.f32 0.0, %v3215
    %v3217 = vpop.f32.mrb[0].mxu0
    %v3218 = vpop.f32.mrb[0].mxu0
    %v3219 = vadd.f32 0.0, %v3218
    %v3220 = vpop.f32.mrb[0].mxu0
    %3221 = vdwg.mxu0
    %v3270 = vcombine.high %v3032, %v3032
    %v3271 = vcombine.high %v3035, %v3035
    %v3272 = vcombine.high %v3040, %v3040
    %v3273 = vcombine.high %v3043, %v3043
    %v3274 = vcombine.high %v3048, %v3048
    %v3275 = vcombine.high %v3051, %v3051
    %v3276 = vcombine.high %v3056, %v3056
    %v3277 = vcombine.high %v3059, %v3059
    %v3278 = vcombine.high %v3064, %v3064
    %v3279 = vcombine.high %v3067, %v3067
    %v3280 = vcombine.high %v3072, %v3072
    %v3281 = vcombine.high %v3075, %v3075
    %v3282 = vcombine.high %v3080, %v3080
    %v3283 = vcombine.high %v3083, %v3083
    %v3284 = vcombine.high %v3088, %v3088
    %v3285 = vcombine.high %v3091, %v3091
    %v3286 = vcombine.high %v3096, %v3096
    %v3287 = vcombine.high %v3099, %v3099
    %v3288 = vcombine.high %v3104, %v3104
    %v3289 = vcombine.high %v3107, %v3107
    %v3290 = vcombine.high %v3112, %v3112
    %v3291 = vcombine.high %v3115, %v3115
    %v3292 = vcombine.high %v3120, %v3120
    %v3293 = vcombine.high %v3123, %v3123
    %v3294 = vcombine.high %v3128, %v3128
    %v3295 = vcombine.high %v3131, %v3131
    %v3296 = vcombine.high %v3136, %v3136
    %v3297 = vcombine.high %v3139, %v3139
    %v3298 = vcombine.high %v3144, %v3144
    %v3299 = vcombine.high %v3147, %v3147
    %v3300 = vcombine.high %v3152, %v3152
    %v3301 = vcombine.high %v3155, %v3155
    %v3302 = vcombine.high %v3160, %v3160
    %v3303 = vcombine.high %v3163, %v3163
    %v3304 = vcombine.high %v3168, %v3168
    %v3305 = vcombine.high %v3171, %v3171
    %v3306 = vcombine.high %v3176, %v3176
    %v3307 = vcombine.high %v3179, %v3179
    %v3308 = vcombine.high %v3184, %v3184
    %v3309 = vcombine.high %v3187, %v3187
    %v3310 = vcombine.high %v3192, %v3192
    %v3311 = vcombine.high %v3195, %v3195
    %v3312 = vcombine.high %v3200, %v3200
    %v3313 = vcombine.high %v3203, %v3203
    %v3314 = vcombine.high %v3208, %v3208
    %v3315 = vcombine.high %v3211, %v3211
    %v3316 = vcombine.high %v3216, %v3216
    %v3317 = vcombine.high %v3219, %v3219
    %vm3318 = vcmask 1044484
    %vm3319 = vmor %vm1139, %vm3318
    %v3320 = vrot.slane %v3032, 7
    %v3321 = vrot.slane %v3320, 4
    %v3322 = vrot.slane %v3270, 7
    %v3323 = vsel %vm3319, %v3321, %v3322
    %v3324 = vrot.slane %v3322, 4
    %v3325 = vrot.slane %v3035, 7
    %v3326 = vsel %vm3319, %v3324, %v3325
    %v3327 = vrot.slane %v3271, 7
    %v3328 = vrot.slane %v3327, 4
    %v3329 = vrot.slane %v3040, 7
    %v3330 = vsel %vm3319, %v3328, %v3329
    %v3331 = vrot.slane %v3329, 4
    %v3332 = vrot.slane %v3272, 7
    %v3333 = vsel %vm3319, %v3331, %v3332
    %v3334 = vrot.slane %v3043, 7
    %v3335 = vrot.slane %v3334, 4
    %v3336 = vrot.slane %v3273, 7
    %v3337 = vsel %vm3319, %v3335, %v3336
    %v3338 = vrot.slane %v3336, 4
    %v3339 = vrot.slane %v3048, 7
    %v3340 = vsel %vm3319, %v3338, %v3339
    %v3341 = vrot.slane %v3274, 7
    %v3342 = vrot.slane %v3341, 4
    %v3343 = vrot.slane %v3051, 7
    %v3344 = vsel %vm3319, %v3342, %v3343
    %v3345 = vrot.slane %v3343, 4
    %v3346 = vrot.slane %v3275, 7
    %v3347 = vsel %vm3319, %v3345, %v3346
    %v3348 = vrot.slane %v3056, 7
    %v3349 = vrot.slane %v3348, 4
    %v3350 = vrot.slane %v3276, 7
    %v3351 = vsel %vm3319, %v3349, %v3350
    %v3352 = vrot.slane %v3350, 4
    %v3353 = vrot.slane %v3059, 7
    %v3354 = vsel %vm3319, %v3352, %v3353
    %v3355 = vrot.slane %v3277, 7
    %v3356 = vrot.slane %v3355, 4
    %v3357 = vrot.slane %v3064, 7
    %v3358 = vsel %vm3319, %v3356, %v3357
    %v3359 = vrot.slane %v3357, 4
    %v3360 = vrot.slane %v3278, 7
    %v3361 = vsel %vm3319, %v3359, %v3360
    %v3362 = vrot.slane %v3067, 7
    %v3363 = vrot.slane %v3362, 4
    %v3364 = vrot.slane %v3279, 7
    %v3365 = vsel %vm3319, %v3363, %v3364
    %v3366 = vrot.slane %v3364, 4
    %v3367 = vrot.slane %v3072, 7
    %v3368 = vsel %vm3319, %v3366, %v3367
    %v3369 = vrot.slane %v3280, 7
    %v3370 = vrot.slane %v3369, 4
    %v3371 = vrot.slane %v3075, 7
    %v3372 = vsel %vm3319, %v3370, %v3371
    %v3373 = vrot.slane %v3371, 4
    %v3374 = vrot.slane %v3281, 7
    %v3375 = vsel %vm3319, %v3373, %v3374
    %v3376 = vrot.slane %v3080, 7
    %v3377 = vrot.slane %v3376, 4
    %v3378 = vrot.slane %v3282, 7
    %v3379 = vsel %vm3319, %v3377, %v3378
    %v3380 = vrot.slane %v3378, 4
    %v3381 = vrot.slane %v3083, 7
    %v3382 = vsel %vm3319, %v3380, %v3381
    %v3383 = vrot.slane %v3283, 7
    %v3384 = vrot.slane %v3383, 4
    %v3385 = vrot.slane %v3088, 7
    %v3386 = vsel %vm3319, %v3384, %v3385
    %v3387 = vrot.slane %v3385, 4
    %v3388 = vrot.slane %v3284, 7
    %v3389 = vsel %vm3319, %v3387, %v3388
    %v3390 = vrot.slane %v3091, 7
    %v3391 = vrot.slane %v3390, 4
    %v3392 = vrot.slane %v3285, 7
    %v3393 = vsel %vm3319, %v3391, %v3392
    %v3394 = vrot.slane %v3392, 4
    %v3395 = vrot.slane %v3096, 7
    %v3396 = vsel %vm3319, %v3394, %v3395
    %v3397 = vrot.slane %v3286, 7
    %v3398 = vrot.slane %v3397, 4
    %v3399 = vrot.slane %v3099, 7
    %v3400 = vsel %vm3319, %v3398, %v3399
    %v3401 = vrot.slane %v3399, 4
    %v3402 = vrot.slane %v3287, 7
    %v3403 = vsel %vm3319, %v3401, %v3402
    %v3404 = vrot.slane %v3104, 7
    %v3405 = vrot.slane %v3404, 4
    %v3406 = vrot.slane %v3288, 7
    %v3407 = vsel %vm3319, %v3405, %v3406
    %v3408 = vrot.slane %v3406, 4
    %v3409 = vrot.slane %v3107, 7
    %v3410 = vsel %vm3319, %v3408, %v3409
    %v3411 = vrot.slane %v3289, 7
    %v3412 = vrot.slane %v3411, 4
    %v3413 = vrot.slane %v3112, 7
    %v3414 = vsel %vm3319, %v3412, %v3413
    %v3415 = vrot.slane %v3413, 4
    %v3416 = vrot.slane %v3290, 7
    %v3417 = vsel %vm3319, %v3415, %v3416
    %v3418 = vrot.slane %v3115, 7
    %v3419 = vrot.slane %v3418, 4
    %v3420 = vrot.slane %v3291, 7
    %v3421 = vsel %vm3319, %v3419, %v3420
    %v3422 = vrot.slane %v3420, 4
    %v3423 = vrot.slane %v3120, 7
    %v3424 = vsel %vm3319, %v3422, %v3423
    %v3425 = vrot.slane %v3292, 7
    %v3426 = vrot.slane %v3425, 4
    %v3427 = vrot.slane %v3123, 7
    %v3428 = vsel %vm3319, %v3426, %v3427
    %v3429 = vrot.slane %v3427, 4
    %v3430 = vrot.slane %v3293, 7
    %v3431 = vsel %vm3319, %v3429, %v3430
    %v3432 = vrot.slane %v3128, 7
    %v3433 = vrot.slane %v3432, 4
    %v3434 = vrot.slane %v3294, 7
    %v3435 = vsel %vm3319, %v3433, %v3434
    %v3436 = vrot.slane %v3434, 4
    %v3437 = vrot.slane %v3131, 7
    %v3438 = vsel %vm3319, %v3436, %v3437
    %v3439 = vrot.slane %v3295, 7
    %v3440 = vrot.slane %v3439, 4
    %v3441 = vrot.slane %v3136, 7
    %v3442 = vsel %vm3319, %v3440, %v3441
    %v3443 = vrot.slane %v3441, 4
    %v3444 = vrot.slane %v3296, 7
    %v3445 = vsel %vm3319, %v3443, %v3444
    %v3446 = vrot.slane %v3139, 7
    %v3447 = vrot.slane %v3446, 4
    %v3448 = vrot.slane %v3297, 7
    %v3449 = vsel %vm3319, %v3447, %v3448
    %v3450 = vrot.slane %v3448, 4
    %v3451 = vrot.slane %v3144, 7
    %v3452 = vsel %vm3319, %v3450, %v3451
    %v3453 = vrot.slane %v3298, 7
    %v3454 = vrot.slane %v3453, 4
    %v3455 = vrot.slane %v3147, 7
    %v3456 = vsel %vm3319, %v3454, %v3455
    %v3457 = vrot.slane %v3455, 4
    %v3458 = vrot.slane %v3299, 7
    %v3459 = vsel %vm3319, %v3457, %v3458
    %v3460 = vrot.slane %v3152, 7
    %v3461 = vrot.slane %v3460, 4
    %v3462 = vrot.slane %v3300, 7
    %v3463 = vsel %vm3319, %v3461, %v3462
    %v3464 = vrot.slane %v3462, 4
    %v3465 = vrot.slane %v3155, 7
    %v3466 = vsel %vm3319, %v3464, %v3465
    %v3467 = vrot.slane %v3301, 7
    %v3468 = vrot.slane %v3467, 4
    %v3469 = vrot.slane %v3160, 7
    %v3470 = vsel %vm3319, %v3468, %v3469
    %v3471 = vrot.slane %v3469, 4
    %v3472 = vrot.slane %v3302, 7
    %v3473 = vsel %vm3319, %v3471, %v3472
    %v3474 = vrot.slane %v3163, 7
    %v3475 = vrot.slane %v3474, 4
    %v3476 = vrot.slane %v3303, 7
    %v3477 = vsel %vm3319, %v3475, %v3476
    %v3478 = vrot.slane %v3476, 4
    %v3479 = vrot.slane %v3168, 7
    %v3480 = vsel %vm3319, %v3478, %v3479
    %v3481 = vrot.slane %v3304, 7
    %v3482 = vrot.slane %v3481, 4
    %v3483 = vrot.slane %v3171, 7
    %v3484 = vsel %vm3319, %v3482, %v3483
    %v3485 = vrot.slane %v3483, 4
    %v3486 = vrot.slane %v3305, 7
    %v3487 = vsel %vm3319, %v3485, %v3486
    %v3488 = vrot.slane %v3176, 7
    %v3489 = vrot.slane %v3488, 4
    %v3490 = vrot.slane %v3306, 7
    %v3491 = vsel %vm3319, %v3489, %v3490
    %v3492 = vrot.slane %v3490, 4
    %v3493 = vrot.slane %v3179, 7
    %v3494 = vsel %vm3319, %v3492, %v3493
    %v3495 = vrot.slane %v3307, 7
    %v3496 = vrot.slane %v3495, 4
    %v3497 = vrot.slane %v3184, 7
    %v3498 = vsel %vm3319, %v3496, %v3497
    %v3499 = vrot.slane %v3497, 4
    %v3500 = vrot.slane %v3308, 7
    %v3501 = vsel %vm3319, %v3499, %v3500
    %v3502 = vrot.slane %v3187, 7
    %v3503 = vrot.slane %v3502, 4
    %v3504 = vrot.slane %v3309, 7
    %v3505 = vsel %vm3319, %v3503, %v3504
    %v3506 = vrot.slane %v3504, 4
    %v3507 = vrot.slane %v3192, 7
    %v3508 = vsel %vm3319, %v3506, %v3507
    %v3509 = vrot.slane %v3310, 7
    %v3510 = vrot.slane %v3509, 4
    %v3511 = vrot.slane %v3195, 7
    %v3512 = vsel %vm3319, %v3510, %v3511
    %v3513 = vrot.slane %v3511, 4
    %v3514 = vrot.slane %v3311, 7
    %v3515 = vsel %vm3319, %v3513, %v3514
    %v3516 = vrot.slane %v3200, 7
    %v3517 = vrot.slane %v3516, 4
    %v3518 = vrot.slane %v3312, 7
    %v3519 = vsel %vm3319, %v3517, %v3518
    %v3520 = vrot.slane %v3518, 4
    %v3521 = vrot.slane %v3203, 7
    %v3522 = vsel %vm3319, %v3520, %v3521
    %v3523 = vrot.slane %v3313, 7
    %v3524 = vrot.slane %v3523, 4
    %v3525 = vrot.slane %v3208, 7
    %v3526 = vsel %vm3319, %v3524, %v3525
    %v3527 = vrot.slane %v3525, 4
    %v3528 = vrot.slane %v3314, 7
    %v3529 = vsel %vm3319, %v3527, %v3528
    %v3530 = vrot.slane %v3211, 7
    %v3531 = vrot.slane %v3530, 4
    %v3532 = vrot.slane %v3315, 7
    %v3533 = vsel %vm3319, %v3531, %v3532
    %v3534 = vrot.slane %v3532, 4
    %v3535 = vrot.slane %v3216, 7
    %v3536 = vsel %vm3319, %v3534, %v3535
    %v3537 = vrot.slane %v3316, 7
    %v3538 = vrot.slane %v3537, 4
    %v3539 = vrot.slane %v3219, 7
    %v3540 = vsel %vm3319, %v3538, %v3539
    %v3541 = vrot.slane %v3539, 4
    %v3542 = vrot.slane %v3317, 7
    %v3543 = vsel %vm3319, %v3541, %v3542
    %v3608 = vadd.f32 %v2894, %v3323
    %v3609 = vadd.f32 %v2895, %v3326
    %v3610 = vadd.f32 %v2896, %v3330
    %v3611 = vadd.f32 %v2897, %v3333
    %v3612 = vadd.f32 %v2898, %v3337
    %v3613 = vadd.f32 %v2899, %v3340
    %v3614 = vadd.f32 %v2900, %v3344
    %v3615 = vadd.f32 %v2901, %v3347
    %v3616 = vadd.f32 %v2902, %v3351
    %v3617 = vadd.f32 %v2903, %v3354
    %v3618 = vadd.f32 %v2904, %v3358
    %v3619 = vadd.f32 %v2905, %v3361
    %v3620 = vadd.f32 %v2906, %v3365
    %v3621 = vadd.f32 %v2907, %v3368
    %v3622 = vadd.f32 %v2908, %v3372
    %v3623 = vadd.f32 %v2909, %v3375
    %v3624 = vadd.f32 %v2910, %v3379
    %v3625 = vadd.f32 %v2911, %v3382
    %v3626 = vadd.f32 %v2912, %v3386
    %v3627 = vadd.f32 %v2913, %v3389
    %v3628 = vadd.f32 %v2914, %v3393
    %v3629 = vadd.f32 %v2915, %v3396
    %v3630 = vadd.f32 %v2916, %v3400
    %v3631 = vadd.f32 %v2917, %v3403
    %v3632 = vadd.f32 %v2918, %v3407
    %v3633 = vadd.f32 %v2919, %v3410
    %v3634 = vadd.f32 %v2920, %v3414
    %v3635 = vadd.f32 %v2921, %v3417
    %v3636 = vadd.f32 %v2922, %v3421
    %v3637 = vadd.f32 %v2923, %v3424
    %v3638 = vadd.f32 %v2924, %v3428
    %v3639 = vadd.f32 %v2925, %v3431
    %v3640 = vadd.f32 %v2926, %v3435
    %v3641 = vadd.f32 %v2927, %v3438
    %v3642 = vadd.f32 %v2928, %v3442
    %v3643 = vadd.f32 %v2929, %v3445
    %v3644 = vadd.f32 %v2930, %v3449
    %v3645 = vadd.f32 %v2931, %v3452
    %v3646 = vadd.f32 %v2932, %v3456
    %v3647 = vadd.f32 %v2933, %v3459
    %v3648 = vadd.f32 %v2934, %v3463
    %v3649 = vadd.f32 %v2935, %v3466
    %v3650 = vadd.f32 %v2936, %v3470
    %v3651 = vadd.f32 %v2937, %v3473
    %v3652 = vadd.f32 %v2938, %v3477
    %v3653 = vadd.f32 %v2939, %v3480
    %v3654 = vadd.f32 %v2940, %v3484
    %v3655 = vadd.f32 %v2941, %v3487
    %v3656 = vadd.f32 %v2942, %v3491
    %v3657 = vadd.f32 %v2943, %v3494
    %v3658 = vadd.f32 %v2944, %v3498
    %v3659 = vadd.f32 %v2945, %v3501
    %v3660 = vadd.f32 %v2946, %v3505
    %v3661 = vadd.f32 %v2947, %v3508
    %v3662 = vadd.f32 %v2948, %v3512
    %v3663 = vadd.f32 %v2949, %v3515
    %v3664 = vadd.f32 %v2950, %v3519
    %v3665 = vadd.f32 %v2951, %v3522
    %v3666 = vadd.f32 %v2952, %v3526
    %v3667 = vadd.f32 %v2953, %v3529
    %v3668 = vadd.f32 %v2954, %v3533
    %v3669 = vadd.f32 %v2955, %v3536
    %v3670 = vadd.f32 %v2956, %v3540
    %v3671 = vadd.f32 %v2957, %v3543
    %v3672 = vld [vmem:[%s1 + $0x64] sm:$0xf]
    %v3673 = vld [vmem:[%s1 + $0x68] sm:$0xf]
    %v3674 = vld [vmem:[%s1 + $0x6c] sm:$0xf]
    %v3675 = vld [vmem:[%s1 + $0x70] sm:$0xf]
    %v3676 = vld [vmem:[%s1 + $0x74] sm:$0xf]
    %v3677 = vld [vmem:[%s1 + $0x78] sm:$0xf]
    %v3678 = vld [vmem:[%s1 + $0x7c] sm:$0x1]
    %v3686 = vunpack.c.l.b16 %v3672
    %v3687 = vunpack.c.l.b16 %v3673
    %v3688 = vunpack.c.l.b16 %v3674
    %v3689 = vunpack.c.l.b16 %v3675
    %v3690 = vunpack.c.l.b16 %v3676
    %v3691 = vunpack.c.l.b16 %v3677
    %v3692 = vunpack.c.l.b16 %v3678
    %v3693 = vpack.c.b16 %v3687, %v3686
    %v3694 = vpack.c.b16 %v3689, %v3688
    %v3695 = vpack.c.b16 %v3691, %v3690
    %v3696 = vpack.c.b16 %v3692, %v3692
    %v3701 = vsel %vm1139, %v3696, 0
    %3703 = vmatprep.subr.bf16.mxu0 0
    %3704 = vmatpush1.bf16.msra.mxu0 %v3693
    %3705 = vmatprep.subr.bf16.mxu0 0
    %3706 = vmatpush1.bf16.msra.mxu0 %v3694
    %3707 = vmatprep.subr.bf16.mxu0 0
    %3708 = vmatpush1.bf16.msra.mxu0 %v3695
    %3709 = vmatprep.subr.bf16.mxu0 0
    %3710 = vmatpush1.bf16.msra.mxu0 %v3701
    %3711 = vmatprep.subr.bf16.mxu0 0
    %3712 = vmatpush1.bf16.msra.mxu0 0
    %3713 = vmatprep.subr.bf16.mxu0 0
    %3714 = vmatpush1.bf16.msra.mxu0 0
    %3715 = vmatprep.subr.bf16.mxu0 0
    %3716 = vmatpush1.bf16.msra.mxu0 0
    %3717 = vmatprep.subr.bf16.mxu0 0
    %3718 = vmatpush1.bf16.msra.mxu0 0
    %3719 = vmatprep.subr.bf16.mxu0 0
    %3720 = vmatpush1.bf16.msra.mxu0 0
    %3721 = vmatprep.subr.bf16.mxu0 0
    %3722 = vmatpush1.bf16.msra.mxu0 0
    %3723 = vmatprep.subr.bf16.mxu0 0
    %3724 = vmatpush1.bf16.msra.mxu0 0
    %3725 = vmatprep.subr.bf16.mxu0 0
    %3726 = vmatpush1.bf16.msra.mxu0 0
    %3727 = vmatprep.subr.bf16.mxu0 0
    %3728 = vmatpush1.bf16.msra.mxu0 0
    %3729 = vmatprep.subr.bf16.mxu0 0
    %3730 = vmatpush1.bf16.msra.mxu0 0
    %3731 = vmatprep.subr.bf16.mxu0 0
    %3732 = vmatpush1.bf16.msra.mxu0 0
    %3733 = vmatprep.subr.bf16.mxu0 0
    %3734 = vmatpush1.bf16.msra.mxu0 0
    %3735 = vmatprep.mubr.bf16.mxu0 0
    %3736 = vmatmul.mubr.bf16.gmra.mrb[0].mxu0 %v1068
    %v3737 = vpop.f32.mrb[0].mxu0
    %v3738 = vadd.f32 0.0, %v3737
    %v3739 = vpop.f32.mrb[0].mxu0
    %v3740 = vpop.f32.mrb[0].mxu0
    %v3741 = vadd.f32 0.0, %v3740
    %v3742 = vpop.f32.mrb[0].mxu0
    %3743 = vmatprep.mubr.bf16.mxu0 0
    %3744 = vmatmul.mubr.bf16.gmra.mrb[0].mxu0 %v1071
    %v3745 = vpop.f32.mrb[0].mxu0
    %v3746 = vadd.f32 0.0, %v3745
    %v3747 = vpop.f32.mrb[0].mxu0
    %v3748 = vpop.f32.mrb[0].mxu0
    %v3749 = vadd.f32 0.0, %v3748
    %v3750 = vpop.f32.mrb[0].mxu0
    %3751 = vmatprep.mubr.bf16.mxu0 0
    %3752 = vmatmul.mubr.bf16.gmra.mrb[0].mxu0 %v1074
    %v3753 = vpop.f32.mrb[0].mxu0
    %v3754 = vadd.f32 0.0, %v3753
    %v3755 = vpop.f32.mrb[0].mxu0
    %v3756 = vpop.f32.mrb[0].mxu0
    %v3757 = vadd.f32 0.0, %v3756
    %v3758 = vpop.f32.mrb[0].mxu0
    %3759 = vmatprep.mubr.bf16.mxu0 0
    %3760 = vmatmul.mubr.bf16.gmra.mrb[0].mxu0 %v1077
    %v3761 = vpop.f32.mrb[0].mxu0
    %v3762 = vadd.f32 0.0, %v3761
    %v3763 = vpop.f32.mrb[0].mxu0
    %v3764 = vpop.f32.mrb[0].mxu0
    %v3765 = vadd.f32 0.0, %v3764
    %v3766 = vpop.f32.mrb[0].mxu0
    %3767 = vmatprep.mubr.bf16.mxu0 0
    %3768 = vmatmul.mubr.bf16.gmra.mrb[0].mxu0 %v1080
    %v3769 = vpop.f32.mrb[0].mxu0
    %v3770 = vadd.f32 0.0, %v3769
    %v3771 = vpop.f32.mrb[0].mxu0
    %v3772 = vpop.f32.mrb[0].mxu0
    %v3773 = vadd.f32 0.0, %v3772
    %v3774 = vpop.f32.mrb[0].mxu0
    %3775 = vmatprep.mubr.bf16.mxu0 0
    %3776 = vmatmul.mubr.bf16.gmra.mrb[0].mxu0 %v1083
    %v3777 = vpop.f32.mrb[0].mxu0
    %v3778 = vadd.f32 0.0, %v3777
    %v3779 = vpop.f32.mrb[0].mxu0
    %v3780 = vpop.f32.mrb[0].mxu0
    %v3781 = vadd.f32 0.0, %v3780
    %v3782 = vpop.f32.mrb[0].mxu0
    %3783 = vmatprep.mubr.bf16.mxu0 0
    %3784 = vmatmul.mubr.bf16.gmra.mrb[0].mxu0 %v1086
    %v3785 = vpop.f32.mrb[0].mxu0
    %v3786 = vadd.f32 0.0, %v3785
    %v3787 = vpop.f32.mrb[0].mxu0
    %v3788 = vpop.f32.mrb[0].mxu0
    %v3789 = vadd.f32 0.0, %v3788
    %v3790 = vpop.f32.mrb[0].mxu0
    %3791 = vmatprep.mubr.bf16.mxu0 0
    %3792 = vmatmul.mubr.bf16.gmra.mrb[0].mxu0 %v1089
    %v3793 = vpop.f32.mrb[0].mxu0
    %v3794 = vadd.f32 0.0, %v3793
    %v3795 = vpop.f32.mrb[0].mxu0
    %v3796 = vpop.f32.mrb[0].mxu0
    %v3797 = vadd.f32 0.0, %v3796
    %v3798 = vpop.f32.mrb[0].mxu0
    %3799 = vmatprep.mubr.bf16.mxu0 0
    %3800 = vmatmul.mubr.bf16.gmra.mrb[0].mxu0 %v1092
    %v3801 = vpop.f32.mrb[0].mxu0
    %v3802 = vadd.f32 0.0, %v3801
    %v3803 = vpop.f32.mrb[0].mxu0
    %v3804 = vpop.f32.mrb[0].mxu0
    %v3805 = vadd.f32 0.0, %v3804
    %v3806 = vpop.f32.mrb[0].mxu0
    %3807 = vmatprep.mubr.bf16.mxu0 0
    %3808 = vmatmul.mubr.bf16.gmra.mrb[0].mxu0 %v1095
    %v3809 = vpop.f32.mrb[0].mxu0
    %v3810 = vadd.f32 0.0, %v3809
    %v3811 = vpop.f32.mrb[0].mxu0
    %v3812 = vpop.f32.mrb[0].mxu0
    %v3813 = vadd.f32 0.0, %v3812
    %v3814 = vpop.f32.mrb[0].mxu0
    %3815 = vmatprep.mubr.bf16.mxu0 0
    %3816 = vmatmul.mubr.bf16.gmra.mrb[0].mxu0 %v1098
    %v3817 = vpop.f32.mrb[0].mxu0
    %v3818 = vadd.f32 0.0, %v3817
    %v3819 = vpop.f32.mrb[0].mxu0
    %v3820 = vpop.f32.mrb[0].mxu0
    %v3821 = vadd.f32 0.0, %v3820
    %v3822 = vpop.f32.mrb[0].mxu0
    %3823 = vmatprep.mubr.bf16.mxu0 0
    %3824 = vmatmul.mubr.bf16.gmra.mrb[0].mxu0 %v1101
    %v3825 = vpop.f32.mrb[0].mxu0
    %v3826 = vadd.f32 0.0, %v3825
    %v3827 = vpop.f32.mrb[0].mxu0
    %v3828 = vpop.f32.mrb[0].mxu0
    %v3829 = vadd.f32 0.0, %v3828
    %v3830 = vpop.f32.mrb[0].mxu0
    %3831 = vmatprep.mubr.bf16.mxu0 0
    %3832 = vmatmul.mubr.bf16.gmra.mrb[0].mxu0 %v1104
    %v3833 = vpop.f32.mrb[0].mxu0
    %v3834 = vadd.f32 0.0, %v3833
    %v3835 = vpop.f32.mrb[0].mxu0
    %v3836 = vpop.f32.mrb[0].mxu0
    %v3837 = vadd.f32 0.0, %v3836
    %v3838 = vpop.f32.mrb[0].mxu0
    %3839 = vmatprep.mubr.bf16.mxu0 0
    %3840 = vmatmul.mubr.bf16.gmra.mrb[0].mxu0 %v1107
    %v3841 = vpop.f32.mrb[0].mxu0
    %v3842 = vadd.f32 0.0, %v3841
    %v3843 = vpop.f32.mrb[0].mxu0
    %v3844 = vpop.f32.mrb[0].mxu0
    %v3845 = vadd.f32 0.0, %v3844
    %v3846 = vpop.f32.mrb[0].mxu0
    %3847 = vmatprep.mubr.bf16.mxu0 0
    %3848 = vmatmul.mubr.bf16.gmra.mrb[0].mxu0 %v1110
    %v3849 = vpop.f32.mrb[0].mxu0
    %v3850 = vadd.f32 0.0, %v3849
    %v3851 = vpop.f32.mrb[0].mxu0
    %v3852 = vpop.f32.mrb[0].mxu0
    %v3853 = vadd.f32 0.0, %v3852
    %v3854 = vpop.f32.mrb[0].mxu0
    %3855 = vmatprep.mubr.bf16.mxu0 0
    %3856 = vmatmul.mubr.bf16.gmra.mrb[0].mxu0 %v1113
    %v3857 = vpop.f32.mrb[0].mxu0
    %v3858 = vadd.f32 0.0, %v3857
    %v3859 = vpop.f32.mrb[0].mxu0
    %v3860 = vpop.f32.mrb[0].mxu0
    %v3861 = vadd.f32 0.0, %v3860
    %v3862 = vpop.f32.mrb[0].mxu0
    %3863 = vmatprep.mubr.bf16.mxu0 0
    %3864 = vmatmul.mubr.bf16.gmra.mrb[0].mxu0 %v1116
    %v3865 = vpop.f32.mrb[0].mxu0
    %v3866 = vadd.f32 0.0, %v3865
    %v3867 = vpop.f32.mrb[0].mxu0
    %v3868 = vpop.f32.mrb[0].mxu0
    %v3869 = vadd.f32 0.0, %v3868
    %v3870 = vpop.f32.mrb[0].mxu0
    %3871 = vmatprep.mubr.bf16.mxu0 0
    %3872 = vmatmul.mubr.bf16.gmra.mrb[0].mxu0 %v1119
    %v3873 = vpop.f32.mrb[0].mxu0
    %v3874 = vadd.f32 0.0, %v3873
    %v3875 = vpop.f32.mrb[0].mxu0
    %v3876 = vpop.f32.mrb[0].mxu0
    %v3877 = vadd.f32 0.0, %v3876
    %v3878 = vpop.f32.mrb[0].mxu0
    %3879 = vmatprep.mubr.bf16.mxu0 0
    %3880 = vmatmul.mubr.bf16.gmra.mrb[0].mxu0 %v1122
    %v3881 = vpop.f32.mrb[0].mxu0
    %v3882 = vadd.f32 0.0, %v3881
    %v3883 = vpop.f32.mrb[0].mxu0
    %v3884 = vpop.f32.mrb[0].mxu0
    %v3885 = vadd.f32 0.0, %v3884
    %v3886 = vpop.f32.mrb[0].mxu0
    %3887 = vmatprep.mubr.bf16.mxu0 0
    %3888 = vmatmul.mubr.bf16.gmra.mrb[0].mxu0 %v1125
    %v3889 = vpop.f32.mrb[0].mxu0
    %v3890 = vadd.f32 0.0, %v3889
    %v3891 = vpop.f32.mrb[0].mxu0
    %v3892 = vpop.f32.mrb[0].mxu0
    %v3893 = vadd.f32 0.0, %v3892
    %v3894 = vpop.f32.mrb[0].mxu0
    %3895 = vmatprep.mubr.bf16.mxu0 0
    %3896 = vmatmul.mubr.bf16.gmra.mrb[0].mxu0 %v1128
    %v3897 = vpop.f32.mrb[0].mxu0
    %v3898 = vadd.f32 0.0, %v3897
    %v3899 = vpop.f32.mrb[0].mxu0
    %v3900 = vpop.f32.mrb[0].mxu0
    %v3901 = vadd.f32 0.0, %v3900
    %v3902 = vpop.f32.mrb[0].mxu0
    %3903 = vmatprep.mubr.bf16.mxu0 0
    %3904 = vmatmul.mubr.bf16.gmra.mrb[0].mxu0 %v1131
    %v3905 = vpop.f32.mrb[0].mxu0
    %v3906 = vadd.f32 0.0, %v3905
    %v3907 = vpop.f32.mrb[0].mxu0
    %v3908 = vpop.f32.mrb[0].mxu0
    %v3909 = vadd.f32 0.0, %v3908
    %v3910 = vpop.f32.mrb[0].mxu0
    %3911 = vmatprep.mubr.bf16.mxu0 0
    %3912 = vmatmul.mubr.bf16.gmra.mrb[0].mxu0 %v1134
    %v3913 = vpop.f32.mrb[0].mxu0
    %v3914 = vadd.f32 0.0, %v3913
    %v3915 = vpop.f32.mrb[0].mxu0
    %v3916 = vpop.f32.mrb[0].mxu0
    %v3917 = vadd.f32 0.0, %v3916
    %v3918 = vpop.f32.mrb[0].mxu0
    %3919 = vmatprep.mubr.bf16.mxu0 0
    %3920 = vmatmul.mubr.bf16.gmra.mrb[0].mxu0 %v1137
    %v3921 = vpop.f32.mrb[0].mxu0
    %v3922 = vadd.f32 0.0, %v3921
    %v3923 = vpop.f32.mrb[0].mxu0
    %v3924 = vpop.f32.mrb[0].mxu0
    %v3925 = vadd.f32 0.0, %v3924
    %v3926 = vpop.f32.mrb[0].mxu0
    %3927 = vdwg.mxu0
    %v3960 = vcombine.high %v3738, %v3738
    %v3961 = vcombine.high %v3746, %v3746
    %v3962 = vcombine.high %v3749, %v3749
    %v3963 = vcombine.high %v3757, %v3757
    %v3964 = vcombine.high %v3762, %v3762
    %v3965 = vcombine.high %v3770, %v3770
    %v3966 = vcombine.high %v3773, %v3773
    %v3967 = vcombine.high %v3781, %v3781
    %v3968 = vcombine.high %v3786, %v3786
    %v3969 = vcombine.high %v3794, %v3794
    %v3970 = vcombine.high %v3797, %v3797
    %v3971 = vcombine.high %v3805, %v3805
    %v3972 = vcombine.high %v3810, %v3810
    %v3973 = vcombine.high %v3818, %v3818
    %v3974 = vcombine.high %v3821, %v3821
    %v3975 = vcombine.high %v3829, %v3829
    %v3976 = vcombine.high %v3834, %v3834
    %v3977 = vcombine.high %v3842, %v3842
    %v3978 = vcombine.high %v3845, %v3845
    %v3979 = vcombine.high %v3853, %v3853
    %v3980 = vcombine.high %v3858, %v3858
    %v3981 = vcombine.high %v3866, %v3866
    %v3982 = vcombine.high %v3869, %v3869
    %v3983 = vcombine.high %v3877, %v3877
    %v3984 = vcombine.high %v3882, %v3882
    %v3985 = vcombine.high %v3890, %v3890
    %v3986 = vcombine.high %v3893, %v3893
    %v3987 = vcombine.high %v3901, %v3901
    %v3988 = vcombine.high %v3906, %v3906
    %v3989 = vcombine.high %v3914, %v3914
    %v3990 = vcombine.high %v3917, %v3917
    %v3991 = vcombine.high %v3925, %v3925
    %v4024 = vadd.f32 %v3608, %v3960
    %v4025 = vadd.f32 %v3609, %v3741
    %v4026 = vadd.f32 %v3610, %v3746
    %v4027 = vadd.f32 %v3611, %v3961
    %v4028 = vadd.f32 %v3612, %v3962
    %v4029 = vadd.f32 %v3613, %v3754
    %v4030 = vadd.f32 %v3614, %v3757
    %v4031 = vadd.f32 %v3615, %v3963
    %v4032 = vadd.f32 %v3616, %v3964
    %v4033 = vadd.f32 %v3617, %v3765
    %v4034 = vadd.f32 %v3618, %v3770
    %v4035 = vadd.f32 %v3619, %v3965
    %v4036 = vadd.f32 %v3620, %v3966
    %v4037 = vadd.f32 %v3621, %v3778
    %v4038 = vadd.f32 %v3622, %v3781
    %v4039 = vadd.f32 %v3623, %v3967
    %v4040 = vadd.f32 %v3624, %v3968
    %v4041 = vadd.f32 %v3625, %v3789
    %v4042 = vadd.f32 %v3626, %v3794
    %v4043 = vadd.f32 %v3627, %v3969
    %v4044 = vadd.f32 %v3628, %v3970
    %v4045 = vadd.f32 %v3629, %v3802
    %v4046 = vadd.f32 %v3630, %v3805
    %v4047 = vadd.f32 %v3631, %v3971
    %v4048 = vadd.f32 %v3632, %v3972
    %v4049 = vadd.f32 %v3633, %v3813
    %v4050 = vadd.f32 %v3634, %v3818
    %v4051 = vadd.f32 %v3635, %v3973
    %v4052 = vadd.f32 %v3636, %v3974
    %v4053 = vadd.f32 %v3637, %v3826
    %v4054 = vadd.f32 %v3638, %v3829
    %v4055 = vadd.f32 %v3639, %v3975
    %v4056 = vadd.f32 %v3640, %v3976
    %v4057 = vadd.f32 %v3641, %v3837
    %v4058 = vadd.f32 %v3642, %v3842
    %v4059 = vadd.f32 %v3643, %v3977
    %v4060 = vadd.f32 %v3644, %v3978
    %v4061 = vadd.f32 %v3645, %v3850
    %v4062 = vadd.f32 %v3646, %v3853
    %v4063 = vadd.f32 %v3647, %v3979
    %v4064 = vadd.f32 %v3648, %v3980
    %v4065 = vadd.f32 %v3649, %v3861
    %v4066 = vadd.f32 %v3650, %v3866
    %v4067 = vadd.f32 %v3651, %v3981
    %v4068 = vadd.f32 %v3652, %v3982
    %v4069 = vadd.f32 %v3653, %v3874
    %v4070 = vadd.f32 %v3654, %v3877
    %v4071 = vadd.f32 %v3655, %v3983
    %v4072 = vadd.f32 %v3656, %v3984
    %v4073 = vadd.f32 %v3657, %v3885
    %v4074 = vadd.f32 %v3658, %v3890
    %v4075 = vadd.f32 %v3659, %v3985
    %v4076 = vadd.f32 %v3660, %v3986
    %v4077 = vadd.f32 %v3661, %v3898
    %v4078 = vadd.f32 %v3662, %v3901
    %v4079 = vadd.f32 %v3663, %v3987
    %v4080 = vadd.f32 %v3664, %v3988
    %v4081 = vadd.f32 %v3665, %v3909
    %v4082 = vadd.f32 %v3666, %v3914
    %v4083 = vadd.f32 %v3667, %v3989
    %v4084 = vadd.f32 %v3668, %v3990
    %v4085 = vadd.f32 %v3669, %v3922
    %v4086 = vadd.f32 %v3670, %v3925
    %v4087 = vadd.f32 %v3671, %v3991
    %v4088 = vld [vmem:[%s2] sm:$0x1]
    %v4090 = vlaneseq
    %v4091 = vshrl.u32 %v4090, 7
    %v4092 = vsub.s32 0, %v4091
    %v4093 = vrot.slane %v4088, %v4092
    %v4095 = vcombine.high %v4093, %v4093
    %v4097 = vadd.f32 %v4024, %v4093
    %v4098 = vadd.f32 %v4025, %v4095
    %v4099 = vadd.f32 %v4026, %v4093
    %v4100 = vadd.f32 %v4027, %v4095
    %v4101 = vadd.f32 %v4028, %v4093
    %v4102 = vadd.f32 %v4029, %v4095
    %v4103 = vadd.f32 %v4030, %v4093
    %v4104 = vadd.f32 %v4031, %v4095
    %v4105 = vadd.f32 %v4032, %v4093
    %v4106 = vadd.f32 %v4033, %v4095
    %v4107 = vadd.f32 %v4034, %v4093
    %v4108 = vadd.f32 %v4035, %v4095
    %v4109 = vadd.f32 %v4036, %v4093
    %v4110 = vadd.f32 %v4037, %v4095
    %v4111 = vadd.f32 %v4038, %v4093
    %v4112 = vadd.f32 %v4039, %v4095
    %v4113 = vadd.f32 %v4040, %v4093
    %v4114 = vadd.f32 %v4041, %v4095
    %v4115 = vadd.f32 %v4042, %v4093
    %v4116 = vadd.f32 %v4043, %v4095
    %v4117 = vadd.f32 %v4044, %v4093
    %v4118 = vadd.f32 %v4045, %v4095
    %v4119 = vadd.f32 %v4046, %v4093
    %v4120 = vadd.f32 %v4047, %v4095
    %v4121 = vadd.f32 %v4048, %v4093
    %v4122 = vadd.f32 %v4049, %v4095
    %v4123 = vadd.f32 %v4050, %v4093
    %v4124 = vadd.f32 %v4051, %v4095
    %v4125 = vadd.f32 %v4052, %v4093
    %v4126 = vadd.f32 %v4053, %v4095
    %v4127 = vadd.f32 %v4054, %v4093
    %v4128 = vadd.f32 %v4055, %v4095
    %v4129 = vadd.f32 %v4056, %v4093
    %v4130 = vadd.f32 %v4057, %v4095
    %v4131 = vadd.f32 %v4058, %v4093
    %v4132 = vadd.f32 %v4059, %v4095
    %v4133 = vadd.f32 %v4060, %v4093
    %v4134 = vadd.f32 %v4061, %v4095
    %v4135 = vadd.f32 %v4062, %v4093
    %v4136 = vadd.f32 %v4063, %v4095
    %v4137 = vadd.f32 %v4064, %v4093
    %v4138 = vadd.f32 %v4065, %v4095
    %v4139 = vadd.f32 %v4066, %v4093
    %v4140 = vadd.f32 %v4067, %v4095
    %v4141 = vadd.f32 %v4068, %v4093
    %v4142 = vadd.f32 %v4069, %v4095
    %v4143 = vadd.f32 %v4070, %v4093
    %v4144 = vadd.f32 %v4071, %v4095
    %v4145 = vadd.f32 %v4072, %v4093
    %v4146 = vadd.f32 %v4073, %v4095
    %v4147 = vadd.f32 %v4074, %v4093
    %v4148 = vadd.f32 %v4075, %v4095
    %v4149 = vadd.f32 %v4076, %v4093
    %v4150 = vadd.f32 %v4077, %v4095
    %v4151 = vadd.f32 %v4078, %v4093
    %v4152 = vadd.f32 %v4079, %v4095
    %v4153 = vadd.f32 %v4080, %v4093
    %v4154 = vadd.f32 %v4081, %v4095
    %v4155 = vadd.f32 %v4082, %v4093
    %v4156 = vadd.f32 %v4083, %v4095
    %v4157 = vadd.f32 %v4084, %v4093
    %v4158 = vadd.f32 %v4085, %v4095
    %v4159 = vadd.f32 %v4086, %v4093
    %v4160 = vadd.f32 %v4087, %v4095
    %v4161 = vmax.f32 %v4097, 0.0
    %v4162 = vmax.f32 %v4098, 0.0
    %v4163 = vmax.f32 %v4099, 0.0
    %v4164 = vmax.f32 %v4100, 0.0
    %v4165 = vmax.f32 %v4101, 0.0
    %v4166 = vmax.f32 %v4102, 0.0
    %v4167 = vmax.f32 %v4103, 0.0
    %v4168 = vmax.f32 %v4104, 0.0
    %v4169 = vmax.f32 %v4105, 0.0
    %v4170 = vmax.f32 %v4106, 0.0
    %v4171 = vmax.f32 %v4107, 0.0
    %v4172 = vmax.f32 %v4108, 0.0
    %v4173 = vmax.f32 %v4109, 0.0
    %v4174 = vmax.f32 %v4110, 0.0
    %v4175 = vmax.f32 %v4111, 0.0
    %v4176 = vmax.f32 %v4112, 0.0
    %v4177 = vmax.f32 %v4113, 0.0
    %v4178 = vmax.f32 %v4114, 0.0
    %v4179 = vmax.f32 %v4115, 0.0
    %v4180 = vmax.f32 %v4116, 0.0
    %v4181 = vmax.f32 %v4117, 0.0
    %v4182 = vmax.f32 %v4118, 0.0
    %v4183 = vmax.f32 %v4119, 0.0
    %v4184 = vmax.f32 %v4120, 0.0
    %v4185 = vmax.f32 %v4121, 0.0
    %v4186 = vmax.f32 %v4122, 0.0
    %v4187 = vmax.f32 %v4123, 0.0
    %v4188 = vmax.f32 %v4124, 0.0
    %v4189 = vmax.f32 %v4125, 0.0
    %v4190 = vmax.f32 %v4126, 0.0
    %v4191 = vmax.f32 %v4127, 0.0
    %v4192 = vmax.f32 %v4128, 0.0
    %v4193 = vmax.f32 %v4129, 0.0
    %v4194 = vmax.f32 %v4130, 0.0
    %v4195 = vmax.f32 %v4131, 0.0
    %v4196 = vmax.f32 %v4132, 0.0
    %v4197 = vmax.f32 %v4133, 0.0
    %v4198 = vmax.f32 %v4134, 0.0
    %v4199 = vmax.f32 %v4135, 0.0
    %v4200 = vmax.f32 %v4136, 0.0
    %v4201 = vmax.f32 %v4137, 0.0
    %v4202 = vmax.f32 %v4138, 0.0
    %v4203 = vmax.f32 %v4139, 0.0
    %v4204 = vmax.f32 %v4140, 0.0
    %v4205 = vmax.f32 %v4141, 0.0
    %v4206 = vmax.f32 %v4142, 0.0
    %v4207 = vmax.f32 %v4143, 0.0
    %v4208 = vmax.f32 %v4144, 0.0
    %v4209 = vmax.f32 %v4145, 0.0
    %v4210 = vmax.f32 %v4146, 0.0
    %v4211 = vmax.f32 %v4147, 0.0
    %v4212 = vmax.f32 %v4148, 0.0
    %v4213 = vmax.f32 %v4149, 0.0
    %v4214 = vmax.f32 %v4150, 0.0
    %v4215 = vmax.f32 %v4151, 0.0
    %v4216 = vmax.f32 %v4152, 0.0
    %v4217 = vmax.f32 %v4153, 0.0
    %v4218 = vmax.f32 %v4154, 0.0
    %v4219 = vmax.f32 %v4155, 0.0
    %v4220 = vmax.f32 %v4156, 0.0
    %v4221 = vmax.f32 %v4157, 0.0
    %v4222 = vmax.f32 %v4158, 0.0
    %v4223 = vmax.f32 %v4159, 0.0
    %v4224 = vmax.f32 %v4160, 0.0
    %v4289 = vcombine.low %v4161, %v4162
    %v4290 = vcombine.low %v4163, %v4164
    %v4291 = vcombine.low %v4165, %v4166
    %v4292 = vcombine.low %v4167, %v4168
    %v4293 = vcombine.low %v4169, %v4170
    %v4294 = vcombine.low %v4171, %v4172
    %v4295 = vcombine.low %v4173, %v4174
    %v4296 = vcombine.low %v4175, %v4176
    %v4297 = vcombine.low %v4177, %v4178
    %v4298 = vcombine.low %v4179, %v4180
    %v4299 = vcombine.low %v4181, %v4182
    %v4300 = vcombine.low %v4183, %v4184
    %v4301 = vcombine.low %v4185, %v4186
    %v4302 = vcombine.low %v4187, %v4188
    %v4303 = vcombine.low %v4189, %v4190
    %v4304 = vcombine.low %v4191, %v4192
    %v4305 = vcombine.low %v4193, %v4194
    %v4306 = vcombine.low %v4195, %v4196
    %v4307 = vcombine.low %v4197, %v4198
    %v4308 = vcombine.low %v4199, %v4200
    %v4309 = vcombine.low %v4201, %v4202
    %v4310 = vcombine.low %v4203, %v4204
    %v4311 = vcombine.low %v4205, %v4206
    %v4312 = vcombine.low %v4207, %v4208
    %v4313 = vcombine.low %v4209, %v4210
    %v4314 = vcombine.low %v4211, %v4212
    %v4315 = vcombine.low %v4213, %v4214
    %v4316 = vcombine.low %v4215, %v4216
    %v4317 = vcombine.low %v4217, %v4218
    %v4318 = vcombine.low %v4219, %v4220
    %v4319 = vcombine.low %v4221, %v4222
    %v4320 = vcombine.low %v4223, %v4224
    %v4353 = vrot.slane %v4289, 4
    %v4354 = vmax.f32 %v4289, %v4353
    %v4355 = vrot.slane %v4354, 2
    %v4356 = vmax.f32 %v4354, %v4355
    %v4357 = vrot.slane %v4356, 1
    %v4358 = vmax.f32 %v4356, %v4357
    %v4359 = vrot.slane %v4290, 4
    %v4360 = vmax.f32 %v4290, %v4359
    %v4361 = vrot.slane %v4360, 2
    %v4362 = vmax.f32 %v4360, %v4361
    %v4363 = vrot.slane %v4362, 1
    %v4364 = vmax.f32 %v4362, %v4363
    %v4365 = vrot.slane %v4291, 4
    %v4366 = vmax.f32 %v4291, %v4365
    %v4367 = vrot.slane %v4366, 2
    %v4368 = vmax.f32 %v4366, %v4367
    %v4369 = vrot.slane %v4368, 1
    %v4370 = vmax.f32 %v4368, %v4369
    %v4371 = vrot.slane %v4292, 4
    %v4372 = vmax.f32 %v4292, %v4371
    %v4373 = vrot.slane %v4372, 2
    %v4374 = vmax.f32 %v4372, %v4373
    %v4375 = vrot.slane %v4374, 1
    %v4376 = vmax.f32 %v4374, %v4375
    %v4377 = vrot.slane %v4293, 4
    %v4378 = vmax.f32 %v4293, %v4377
    %v4379 = vrot.slane %v4378, 2
    %v4380 = vmax.f32 %v4378, %v4379
    %v4381 = vrot.slane %v4380, 1
    %v4382 = vmax.f32 %v4380, %v4381
    %v4383 = vrot.slane %v4294, 4
    %v4384 = vmax.f32 %v4294, %v4383
    %v4385 = vrot.slane %v4384, 2
    %v4386 = vmax.f32 %v4384, %v4385
    %v4387 = vrot.slane %v4386, 1
    %v4388 = vmax.f32 %v4386, %v4387
    %v4389 = vrot.slane %v4295, 4
    %v4390 = vmax.f32 %v4295, %v4389
    %v4391 = vrot.slane %v4390, 2
    %v4392 = vmax.f32 %v4390, %v4391
    %v4393 = vrot.slane %v4392, 1
    %v4394 = vmax.f32 %v4392, %v4393
    %v4395 = vrot.slane %v4296, 4
    %v4396 = vmax.f32 %v4296, %v4395
    %v4397 = vrot.slane %v4396, 2
    %v4398 = vmax.f32 %v4396, %v4397
    %v4399 = vrot.slane %v4398, 1
    %v4400 = vmax.f32 %v4398, %v4399
    %v4401 = vrot.slane %v4297, 4
    %v4402 = vmax.f32 %v4297, %v4401
    %v4403 = vrot.slane %v4402, 2
    %v4404 = vmax.f32 %v4402, %v4403
    %v4405 = vrot.slane %v4404, 1
    %v4406 = vmax.f32 %v4404, %v4405
    %v4407 = vrot.slane %v4298, 4
    %v4408 = vmax.f32 %v4298, %v4407
    %v4409 = vrot.slane %v4408, 2
    %v4410 = vmax.f32 %v4408, %v4409
    %v4411 = vrot.slane %v4410, 1
    %v4412 = vmax.f32 %v4410, %v4411
    %v4413 = vrot.slane %v4299, 4
    %v4414 = vmax.f32 %v4299, %v4413
    %v4415 = vrot.slane %v4414, 2
    %v4416 = vmax.f32 %v4414, %v4415
    %v4417 = vrot.slane %v4416, 1
    %v4418 = vmax.f32 %v4416, %v4417
    %v4419 = vrot.slane %v4300, 4
    %v4420 = vmax.f32 %v4300, %v4419
    %v4421 = vrot.slane %v4420, 2
    %v4422 = vmax.f32 %v4420, %v4421
    %v4423 = vrot.slane %v4422, 1
    %v4424 = vmax.f32 %v4422, %v4423
    %v4425 = vrot.slane %v4301, 4
    %v4426 = vmax.f32 %v4301, %v4425
    %v4427 = vrot.slane %v4426, 2
    %v4428 = vmax.f32 %v4426, %v4427
    %v4429 = vrot.slane %v4428, 1
    %v4430 = vmax.f32 %v4428, %v4429
    %v4431 = vrot.slane %v4302, 4
    %v4432 = vmax.f32 %v4302, %v4431
    %v4433 = vrot.slane %v4432, 2
    %v4434 = vmax.f32 %v4432, %v4433
    %v4435 = vrot.slane %v4434, 1
    %v4436 = vmax.f32 %v4434, %v4435
    %v4437 = vrot.slane %v4303, 4
    %v4438 = vmax.f32 %v4303, %v4437
    %v4439 = vrot.slane %v4438, 2
    %v4440 = vmax.f32 %v4438, %v4439
    %v4441 = vrot.slane %v4440, 1
    %v4442 = vmax.f32 %v4440, %v4441
    %v4443 = vrot.slane %v4304, 4
    %v4444 = vmax.f32 %v4304, %v4443
    %v4445 = vrot.slane %v4444, 2
    %v4446 = vmax.f32 %v4444, %v4445
    %v4447 = vrot.slane %v4446, 1
    %v4448 = vmax.f32 %v4446, %v4447
    %v4449 = vrot.slane %v4305, 4
    %v4450 = vmax.f32 %v4305, %v4449
    %v4451 = vrot.slane %v4450, 2
    %v4452 = vmax.f32 %v4450, %v4451
    %v4453 = vrot.slane %v4452, 1
    %v4454 = vmax.f32 %v4452, %v4453
    %v4455 = vrot.slane %v4306, 4
    %v4456 = vmax.f32 %v4306, %v4455
    %v4457 = vrot.slane %v4456, 2
    %v4458 = vmax.f32 %v4456, %v4457
    %v4459 = vrot.slane %v4458, 1
    %v4460 = vmax.f32 %v4458, %v4459
    %v4461 = vrot.slane %v4307, 4
    %v4462 = vmax.f32 %v4307, %v4461
    %v4463 = vrot.slane %v4462, 2
    %v4464 = vmax.f32 %v4462, %v4463
    %v4465 = vrot.slane %v4464, 1
    %v4466 = vmax.f32 %v4464, %v4465
    %v4467 = vrot.slane %v4308, 4
    %v4468 = vmax.f32 %v4308, %v4467
    %v4469 = vrot.slane %v4468, 2
    %v4470 = vmax.f32 %v4468, %v4469
    %v4471 = vrot.slane %v4470, 1
    %v4472 = vmax.f32 %v4470, %v4471
    %v4473 = vrot.slane %v4309, 4
    %v4474 = vmax.f32 %v4309, %v4473
    %v4475 = vrot.slane %v4474, 2
    %v4476 = vmax.f32 %v4474, %v4475
    %v4477 = vrot.slane %v4476, 1
    %v4478 = vmax.f32 %v4476, %v4477
    %v4479 = vrot.slane %v4310, 4
    %v4480 = vmax.f32 %v4310, %v4479
    %v4481 = vrot.slane %v4480, 2
    %v4482 = vmax.f32 %v4480, %v4481
    %v4483 = vrot.slane %v4482, 1
    %v4484 = vmax.f32 %v4482, %v4483
    %v4485 = vrot.slane %v4311, 4
    %v4486 = vmax.f32 %v4311, %v4485
    %v4487 = vrot.slane %v4486, 2
    %v4488 = vmax.f32 %v4486, %v4487
    %v4489 = vrot.slane %v4488, 1
    %v4490 = vmax.f32 %v4488, %v4489
    %v4491 = vrot.slane %v4312, 4
    %v4492 = vmax.f32 %v4312, %v4491
    %v4493 = vrot.slane %v4492, 2
    %v4494 = vmax.f32 %v4492, %v4493
    %v4495 = vrot.slane %v4494, 1
    %v4496 = vmax.f32 %v4494, %v4495
    %v4497 = vrot.slane %v4313, 4
    %v4498 = vmax.f32 %v4313, %v4497
    %v4499 = vrot.slane %v4498, 2
    %v4500 = vmax.f32 %v4498, %v4499
    %v4501 = vrot.slane %v4500, 1
    %v4502 = vmax.f32 %v4500, %v4501
    %v4503 = vrot.slane %v4314, 4
    %v4504 = vmax.f32 %v4314, %v4503
    %v4505 = vrot.slane %v4504, 2
    %v4506 = vmax.f32 %v4504, %v4505
    %v4507 = vrot.slane %v4506, 1
    %v4508 = vmax.f32 %v4506, %v4507
    %v4509 = vrot.slane %v4315, 4
    %v4510 = vmax.f32 %v4315, %v4509
    %v4511 = vrot.slane %v4510, 2
    %v4512 = vmax.f32 %v4510, %v4511
    %v4513 = vrot.slane %v4512, 1
    %v4514 = vmax.f32 %v4512, %v4513
    %v4515 = vrot.slane %v4316, 4
    %v4516 = vmax.f32 %v4316, %v4515
    %v4517 = vrot.slane %v4516, 2
    %v4518 = vmax.f32 %v4516, %v4517
    %v4519 = vrot.slane %v4518, 1
    %v4520 = vmax.f32 %v4518, %v4519
    %v4521 = vrot.slane %v4317, 4
    %v4522 = vmax.f32 %v4317, %v4521
    %v4523 = vrot.slane %v4522, 2
    %v4524 = vmax.f32 %v4522, %v4523
    %v4525 = vrot.slane %v4524, 1
    %v4526 = vmax.f32 %v4524, %v4525
    %v4527 = vrot.slane %v4318, 4
    %v4528 = vmax.f32 %v4318, %v4527
    %v4529 = vrot.slane %v4528, 2
    %v4530 = vmax.f32 %v4528, %v4529
    %v4531 = vrot.slane %v4530, 1
    %v4532 = vmax.f32 %v4530, %v4531
    %v4533 = vrot.slane %v4319, 4
    %v4534 = vmax.f32 %v4319, %v4533
    %v4535 = vrot.slane %v4534, 2
    %v4536 = vmax.f32 %v4534, %v4535
    %v4537 = vrot.slane %v4536, 1
    %v4538 = vmax.f32 %v4536, %v4537
    %v4539 = vrot.slane %v4320, 4
    %v4540 = vmax.f32 %v4320, %v4539
    %v4541 = vrot.slane %v4540, 2
    %v4542 = vmax.f32 %v4540, %v4541
    %v4543 = vrot.slane %v4542, 1
    %v4544 = vmax.f32 %v4542, %v4543
    %v4545 = vpack.c.bf16 %v4358, %v4358
    %v4546 = vpack.c.bf16 %v4364, %v4364
    %v4547 = vpack.c.bf16 %v4370, %v4370
    %v4548 = vpack.c.bf16 %v4376, %v4376
    %v4549 = vpack.c.bf16 %v4382, %v4382
    %v4550 = vpack.c.bf16 %v4388, %v4388
    %v4551 = vpack.c.bf16 %v4394, %v4394
    %v4552 = vpack.c.bf16 %v4400, %v4400
    %v4553 = vpack.c.bf16 %v4406, %v4406
    %v4554 = vpack.c.bf16 %v4412, %v4412
    %v4555 = vpack.c.bf16 %v4418, %v4418
    %v4556 = vpack.c.bf16 %v4424, %v4424
    %v4557 = vpack.c.bf16 %v4430, %v4430
    %v4558 = vpack.c.bf16 %v4436, %v4436
    %v4559 = vpack.c.bf16 %v4442, %v4442
    %v4560 = vpack.c.bf16 %v4448, %v4448
    %v4561 = vpack.c.bf16 %v4454, %v4454
    %v4562 = vpack.c.bf16 %v4460, %v4460
    %v4563 = vpack.c.bf16 %v4466, %v4466
    %v4564 = vpack.c.bf16 %v4472, %v4472
    %v4565 = vpack.c.bf16 %v4478, %v4478
    %v4566 = vpack.c.bf16 %v4484, %v4484
    %v4567 = vpack.c.bf16 %v4490, %v4490
    %v4568 = vpack.c.bf16 %v4496, %v4496
    %v4569 = vpack.c.bf16 %v4502, %v4502
    %v4570 = vpack.c.bf16 %v4508, %v4508
    %v4571 = vpack.c.bf16 %v4514, %v4514
    %v4572 = vpack.c.bf16 %v4520, %v4520
    %v4573 = vpack.c.bf16 %v4526, %v4526
    %v4574 = vpack.c.bf16 %v4532, %v4532
    %v4575 = vpack.c.bf16 %v4538, %v4538
    %v4576 = vpack.c.bf16 %v4544, %v4544
    %v4577 = vld [vmem:[%s3] sm:$0xff]
    %v4578 = vld [vmem:[%s3 + $0x8] sm:$0xff]
    %v4579 = vld [vmem:[%s3 + $0x10] sm:$0xff]
    %v4580 = vld [vmem:[%s3 + $0x18] sm:$0xff]
    %v4581 = vld [vmem:[%s3 + $0x20] sm:$0xff]
    %v4582 = vld [vmem:[%s3 + $0x28] sm:$0xff]
    %v4583 = vld [vmem:[%s3 + $0x30] sm:$0xff]
    %v4584 = vld [vmem:[%s3 + $0x38] sm:$0xff]
    %v4585 = vld [vmem:[%s3 + $0x40] sm:$0xff]
    %v4586 = vld [vmem:[%s3 + $0x48] sm:$0xff]
    %v4587 = vld [vmem:[%s3 + $0x50] sm:$0xff]
    %v4588 = vld [vmem:[%s3 + $0x58] sm:$0xff]
    %v4589 = vld [vmem:[%s3 + $0x60] sm:$0xff]
    %v4590 = vld [vmem:[%s3 + $0x68] sm:$0xff]
    %v4591 = vld [vmem:[%s3 + $0x70] sm:$0xff]
    %v4592 = vld [vmem:[%s3 + $0x78] sm:$0xff]
    %v4593 = vld [vmem:[%s4] sm:$0x3]
    %v4595 = vlaneseq
    %v4596 = vshrl.u32 %v4595, 7
    %v4597 = vsub.s32 0, %v4596
    %v4598 = vrot.slane %v4593, %v4597
    %v4599 = vlaneseq
    %v4600 = vshrl.u32 %v4599, 7
    %v4601 = vsub.s32 1, %v4600
    %v4602 = vrot.slane %v4593, %v4601
    %v4637 = vunpack.c.l.b16 %v4545
    %v4638 = vunpack.c.l.b16 %v4546
    %v4639 = vunpack.c.l.b16 %v4547
    %v4640 = vunpack.c.l.b16 %v4548
    %v4641 = vunpack.c.l.b16 %v4549
    %v4642 = vunpack.c.l.b16 %v4550
    %v4643 = vunpack.c.l.b16 %v4551
    %v4644 = vunpack.c.l.b16 %v4552
    %v4645 = vunpack.c.l.b16 %v4553
    %v4646 = vunpack.c.l.b16 %v4554
    %v4647 = vunpack.c.l.b16 %v4555
    %v4648 = vunpack.c.l.b16 %v4556
    %v4649 = vunpack.c.l.b16 %v4557
    %v4650 = vunpack.c.l.b16 %v4558
    %v4651 = vunpack.c.l.b16 %v4559
    %v4652 = vunpack.c.l.b16 %v4560
    %v4653 = vunpack.c.l.b16 %v4561
    %v4654 = vunpack.c.l.b16 %v4562
    %v4655 = vunpack.c.l.b16 %v4563
    %v4656 = vunpack.c.l.b16 %v4564
    %v4657 = vunpack.c.l.b16 %v4565
    %v4658 = vunpack.c.l.b16 %v4566
    %v4659 = vunpack.c.l.b16 %v4567
    %v4660 = vunpack.c.l.b16 %v4568
    %v4661 = vunpack.c.l.b16 %v4569
    %v4662 = vunpack.c.l.b16 %v4570
    %v4663 = vunpack.c.l.b16 %v4571
    %v4664 = vunpack.c.l.b16 %v4572
    %v4665 = vunpack.c.l.b16 %v4573
    %v4666 = vunpack.c.l.b16 %v4574
    %v4667 = vunpack.c.l.b16 %v4575
    %v4668 = vunpack.c.l.b16 %v4576
    %vm4669 = vcmask 1041409
    %v4670 = vsel %vm4669, %v4638, %v4637
    %vm4671 = vcmask 1042434
    %v4672 = vsel %vm4671, %v4639, %v4670
    %vm4673 = vcmask 1043459
    %v4674 = vsel %vm4673, %v4640, %v4672
    %v4675 = vsel %vm3318, %v4641, %v4674
    %vm4676 = vcmask 1045509
    %v4677 = vsel %vm4676, %v4642, %v4675
    %vm4678 = vcmask 1046534
    %v4679 = vsel %vm4678, %v4643, %v4677
    %vm4680 = vcmask 1047559
    %v4681 = vsel %vm4680, %v4644, %v4679
    %v4682 = vsel %vm4669, %v4646, %v4645
    %v4683 = vsel %vm4671, %v4647, %v4682
    %v4684 = vsel %vm4673, %v4648, %v4683
    %v4685 = vsel %vm3318, %v4649, %v4684
    %v4686 = vsel %vm4676, %v4650, %v4685
    %v4687 = vsel %vm4678, %v4651, %v4686
    %v4688 = vsel %vm4680, %v4652, %v4687
    %v4689 = vsel %vm4669, %v4654, %v4653
    %v4690 = vsel %vm4671, %v4655, %v4689
    %v4691 = vsel %vm4673, %v4656, %v4690
    %v4692 = vsel %vm3318, %v4657, %v4691
    %v4693 = vsel %vm4676, %v4658, %v4692
    %v4694 = vsel %vm4678, %v4659, %v4693
    %v4695 = vsel %vm4680, %v4660, %v4694
    %v4696 = vsel %vm4669, %v4662, %v4661
    %v4697 = vsel %vm4671, %v4663, %v4696
    %v4698 = vsel %vm4673, %v4664, %v4697
    %v4699 = vsel %vm3318, %v4665, %v4698
    %v4700 = vsel %vm4676, %v4666, %v4699
    %v4701 = vsel %vm4678, %v4667, %v4700
    %v4702 = vsel %vm4680, %v4668, %v4701
    %v4703 = vpack.c.b16 %v4688, %v4681
    %v4704 = vpack.c.b16 %v4702, %v4695
    %v4723 = vunpack.c.l.b16 %v4577
    %v4724 = vunpack.c.h.b16 %v4577
    %v4725 = vunpack.c.l.b16 %v4578
    %v4726 = vunpack.c.h.b16 %v4578
    %v4727 = vunpack.c.l.b16 %v4579
    %v4728 = vunpack.c.h.b16 %v4579
    %v4729 = vunpack.c.l.b16 %v4580
    %v4730 = vunpack.c.h.b16 %v4580
    %v4731 = vunpack.c.l.b16 %v4581
    %v4732 = vunpack.c.h.b16 %v4581
    %v4733 = vunpack.c.l.b16 %v4582
    %v4734 = vunpack.c.h.b16 %v4582
    %v4735 = vunpack.c.l.b16 %v4583
    %v4736 = vunpack.c.h.b16 %v4583
    %v4737 = vunpack.c.l.b16 %v4584
    %v4738 = vunpack.c.h.b16 %v4584
    %v4739 = vunpack.c.l.b16 %v4585
    %v4740 = vunpack.c.h.b16 %v4585
    %v4741 = vunpack.c.l.b16 %v4586
    %v4742 = vunpack.c.h.b16 %v4586
    %v4743 = vunpack.c.l.b16 %v4587
    %v4744 = vunpack.c.h.b16 %v4587
    %v4745 = vunpack.c.l.b16 %v4588
    %v4746 = vunpack.c.h.b16 %v4588
    %v4747 = vunpack.c.l.b16 %v4589
    %v4748 = vunpack.c.h.b16 %v4589
    %v4749 = vunpack.c.l.b16 %v4590
    %v4750 = vunpack.c.h.b16 %v4590
    %v4751 = vunpack.c.l.b16 %v4591
    %v4752 = vunpack.c.h.b16 %v4591
    %v4753 = vunpack.c.l.b16 %v4592
    %v4754 = vunpack.c.h.b16 %v4592
    %v4755 = vpack.c.b16 %v4725, %v4723
    %v4756 = vpack.c.b16 %v4726, %v4724
    %v4757 = vpack.c.b16 %v4729, %v4727
    %v4758 = vpack.c.b16 %v4730, %v4728
    %v4759 = vpack.c.b16 %v4733, %v4731
    %v4760 = vpack.c.b16 %v4734, %v4732
    %v4761 = vpack.c.b16 %v4737, %v4735
    %v4762 = vpack.c.b16 %v4738, %v4736
    %v4763 = vpack.c.b16 %v4741, %v4739
    %v4764 = vpack.c.b16 %v4742, %v4740
    %v4765 = vpack.c.b16 %v4745, %v4743
    %v4766 = vpack.c.b16 %v4746, %v4744
    %v4767 = vpack.c.b16 %v4749, %v4747
    %v4768 = vpack.c.b16 %v4750, %v4748
    %v4769 = vpack.c.b16 %v4753, %v4751
    %v4770 = vpack.c.b16 %v4754, %v4752
    %4787 = vmatprep.subr.bf16.mxu0 %v4756
    %4788 = vmatpush1.bf16.msra.mxu0 %v4755
    %4789 = vmatprep.subr.bf16.mxu0 %v4758
    %4790 = vmatpush1.bf16.msra.mxu0 %v4757
    %4791 = vmatprep.subr.bf16.mxu0 %v4760
    %4792 = vmatpush1.bf16.msra.mxu0 %v4759
    %4793 = vmatprep.subr.bf16.mxu0 %v4762
    %4794 = vmatpush1.bf16.msra.mxu0 %v4761
    %4795 = vmatprep.subr.bf16.mxu0 %v4764
    %4796 = vmatpush1.bf16.msra.mxu0 %v4763
    %4797 = vmatprep.subr.bf16.mxu0 %v4766
    %4798 = vmatpush1.bf16.msra.mxu0 %v4765
    %4799 = vmatprep.subr.bf16.mxu0 %v4768
    %4800 = vmatpush1.bf16.msra.mxu0 %v4767
    %4801 = vmatprep.subr.bf16.mxu0 %v4770
    %4802 = vmatpush1.bf16.msra.mxu0 %v4769
    %4803 = vmatprep.subr.bf16.mxu0 0
    %4804 = vmatpush1.bf16.msra.mxu0 0
    %4805 = vmatprep.subr.bf16.mxu0 0
    %4806 = vmatpush1.bf16.msra.mxu0 0
    %4807 = vmatprep.subr.bf16.mxu0 0
    %4808 = vmatpush1.bf16.msra.mxu0 0
    %4809 = vmatprep.subr.bf16.mxu0 0
    %4810 = vmatpush1.bf16.msra.mxu0 0
    %4811 = vmatprep.subr.bf16.mxu0 0
    %4812 = vmatpush1.bf16.msra.mxu0 0
    %4813 = vmatprep.subr.bf16.mxu0 0
    %4814 = vmatpush1.bf16.msra.mxu0 0
    %4815 = vmatprep.subr.bf16.mxu0 0
    %4816 = vmatpush1.bf16.msra.mxu0 0
    %4817 = vmatprep.subr.bf16.mxu0 0
    %4818 = vmatpush1.bf16.msra.mxu0 0
    %4819 = vmatprep.mubr.bf16.mxu0 0
    %4820 = vmatmul.mubr.bf16.gmra.mrb[0].mxu0 %v4703
    %v4821 = vpop.f32.mrb[0].mxu0
    %v4822 = vadd.f32 %v4598, %v4821
    %v4823 = vpop.f32.mrb[0].mxu0
    %v4824 = vadd.f32 %v4602, %v4823
    %v4825 = vpop.f32.mrb[0].mxu0
    %v4826 = vadd.f32 %v4598, %v4825
    %v4827 = vpop.f32.mrb[0].mxu0
    %v4828 = vadd.f32 %v4602, %v4827
    %4829 = vmatprep.mubr.bf16.mxu0 0
    %4830 = vmatmul.mubr.bf16.gmra.mrb[0].mxu0 %v4704
    %v4831 = vpop.f32.mrb[0].mxu0
    %v4832 = vadd.f32 %v4598, %v4831
    %v4833 = vpop.f32.mrb[0].mxu0
    %v4834 = vadd.f32 %v4602, %v4833
    %v4835 = vpop.f32.mrb[0].mxu0
    %v4836 = vadd.f32 %v4598, %v4835
    %v4837 = vpop.f32.mrb[0].mxu0
    %v4838 = vadd.f32 %v4602, %v4837
    %4839 = vdwg.mxu0
    %v4840 = vmax.f32 %v4822, 0.0
    %v4841 = vmax.f32 %v4826, 0.0
    %v4842 = vmax.f32 %v4832, 0.0
    %v4843 = vmax.f32 %v4836, 0.0
    %v4844 = vxor.u32 %v4824, 2147483648
    %v4845 = vxor.u32 %v4828, 2147483648
    %v4846 = vxor.u32 %v4834, 2147483648
    %v4847 = vxor.u32 %v4838, 2147483648
    %v4848 = vmul.f32 %v4844, 1.442695
    %v4849 = vpow.pop %v4848
    %v4850 = vmul.f32 %v4845, 1.442695
    %v4851 = vpow.pop %v4850
    %v4852 = vmul.f32 %v4846, 1.442695
    %v4853 = vpow.pop %v4852
    %v4854 = vmul.f32 %v4847, 1.442695
    %v4855 = vpow.pop %v4854
    %v4856 = vadd.f32 %v4849, 1.0
    %v4857 = vadd.f32 %v4851, 1.0
    %v4858 = vadd.f32 %v4853, 1.0
    %v4859 = vadd.f32 %v4855, 1.0
    %v4860 = vrcp.pop %v4856
    %v4861 = vmul.f32 1.0, %v4860
    %v4862 = vrcp.pop %v4857
    %v4863 = vmul.f32 1.0, %v4862
    %v4864 = vrcp.pop %v4858
    %v4865 = vmul.f32 1.0, %v4864
    %v4866 = vrcp.pop %v4859
    %v4867 = vmul.f32 1.0, %v4866
    %v4868 = vmul.f32 %v4861, %v4840
    %v4869 = vmul.f32 %v4863, %v4841
    %v4870 = vmul.f32 %v4865, %v4842
    %v4871 = vmul.f32 %v4867, %v4843
    %v4872 = vsub.f32 1.0, %v4861
    %v4873 = vsub.f32 1.0, %v4863
    %v4874 = vsub.f32 1.0, %v4865
    %v4875 = vsub.f32 1.0, %v4867
    %v4908 = vsel %vm4669, %v4364, %v4358
    %v4909 = vsel %vm4671, %v4370, %v4908
    %v4910 = vsel %vm4673, %v4376, %v4909
    %v4911 = vsel %vm3318, %v4382, %v4910
    %v4912 = vsel %vm4676, %v4388, %v4911
    %v4913 = vsel %vm4678, %v4394, %v4912
    %v4914 = vsel %vm4680, %v4400, %v4913
    %v4915 = vsel %vm4669, %v4412, %v4406
    %v4916 = vsel %vm4671, %v4418, %v4915
    %v4917 = vsel %vm4673, %v4424, %v4916
    %v4918 = vsel %vm3318, %v4430, %v4917
    %v4919 = vsel %vm4676, %v4436, %v4918
    %v4920 = vsel %vm4678, %v4442, %v4919
    %v4921 = vsel %vm4680, %v4448, %v4920
    %v4922 = vsel %vm4669, %v4460, %v4454
    %v4923 = vsel %vm4671, %v4466, %v4922
    %v4924 = vsel %vm4673, %v4472, %v4923
    %v4925 = vsel %vm3318, %v4478, %v4924
    %v4926 = vsel %vm4676, %v4484, %v4925
    %v4927 = vsel %vm4678, %v4490, %v4926
    %v4928 = vsel %vm4680, %v4496, %v4927
    %v4929 = vsel %vm4669, %v4508, %v4502
    %v4930 = vsel %vm4671, %v4514, %v4929
    %v4931 = vsel %vm4673, %v4520, %v4930
    %v4932 = vsel %vm3318, %v4526, %v4931
    %v4933 = vsel %vm4676, %v4532, %v4932
    %v4934 = vsel %vm4678, %v4538, %v4933
    %v4935 = vsel %vm4680, %v4544, %v4934
    %v4940 = vmul.f32 %v4872, %v4914
    %v4941 = vmul.f32 %v4873, %v4921
    %v4942 = vmul.f32 %v4874, %v4928
    %v4943 = vmul.f32 %v4875, %v4935
    %v4944 = vadd.f32 %v4868, %v4940
    %v4945 = vadd.f32 %v4869, %v4941
    %v4946 = vadd.f32 %v4870, %v4942
    %v4947 = vadd.f32 %v4871, %v4943
    %4948 = vst [vmem:[#allocation2] sm:$0xff] %v4944
    %4949 = vst [vmem:[#allocation2 + $0x8] sm:$0xff] %v4945
    %4950 = vst [vmem:[#allocation2 + $0x10] sm:$0xff] %v4946
    %4951 = vst [vmem:[#allocation2 + $0x18] sm:$0xff] %v4947
    // Predicated region
    $region22: #{tpu_custom_call.1} parent=1 // pred_check
      _
    $region23: #{tpu_custom_call.1} parent=1 // pred_check_branch
      %4953 = sbr.rel (0) target = $region25
    $region24: #{tpu_custom_call.1} parent=1 // pred_region
      %s4955 = ssub.s32 512, 512
      %4956 = vsyncadd [#allocation3], %s4955
      %s4957 = sshll.u32 [#allocation2], 4
      %s4958 = int_to_ptr.vmem [resolvable:$true] %s4957
      %4963 = dma.vmem_to_hbm [thread:$0]  %s4958, 512, %s5, [#allocation3], 128, 128, 8
    $region25: #{tpu_custom_call.1} parent=1 // pred_fallthru
      _
    // Predicated region
    $region26: #{tpu_custom_call.1} parent=1 // pred_check
      _
    $region27: #{tpu_custom_call.1} parent=1 // pred_check_branch
      %4965 = sbr.rel (0) target = $region29
    $region28: #{tpu_custom_call.1} parent=1 // pred_region
      %4966 = dma.done [#allocation3], 512
    $region29: #{tpu_custom_call.1} parent=1 // pred_fallthru
      _
    %4967 = vsyncpa [#allocation3], 1

</llo_original>
